<compile_context>
chip_gen: v7x
topology: tpu7x:2x2x1
jax: 0.10.0
libtpu: 0.0.40
codegen_flags: <defaults>
</compile_context>

<pallas_src>
import functools

import jax
import jax.numpy as jnp
from jax import lax
from jax.experimental import pallas as pl
from jax.experimental.pallas import tpu as pltpu

OUT_DIM = 41      # logical output width of the final Linear
OUT_PAD = 128     # lane-dense padded output width


# --------------------------------------------------------------------------
# Kernel
# --------------------------------------------------------------------------
def _gcn_magnet_kernel(hidden_dim, n_nodes, n_pool, g_ref, p_ref, out_ref):
    """One grid step = SPB stacked samples.

    g_ref : (1, Nn + 8, Nn + 128) graph slab
              rows 0:Nn, lanes 0:Nn        -> raw block-diagonal adjacency
              rows 0:Nn, lanes Nn:Nn+2     -> node features x
              rows 0:Nn, lane  Nn+2        -> per-node pooled-row id (f32)
              row  Nn,   lanes 0:Nn        -> pooled-row ids, lane-major copy
    p_ref : (8 + 4H, 128) parameter slab (see prepare_params for row layout)
    out_ref: (Gp, 128) pooled-row outputs (lane-dense, sliced to 41 outside)
    """
    f32 = jnp.float32
    H = hidden_dim
    Nn = n_nodes          # nodes per grid step (SPB * N)
    Gp = n_pool           # pooled rows per grid step (SPB * G)

    # ---- unpack graph slab (static slices; zero-cost ref views) ----
    A = g_ref[0, :Nn, :Nn]                                      # (Nn, Nn) raw, no self loops
    x = g_ref[0, :Nn, Nn:Nn + 2]                                # (Nn, 2)
    pid_r = g_ref[0, :Nn, Nn + 2:Nn + 3].astype(jnp.int32)      # (Nn, 1) per-node pool id
    pid_l = g_ref[0, Nn:Nn + 1, :Nn].astype(jnp.int32)          # (1, Nn) lane-major copy

    # ---- unpack parameter slab ----
    w1 = p_ref[0:2, :H]                                         # (2, H)
    b1 = p_ref[2:3, :H]
    b2 = p_ref[3:4, :H]
    b3 = p_ref[4:5, :H]
    bo = p_ref[5:6, :]                                          # (1, 128)
    w2 = p_ref[8:8 + H, :H]                                     # (H, H)
    w3 = p_ref[8 + H:8 + 2 * H, :H]                             # (H, H)
    wo_max = p_ref[8 + 2 * H:8 + 3 * H, :]                      # (H, 128)
    wo_mean = p_ref[8 + 3 * H:8 + 4 * H, :]                     # (H, 128)

    # ---- fused graph prep: A_hat = D^-1/2 (A + I) D^-1/2, kept factored ----
    row_i = lax.broadcasted_iota(jnp.int32, (Nn, Nn), 0)
    col_i = lax.broadcasted_iota(jnp.int32, (Nn, Nn), 1)
    A = A + (row_i == col_i).astype(f32)                        # + I (per-node self loop)
    deg = jnp.sum(A, axis=1, keepdims=True)                     # (Nn, 1), >= 1 always
    d_is = lax.rsqrt(deg)                                       # EUP

    def gcn_tanh(xw, b):
        # A_hat @ xw == d_is * (A @ (d_is * xw)) : two row-scalings, one MXU matmul
        agg = jnp.dot(A, d_is * xw, preferred_element_type=f32)
        return jnp.tanh(d_is * agg + b)

    # layer 1: K=2 contraction as a VPU rank-2 update (no degenerate MXU pass)
    xw1 = x[:, 0:1] * w1[0:1, :] + x[:, 1:2] * w1[1:2, :]       # (Nn, H)
    h = gcn_tanh(xw1, b1)
    # layers 2, 3 (MXU)
    h = gcn_tanh(jnp.dot(h, w2, preferred_element_type=f32), b2)
    h = gcn_tanh(jnp.dot(h, w3, preferred_element_type=f32), b3)

    # ---- pooling ----
    # membership, both layouts built by cheap VPU compares (no transpose):
    gid_r = lax.broadcasted_iota(jnp.int32, (Nn, Gp), 1)
    m_t = (pid_r == gid_r).astype(f32)                          # (Nn, Gp) column masks
    gid_l = lax.broadcasted_iota(jnp.int32, (Gp, Nn), 0)
    m = (pid_l == gid_l).astype(f32)                            # (Gp, Nn) for MXU mean

    # mean pool: single MXU matmul + guarded per-row divide (empty graph -> 0, not NaN)
    cnt = jnp.sum(m, axis=1, keepdims=True)                     # (Gp, 1)
    mean_pool = jnp.dot(m, h, preferred_element_type=f32) / jnp.maximum(cnt, 1.0)

    # max pool: bounded additive mask — valid ONLY because h = tanh(...) ∈ [-1, 1]
    max_rows = []
    for g in range(Gp):                                         # Gp is small & static
        col = m_t[:, g:g + 1]                                   # (Nn, 1)
        hm = h + (col - 1.0) * 4.0                              # non-members <= -3 < min(h)
        max_rows.append(jnp.max(hm, axis=0, keepdims=True))     # (1, H)
    max_pool = jnp.concatenate(max_rows, axis=0)                # (Gp, H)

    # ---- output head: split matmul (no lane concat), lane-dense store ----
    out = (jnp.dot(max_pool, wo_max, preferred_element_type=f32)
           + jnp.dot(mean_pool, wo_mean, preferred_element_type=f32)
           + bo)
    out_ref[...] = jnp.tanh(out)


# --------------------------------------------------------------------------
# One-time parameter packing (hoisted out of the per-call path)
# --------------------------------------------------------------------------
def prepare_params(params, hidden_dim):
    """Row-stack all weights/biases into one (8 + 4H, 128) f32 slab."""
    H = hidden_dim
    rows = 8 + 4 * H
    f32 = jnp.float32
    slab = jnp.zeros((rows, 128), f32)
    slab = slab.at[0:2, :H].set(params["w1"].astype(f32))
    slab = slab.at[2, :H].set(params["b1"].reshape(H).astype(f32))
    slab = slab.at[3, :H].set(params["b2"].reshape(H).astype(f32))
    slab = slab.at[4, :H].set(params["b3"].reshape(H).astype(f32))
    slab = slab.at[5, :OUT_DIM].set(params["b_out"].reshape(OUT_DIM).astype(f32))
    slab = slab.at[8:8 + H, :H].set(params["w2"].astype(f32))
    slab = slab.at[8 + H:8 + 2 * H, :H].set(params["w3"].astype(f32))
    slab = slab.at[8 + 2 * H:8 + 4 * H, :OUT_DIM].set(params["w_out"].astype(f32))
    return slab


# --------------------------------------------------------------------------
# Batched forward: B independent (x, edge_index, batch) samples per call
# --------------------------------------------------------------------------
@functools.partial(jax.jit,
                   static_argnames=("hidden_dim", "num_graphs", "samples_per_block"))
def gcn_magnet_forward_batched(x, edge_index, batch, param_slab, *,
                               hidden_dim, num_graphs, samples_per_block=8):
    """x: (B, N, 2) f32, edge_index: (B, 2, E) int32, batch: (B, N) int32.

    Returns (B, num_graphs, 41).  Precondition: every graph id in
    [0, num_graphs) has >= 1 member node per sample (matches the reference).
    """
    f32 = jnp.float32
    B, N, _ = x.shape
    G = num_graphs

    SPB = min(samples_per_block, B)            # samples packed per grid step
    groups = -(-B // SPB)                      # grid size
    B_pad = groups * SPB
    Nn = SPB * N                               # nodes per grid step
    Gp = SPB * G                               # pooled rows per grid step
    lanes = Nn + 128
    rows = Nn + 8

    # pad the sample axis; padded samples have no edges and are sliced off at the end
    if B_pad != B:
        x = jnp.concatenate([x, jnp.zeros((B_pad - B, N, 2), f32)], axis=0)
        batch = jnp.concatenate(
            [batch, jnp.zeros((B_pad - B, N), batch.dtype)], axis=0)

    # ---- one batched scatter builds every block-diagonal adjacency ----
    sample = jnp.arange(B, dtype=jnp.int32)
    grp = (sample // SPB)[:, None]                                # (B, 1)
    off = ((sample % SPB) * N)[:, None]                           # (B, 1)
    src = edge_index[:, 0, :].astype(jnp.int32) + off             # (B, E)
    dst = edge_index[:, 1, :].astype(jnp.int32) + off             # (B, E)
    grp_b = jnp.broadcast_to(grp, src.shape)
    adj = jnp.zeros((groups, Nn, Nn), f32).at[grp_b, dst, src].add(1.0)

    # ---- fused graph slab: adjacency + features + pool ids, ONE operand ----
    sample_p = jnp.arange(B_pad, dtype=jnp.int32)
    pid = (sample_p % SPB)[:, None] * G + batch.astype(jnp.int32)  # (B_pad, N)
    pid_g = pid.reshape(groups, Nn).astype(f32)
    x_rows = x.astype(f32).reshape(groups, Nn, 2)
    top = jnp.concatenate(
        [adj, x_rows, pid_g[:, :, None], jnp.zeros((groups, Nn, 125), f32)],
        axis=-1)                                                   # (groups, Nn, lanes)
    bottom = jnp.zeros((groups, 8, lanes), f32).at[:, 0, :Nn].set(pid_g)
    gslab = jnp.concatenate([top, bottom], axis=1)                 # (groups, rows, lanes)

    kernel = functools.partial(_gcn_magnet_kernel, hidden_dim, Nn, Gp)
    out_pad = pl.pallas_call(
        kernel,
        out_shape=jax.ShapeDtypeStruct((groups * Gp, OUT_PAD), f32),
        grid=(groups,),
        in_specs=[
            pl.BlockSpec((1, rows, lanes), lambda g: (g, 0, 0)),          # graph slab
            pl.BlockSpec((param_slab.shape[0], 128), lambda g: (0, 0)),   # params (revisited, no re-DMA)
        ],
        out_specs=pl.BlockSpec((Gp, OUT_PAD), lambda g: (g, 0)),
        compiler_params=pltpu.CompilerParams(
            dimension_semantics=("parallel",)),                   # v7x: split groups over 2 TCs
    )(gslab, param_slab)

    # pooled-row index == sample * G + graph, so the first B*G rows are the real samples
    return out_pad[:B * G, :OUT_DIM].reshape(B, G, OUT_DIM)


# --------------------------------------------------------------------------
# Pure-JAX reference (per sample, vmapped)
# --------------------------------------------------------------------------
def _reference_forward_single(x, edge_index, batch, params, num_graphs):
    N = x.shape[0]
    A = jnp.zeros((N, N), jnp.float32).at[edge_index[1], edge_index[0]].add(1.0)
    A = A + jnp.eye(N, dtype=jnp.float32)
    d = 1.0 / jnp.sqrt(jnp.sum(A, axis=1))
    A_hat = A * d[:, None] * d[None, :]

    h = jnp.tanh(A_hat @ (x @ params["w1"]) + params["b1"])
    h = jnp.tanh(A_hat @ (h @ params["w2"]) + params["b2"])
    h = jnp.tanh(A_hat @ (h @ params["w3"]) + params["b3"])

    M = (batch[None, :] == jnp.arange(num_graphs, dtype=batch.dtype)[:, None]
         ).astype(jnp.float32)
    mean_pool = (M @ h) / jnp.sum(M, axis=1, keepdims=True)
    max_pool = jnp.stack(
        [jnp.max(jnp.where(M[g][:, None] > 0, h, -1e30), axis=0)
         for g in range(num_graphs)], axis=0)
    pooled = jnp.concatenate([max_pool, mean_pool], axis=1)
    return jnp.tanh(pooled @ params["w_out"] + params["b_out"])


def _init_params(key, hidden_dim):
    """Deterministic synthetic parameters (glorot-ish normal init)."""
    ks = jax.random.split(key, 8)
    f32 = jnp.float32

    def glorot(k, shape):
        scale = jnp.sqrt(2.0 / (shape[0] + shape[1]))
        return (jax.random.normal(k, shape, f32) * scale).astype(f32)

    return {
        "w1": glorot(ks[0], (2, hidden_dim)),
        "b1": jnp.zeros((1, hidden_dim), f32),
        "w2": glorot(ks[1], (hidden_dim, hidden_dim)),
        "b2": 0.01 * jax.random.normal(ks[2], (1, hidden_dim), f32),
        "w3": glorot(ks[3], (hidden_dim, hidden_dim)),
        "b3": 0.01 * jax.random.normal(ks[4], (1, hidden_dim), f32),
        "w_out": glorot(ks[5], (2 * hidden_dim, OUT_DIM)),
        "b_out": 0.01 * jax.random.normal(ks[6], (1, OUT_DIM), f32),
    }


if __name__ == "__main__":
    hidden_dim = 32
    num_graphs = 2           # graphs per sample
    nodes_per_graph = 8
    N = num_graphs * nodes_per_graph      # nodes per sample = 16
    B = 16                   # stacked samples per forward
    SPB = 8                  # samples packed per grid step -> (128, H) node slab

    key = jax.random.PRNGKey(0)
    k_x, k_p = jax.random.split(key)

    # node features: (B, N, 2)
    x = jax.random.normal(k_x, (B, N, 2), jnp.float32)

    # each sample: two 8-node ring graphs (undirected: both edge directions)
    src, dst = [], []
    for g in range(num_graphs):
        base = g * nodes_per_graph
        for i in range(nodes_per_graph):
            a, b = base + i, base + (i + 1) % nodes_per_graph
            src += [a, b]
            dst += [b, a]
    edge_single = jnp.array([src, dst], dtype=jnp.int32)          # (2, E)
    edge_index = jnp.broadcast_to(edge_single[None], (B,) + edge_single.shape)
    batch_single = jnp.repeat(jnp.arange(num_graphs, dtype=jnp.int32),
                              nodes_per_graph)                    # (N,)
    batch = jnp.broadcast_to(batch_single[None], (B, N))

    params = _init_params(k_p, hidden_dim)
    param_slab = prepare_params(params, hidden_dim)               # one-time packing

    out = gcn_magnet_forward_batched(
        x, edge_index, batch, param_slab,
        hidden_dim=hidden_dim, num_graphs=num_graphs, samples_per_block=SPB)
    out = jax.block_until_ready(out)

    ref = jax.vmap(
        lambda xs, es, bs: _reference_forward_single(xs, es, bs, params, num_graphs)
    )(x, edge_index, batch)

    assert out.shape == (B, num_graphs, OUT_DIM)
    assert jnp.allclose(out, ref, atol=1e-5, rtol=1e-5), "mismatch vs JAX reference"

    print("KERNEL_OK")
</pallas_src>

<mosaic_0001>
module attributes {stable_mosaic.version = 11 : i64} {
  func.func private @main(%arg0: i32) attributes {dimension_semantics = [#tpu.dimension_semantics<core_parallel>], iteration_bounds = array<i64: 2>, tpu.core_type = #tpu.core_type<sc_scalar_subcore>, window_params = []} {
    return
  }
}

module attributes {stable_mosaic.version = 11 : i64} {
  func.func private @main(%arg0: i32) attributes {dimension_semantics = [#tpu.dimension_semantics<core_parallel>], iteration_bounds = array<i64: 2>, tpu.core_type = #tpu.core_type<sc_scalar_subcore>, window_params = []} {
    return
  }
}

module attributes {stable_mosaic.version = 11 : i64} {
  func.func @_gcn_magnet_kernel(%arg0: i32, %arg1: memref<1x136x256xf32, #tpu.memory_space<vmem>>, %arg2: memref<136x128xf32, #tpu.memory_space<vmem>>, %arg3: memref<16x128xf32, #tpu.memory_space<vmem>>) attributes {dimension_semantics = [#tpu.dimension_semantics<parallel>], iteration_bounds = array<i64: 2>, scalar_prefetch = 0 : i64, scratch_operands = 0 : i64, tpu.core_type = #tpu.core_type<tc>, window_params = [{transform_indices = @transform_0, window_bounds = array<i64: 1, 136, 256>}, {pipeline_mode = #tpu.pipeline_mode<synchronous>, transform_indices = @transform_1, window_bounds = array<i64: 136, 128>}, {transform_indices = @transform_2, window_bounds = array<i64: 16, 128>}]} {
    %c0 = arith.constant 0 : index
    %c0_0 = arith.constant 0 : index
    %c0_1 = arith.constant 0 : index
    %0 = vector.load %arg1[%c0, %c0_0, %c0_1] : memref<1x136x256xf32, #tpu.memory_space<vmem>>, vector<1x128x128xf32>
    %1 = vector.shape_cast %0 : vector<1x128x128xf32> to vector<128x128xf32>
    %c0_2 = arith.constant 0 : index
    %c0_3 = arith.constant 0 : index
    %c128 = arith.constant 128 : index
    %2 = vector.load %arg1[%c0_2, %c0_3, %c128] : memref<1x136x256xf32, #tpu.memory_space<vmem>>, vector<1x128x2xf32>
    %3 = vector.shape_cast %2 : vector<1x128x2xf32> to vector<128x2xf32>
    %c0_4 = arith.constant 0 : index
    %c0_5 = arith.constant 0 : index
    %c130 = arith.constant 130 : index
    %4 = vector.load %arg1[%c0_4, %c0_5, %c130] : memref<1x136x256xf32, #tpu.memory_space<vmem>>, vector<1x128x1xf32>
    %5 = vector.shape_cast %4 : vector<1x128x1xf32> to vector<128x1xf32>
    %6 = arith.fptosi %5 : vector<128x1xf32> to vector<128x1xi32>
    %c0_6 = arith.constant 0 : index
    %c128_7 = arith.constant 128 : index
    %c0_8 = arith.constant 0 : index
    %7 = vector.load %arg1[%c0_6, %c128_7, %c0_8] : memref<1x136x256xf32, #tpu.memory_space<vmem>>, vector<1x1x128xf32>
    %8 = vector.shape_cast %7 : vector<1x1x128xf32> to vector<1x128xf32>
    %9 = arith.fptosi %8 : vector<1x128xf32> to vector<1x128xi32>
    %c0_9 = arith.constant 0 : index
    %c0_10 = arith.constant 0 : index
    %10 = vector.load %arg2[%c0_9, %c0_10] : memref<136x128xf32, #tpu.memory_space<vmem>>, vector<2x32xf32>
    %c2 = arith.constant 2 : index
    %c0_11 = arith.constant 0 : index
    %11 = vector.load %arg2[%c2, %c0_11] : memref<136x128xf32, #tpu.memory_space<vmem>>, vector<1x32xf32>
    %c3 = arith.constant 3 : index
    %c0_12 = arith.constant 0 : index
    %12 = vector.load %arg2[%c3, %c0_12] : memref<136x128xf32, #tpu.memory_space<vmem>>, vector<1x32xf32>
    %c4 = arith.constant 4 : index
    %c0_13 = arith.constant 0 : index
    %13 = vector.load %arg2[%c4, %c0_13] : memref<136x128xf32, #tpu.memory_space<vmem>>, vector<1x32xf32>
    %c5 = arith.constant 5 : index
    %c0_14 = arith.constant 0 : index
    %14 = vector.load %arg2[%c5, %c0_14] : memref<136x128xf32, #tpu.memory_space<vmem>>, vector<1x128xf32>
    %c8 = arith.constant 8 : index
    %c0_15 = arith.constant 0 : index
    %15 = vector.load %arg2[%c8, %c0_15] : memref<136x128xf32, #tpu.memory_space<vmem>>, vector<32x32xf32>
    %c40 = arith.constant 40 : index
    %c0_16 = arith.constant 0 : index
    %16 = vector.load %arg2[%c40, %c0_16] : memref<136x128xf32, #tpu.memory_space<vmem>>, vector<32x32xf32>
    %c72 = arith.constant 72 : index
    %c0_17 = arith.constant 0 : index
    %17 = vector.load %arg2[%c72, %c0_17] : memref<136x128xf32, #tpu.memory_space<vmem>>, vector<32x128xf32>
    %c104 = arith.constant 104 : index
    %c0_18 = arith.constant 0 : index
    %18 = vector.load %arg2[%c104, %c0_18] : memref<136x128xf32, #tpu.memory_space<vmem>>, vector<32x128xf32>
    %19 = tpu.iota {dimensions = array<i32: 0>} : vector<128x128xi32>
    %20 = tpu.iota {dimensions = array<i32: 1>} : vector<128x128xi32>
    %21 = arith.cmpi eq, %19, %20 : vector<128x128xi32>
    %22 = arith.extui %21 : vector<128x128xi1> to vector<128x128xi32>
    %23 = arith.sitofp %22 : vector<128x128xi32> to vector<128x128xf32>
    %24 = arith.addf %1, %23 : vector<128x128xf32>
    %cst = arith.constant dense<0.000000e+00> : vector<128xf32>
    %25 = vector.multi_reduction <add>, %24, %cst [1] : vector<128x128xf32> to vector<128xf32>
    %26 = vector.shape_cast %25 : vector<128xf32> to vector<128x1xf32>
    %27 = math.rsqrt %26 : vector<128x1xf32>
    %28 = vector.extract_strided_slice %3 {offsets = [0, 0], sizes = [128, 1], strides = [1, 1]} : vector<128x2xf32> to vector<128x1xf32>
    %29 = vector.extract_strided_slice %10 {offsets = [0, 0], sizes = [1, 32], strides = [1, 1]} : vector<2x32xf32> to vector<1x32xf32>
    %30 = vector.broadcast %28 : vector<128x1xf32> to vector<128x32xf32>
    %31 = vector.broadcast %29 : vector<1x32xf32> to vector<128x32xf32>
    %32 = arith.mulf %30, %31 : vector<128x32xf32>
    %33 = vector.extract_strided_slice %3 {offsets = [0, 1], sizes = [128, 1], strides = [1, 1]} : vector<128x2xf32> to vector<128x1xf32>
    %34 = vector.extract_strided_slice %10 {offsets = [1, 0], sizes = [1, 32], strides = [1, 1]} : vector<2x32xf32> to vector<1x32xf32>
    %35 = vector.broadcast %33 : vector<128x1xf32> to vector<128x32xf32>
    %36 = vector.broadcast %34 : vector<1x32xf32> to vector<128x32xf32>
    %37 = arith.mulf %35, %36 : vector<128x32xf32>
    %38 = arith.addf %32, %37 : vector<128x32xf32>
    %39 = vector.broadcast %27 : vector<128x1xf32> to vector<128x32xf32>
    %40 = arith.mulf %39, %38 : vector<128x32xf32>
    %cst_19 = arith.constant dense<0.000000e+00> : vector<128x32xf32>
    %41 = tpu.matmul %24, %40, %cst_19 {dimension_numbers = #tpu.dot_dimension_numbers<[1], [0], [0], [1], [0, 0, 1, 1], [], []>} : vector<128x128xf32>, vector<128x32xf32>, vector<128x32xf32> -> vector<128x32xf32>
    %42 = vector.broadcast %27 : vector<128x1xf32> to vector<128x32xf32>
    %43 = arith.mulf %42, %41 : vector<128x32xf32>
    %44 = vector.broadcast %11 : vector<1x32xf32> to vector<128x32xf32>
    %45 = arith.addf %43, %44 : vector<128x32xf32>
    %46 = math.tanh %45 : vector<128x32xf32>
    %cst_20 = arith.constant dense<0.000000e+00> : vector<128x32xf32>
    %47 = tpu.matmul %46, %15, %cst_20 {dimension_numbers = #tpu.dot_dimension_numbers<[1], [0], [0], [1], [0, 0, 1, 1], [], []>} : vector<128x32xf32>, vector<32x32xf32>, vector<128x32xf32> -> vector<128x32xf32>
    %48 = vector.broadcast %27 : vector<128x1xf32> to vector<128x32xf32>
    %49 = arith.mulf %48, %47 : vector<128x32xf32>
    %cst_21 = arith.constant dense<0.000000e+00> : vector<128x32xf32>
    %50 = tpu.matmul %24, %49, %cst_21 {dimension_numbers = #tpu.dot_dimension_numbers<[1], [0], [0], [1], [0, 0, 1, 1], [], []>} : vector<128x128xf32>, vector<128x32xf32>, vector<128x32xf32> -> vector<128x32xf32>
    %51 = vector.broadcast %27 : vector<128x1xf32> to vector<128x32xf32>
    %52 = arith.mulf %51, %50 : vector<128x32xf32>
    %53 = vector.broadcast %12 : vector<1x32xf32> to vector<128x32xf32>
    %54 = arith.addf %52, %53 : vector<128x32xf32>
    %55 = math.tanh %54 : vector<128x32xf32>
    %cst_22 = arith.constant dense<0.000000e+00> : vector<128x32xf32>
    %56 = tpu.matmul %55, %16, %cst_22 {dimension_numbers = #tpu.dot_dimension_numbers<[1], [0], [0], [1], [0, 0, 1, 1], [], []>} : vector<128x32xf32>, vector<32x32xf32>, vector<128x32xf32> -> vector<128x32xf32>
    %57 = vector.broadcast %27 : vector<128x1xf32> to vector<128x32xf32>
    %58 = arith.mulf %57, %56 : vector<128x32xf32>
    %cst_23 = arith.constant dense<0.000000e+00> : vector<128x32xf32>
    %59 = tpu.matmul %24, %58, %cst_23 {dimension_numbers = #tpu.dot_dimension_numbers<[1], [0], [0], [1], [0, 0, 1, 1], [], []>} : vector<128x128xf32>, vector<128x32xf32>, vector<128x32xf32> -> vector<128x32xf32>
    %60 = vector.broadcast %27 : vector<128x1xf32> to vector<128x32xf32>
    %61 = arith.mulf %60, %59 : vector<128x32xf32>
    %62 = vector.broadcast %13 : vector<1x32xf32> to vector<128x32xf32>
    %63 = arith.addf %61, %62 : vector<128x32xf32>
    %64 = math.tanh %63 : vector<128x32xf32>
    %65 = tpu.iota {dimensions = array<i32: 1>} : vector<128x16xi32>
    %66 = vector.broadcast %6 : vector<128x1xi32> to vector<128x16xi32>
    %67 = arith.cmpi eq, %66, %65 : vector<128x16xi32>
    %68 = arith.extui %67 : vector<128x16xi1> to vector<128x16xi32>
    %69 = arith.sitofp %68 : vector<128x16xi32> to vector<128x16xf32>
    %70 = tpu.iota {dimensions = array<i32: 0>} : vector<16x128xi32>
    %71 = vector.broadcast %9 : vector<1x128xi32> to vector<16x128xi32>
    %72 = arith.cmpi eq, %71, %70 : vector<16x128xi32>
    %73 = arith.extui %72 : vector<16x128xi1> to vector<16x128xi32>
    %74 = arith.sitofp %73 : vector<16x128xi32> to vector<16x128xf32>
    %cst_24 = arith.constant dense<0.000000e+00> : vector<16xf32>
    %75 = vector.multi_reduction <add>, %74, %cst_24 [1] : vector<16x128xf32> to vector<16xf32>
    %76 = vector.shape_cast %75 : vector<16xf32> to vector<16x1xf32>
    %cst_25 = arith.constant dense<0.000000e+00> : vector<16x32xf32>
    %77 = tpu.matmul %74, %64, %cst_25 {dimension_numbers = #tpu.dot_dimension_numbers<[1], [0], [0], [1], [0, 0, 1, 1], [], []>} : vector<16x128xf32>, vector<128x32xf32>, vector<16x32xf32> -> vector<16x32xf32>
    %cst_26 = arith.constant 1.000000e+00 : f32
    %78 = vector.broadcast %cst_26 : f32 to vector<16x1xf32>
    %79 = arith.maximumf %76, %78 : vector<16x1xf32>
    %80 = vector.broadcast %79 : vector<16x1xf32> to vector<16x32xf32>
    %81 = arith.divf %77, %80 : vector<16x32xf32>
    %82 = vector.extract_strided_slice %69 {offsets = [0, 0], sizes = [128, 1], strides = [1, 1]} : vector<128x16xf32> to vector<128x1xf32>
    %cst_27 = arith.constant 1.000000e+00 : f32
    %83 = vector.broadcast %cst_27 : f32 to vector<128x1xf32>
    %84 = arith.subf %82, %83 : vector<128x1xf32>
    %cst_28 = arith.constant 4.000000e+00 : f32
    %85 = vector.broadcast %cst_28 : f32 to vector<128x1xf32>
    %86 = arith.mulf %84, %85 : vector<128x1xf32>
    %87 = vector.broadcast %86 : vector<128x1xf32> to vector<128x32xf32>
    %88 = arith.addf %64, %87 : vector<128x32xf32>
    %cst_29 = arith.constant dense<0xFF800000> : vector<32xf32>
    %89 = vector.multi_reduction <maximumf>, %88, %cst_29 [0] : vector<128x32xf32> to vector<32xf32>
    %90 = vector.shape_cast %89 : vector<32xf32> to vector<1x32xf32>
    %91 = vector.extract_strided_slice %69 {offsets = [0, 1], sizes = [128, 1], strides = [1, 1]} : vector<128x16xf32> to vector<128x1xf32>
    %cst_30 = arith.constant 1.000000e+00 : f32
    %92 = vector.broadcast %cst_30 : f32 to vector<128x1xf32>
    %93 = arith.subf %91, %92 : vector<128x1xf32>
    %cst_31 = arith.constant 4.000000e+00 : f32
    %94 = vector.broadcast %cst_31 : f32 to vector<128x1xf32>
    %95 = arith.mulf %93, %94 : vector<128x1xf32>
    %96 = vector.broadcast %95 : vector<128x1xf32> to vector<128x32xf32>
    %97 = arith.addf %64, %96 : vector<128x32xf32>
    %cst_32 = arith.constant dense<0xFF800000> : vector<32xf32>
    %98 = vector.multi_reduction <maximumf>, %97, %cst_32 [0] : vector<128x32xf32> to vector<32xf32>
    %99 = vector.shape_cast %98 : vector<32xf32> to vector<1x32xf32>
    %100 = vector.extract_strided_slice %69 {offsets = [0, 2], sizes = [128, 1], strides = [1, 1]} : vector<128x16xf32> to vector<128x1xf32>
    %cst_33 = arith.constant 1.000000e+00 : f32
    %101 = vector.broadcast %cst_33 : f32 to vector<128x1xf32>
    %102 = arith.subf %100, %101 : vector<128x1xf32>
    %cst_34 = arith.constant 4.000000e+00 : f32
    %103 = vector.broadcast %cst_34 : f32 to vector<128x1xf32>
    %104 = arith.mulf %102, %103 : vector<128x1xf32>
    %105 = vector.broadcast %104 : vector<128x1xf32> to vector<128x32xf32>
    %106 = arith.addf %64, %105 : vector<128x32xf32>
    %cst_35 = arith.constant dense<0xFF800000> : vector<32xf32>
    %107 = vector.multi_reduction <maximumf>, %106, %cst_35 [0] : vector<128x32xf32> to vector<32xf32>
    %108 = vector.shape_cast %107 : vector<32xf32> to vector<1x32xf32>
    %109 = vector.extract_strided_slice %69 {offsets = [0, 3], sizes = [128, 1], strides = [1, 1]} : vector<128x16xf32> to vector<128x1xf32>
    %cst_36 = arith.constant 1.000000e+00 : f32
    %110 = vector.broadcast %cst_36 : f32 to vector<128x1xf32>
    %111 = arith.subf %109, %110 : vector<128x1xf32>
    %cst_37 = arith.constant 4.000000e+00 : f32
    %112 = vector.broadcast %cst_37 : f32 to vector<128x1xf32>
    %113 = arith.mulf %111, %112 : vector<128x1xf32>
    %114 = vector.broadcast %113 : vector<128x1xf32> to vector<128x32xf32>
    %115 = arith.addf %64, %114 : vector<128x32xf32>
    %cst_38 = arith.constant dense<0xFF800000> : vector<32xf32>
    %116 = vector.multi_reduction <maximumf>, %115, %cst_38 [0] : vector<128x32xf32> to vector<32xf32>
    %117 = vector.shape_cast %116 : vector<32xf32> to vector<1x32xf32>
    %118 = vector.extract_strided_slice %69 {offsets = [0, 4], sizes = [128, 1], strides = [1, 1]} : vector<128x16xf32> to vector<128x1xf32>
    %cst_39 = arith.constant 1.000000e+00 : f32
    %119 = vector.broadcast %cst_39 : f32 to vector<128x1xf32>
    %120 = arith.subf %118, %119 : vector<128x1xf32>
    %cst_40 = arith.constant 4.000000e+00 : f32
    %121 = vector.broadcast %cst_40 : f32 to vector<128x1xf32>
    %122 = arith.mulf %120, %121 : vector<128x1xf32>
    %123 = vector.broadcast %122 : vector<128x1xf32> to vector<128x32xf32>
    %124 = arith.addf %64, %123 : vector<128x32xf32>
    %cst_41 = arith.constant dense<0xFF800000> : vector<32xf32>
    %125 = vector.multi_reduction <maximumf>, %124, %cst_41 [0] : vector<128x32xf32> to vector<32xf32>
    %126 = vector.shape_cast %125 : vector<32xf32> to vector<1x32xf32>
    %127 = vector.extract_strided_slice %69 {offsets = [0, 5], sizes = [128, 1], strides = [1, 1]} : vector<128x16xf32> to vector<128x1xf32>
    %cst_42 = arith.constant 1.000000e+00 : f32
    %128 = vector.broadcast %cst_42 : f32 to vector<128x1xf32>
    %129 = arith.subf %127, %128 : vector<128x1xf32>
    %cst_43 = arith.constant 4.000000e+00 : f32
    %130 = vector.broadcast %cst_43 : f32 to vector<128x1xf32>
    %131 = arith.mulf %129, %130 : vector<128x1xf32>
    %132 = vector.broadcast %131 : vector<128x1xf32> to vector<128x32xf32>
    %133 = arith.addf %64, %132 : vector<128x32xf32>
    %cst_44 = arith.constant dense<0xFF800000> : vector<32xf32>
    %134 = vector.multi_reduction <maximumf>, %133, %cst_44 [0] : vector<128x32xf32> to vector<32xf32>
    %135 = vector.shape_cast %134 : vector<32xf32> to vector<1x32xf32>
    %136 = vector.extract_strided_slice %69 {offsets = [0, 6], sizes = [128, 1], strides = [1, 1]} : vector<128x16xf32> to vector<128x1xf32>
    %cst_45 = arith.constant 1.000000e+00 : f32
    %137 = vector.broadcast %cst_45 : f32 to vector<128x1xf32>
    %138 = arith.subf %136, %137 : vector<128x1xf32>
    %cst_46 = arith.constant 4.000000e+00 : f32
    %139 = vector.broadcast %cst_46 : f32 to vector<128x1xf32>
    %140 = arith.mulf %138, %139 : vector<128x1xf32>
    %141 = vector.broadcast %140 : vector<128x1xf32> to vector<128x32xf32>
    %142 = arith.addf %64, %141 : vector<128x32xf32>
    %cst_47 = arith.constant dense<0xFF800000> : vector<32xf32>
    %143 = vector.multi_reduction <maximumf>, %142, %cst_47 [0] : vector<128x32xf32> to vector<32xf32>
    %144 = vector.shape_cast %143 : vector<32xf32> to vector<1x32xf32>
    %145 = vector.extract_strided_slice %69 {offsets = [0, 7], sizes = [128, 1], strides = [1, 1]} : vector<128x16xf32> to vector<128x1xf32>
    %cst_48 = arith.constant 1.000000e+00 : f32
    %146 = vector.broadcast %cst_48 : f32 to vector<128x1xf32>
    %147 = arith.subf %145, %146 : vector<128x1xf32>
    %cst_49 = arith.constant 4.000000e+00 : f32
    %148 = vector.broadcast %cst_49 : f32 to vector<128x1xf32>
    %149 = arith.mulf %147, %148 : vector<128x1xf32>
    %150 = vector.broadcast %149 : vector<128x1xf32> to vector<128x32xf32>
    %151 = arith.addf %64, %150 : vector<128x32xf32>
    %cst_50 = arith.constant dense<0xFF800000> : vector<32xf32>
    %152 = vector.multi_reduction <maximumf>, %151, %cst_50 [0] : vector<128x32xf32> to vector<32xf32>
    %153 = vector.shape_cast %152 : vector<32xf32> to vector<1x32xf32>
    %154 = vector.extract_strided_slice %69 {offsets = [0, 8], sizes = [128, 1], strides = [1, 1]} : vector<128x16xf32> to vector<128x1xf32>
    %cst_51 = arith.constant 1.000000e+00 : f32
    %155 = vector.broadcast %cst_51 : f32 to vector<128x1xf32>
    %156 = arith.subf %154, %155 : vector<128x1xf32>
    %cst_52 = arith.constant 4.000000e+00 : f32
    %157 = vector.broadcast %cst_52 : f32 to vector<128x1xf32>
    %158 = arith.mulf %156, %157 : vector<128x1xf32>
    %159 = vector.broadcast %158 : vector<128x1xf32> to vector<128x32xf32>
    %160 = arith.addf %64, %159 : vector<128x32xf32>
    %cst_53 = arith.constant dense<0xFF800000> : vector<32xf32>
    %161 = vector.multi_reduction <maximumf>, %160, %cst_53 [0] : vector<128x32xf32> to vector<32xf32>
    %162 = vector.shape_cast %161 : vector<32xf32> to vector<1x32xf32>
    %163 = vector.extract_strided_slice %69 {offsets = [0, 9], sizes = [128, 1], strides = [1, 1]} : vector<128x16xf32> to vector<128x1xf32>
    %cst_54 = arith.constant 1.000000e+00 : f32
    %164 = vector.broadcast %cst_54 : f32 to vector<128x1xf32>
    %165 = arith.subf %163, %164 : vector<128x1xf32>
    %cst_55 = arith.constant 4.000000e+00 : f32
    %166 = vector.broadcast %cst_55 : f32 to vector<128x1xf32>
    %167 = arith.mulf %165, %166 : vector<128x1xf32>
    %168 = vector.broadcast %167 : vector<128x1xf32> to vector<128x32xf32>
    %169 = arith.addf %64, %168 : vector<128x32xf32>
    %cst_56 = arith.constant dense<0xFF800000> : vector<32xf32>
    %170 = vector.multi_reduction <maximumf>, %169, %cst_56 [0] : vector<128x32xf32> to vector<32xf32>
    %171 = vector.shape_cast %170 : vector<32xf32> to vector<1x32xf32>
    %172 = vector.extract_strided_slice %69 {offsets = [0, 10], sizes = [128, 1], strides = [1, 1]} : vector<128x16xf32> to vector<128x1xf32>
    %cst_57 = arith.constant 1.000000e+00 : f32
    %173 = vector.broadcast %cst_57 : f32 to vector<128x1xf32>
    %174 = arith.subf %172, %173 : vector<128x1xf32>
    %cst_58 = arith.constant 4.000000e+00 : f32
    %175 = vector.broadcast %cst_58 : f32 to vector<128x1xf32>
    %176 = arith.mulf %174, %175 : vector<128x1xf32>
    %177 = vector.broadcast %176 : vector<128x1xf32> to vector<128x32xf32>
    %178 = arith.addf %64, %177 : vector<128x32xf32>
    %cst_59 = arith.constant dense<0xFF800000> : vector<32xf32>
    %179 = vector.multi_reduction <maximumf>, %178, %cst_59 [0] : vector<128x32xf32> to vector<32xf32>
    %180 = vector.shape_cast %179 : vector<32xf32> to vector<1x32xf32>
    %181 = vector.extract_strided_slice %69 {offsets = [0, 11], sizes = [128, 1], strides = [1, 1]} : vector<128x16xf32> to vector<128x1xf32>
    %cst_60 = arith.constant 1.000000e+00 : f32
    %182 = vector.broadcast %cst_60 : f32 to vector<128x1xf32>
    %183 = arith.subf %181, %182 : vector<128x1xf32>
    %cst_61 = arith.constant 4.000000e+00 : f32
    %184 = vector.broadcast %cst_61 : f32 to vector<128x1xf32>
    %185 = arith.mulf %183, %184 : vector<128x1xf32>
    %186 = vector.broadcast %185 : vector<128x1xf32> to vector<128x32xf32>
    %187 = arith.addf %64, %186 : vector<128x32xf32>
    %cst_62 = arith.constant dense<0xFF800000> : vector<32xf32>
    %188 = vector.multi_reduction <maximumf>, %187, %cst_62 [0] : vector<128x32xf32> to vector<32xf32>
    %189 = vector.shape_cast %188 : vector<32xf32> to vector<1x32xf32>
    %190 = vector.extract_strided_slice %69 {offsets = [0, 12], sizes = [128, 1], strides = [1, 1]} : vector<128x16xf32> to vector<128x1xf32>
    %cst_63 = arith.constant 1.000000e+00 : f32
    %191 = vector.broadcast %cst_63 : f32 to vector<128x1xf32>
    %192 = arith.subf %190, %191 : vector<128x1xf32>
    %cst_64 = arith.constant 4.000000e+00 : f32
    %193 = vector.broadcast %cst_64 : f32 to vector<128x1xf32>
    %194 = arith.mulf %192, %193 : vector<128x1xf32>
    %195 = vector.broadcast %194 : vector<128x1xf32> to vector<128x32xf32>
    %196 = arith.addf %64, %195 : vector<128x32xf32>
    %cst_65 = arith.constant dense<0xFF800000> : vector<32xf32>
    %197 = vector.multi_reduction <maximumf>, %196, %cst_65 [0] : vector<128x32xf32> to vector<32xf32>
    %198 = vector.shape_cast %197 : vector<32xf32> to vector<1x32xf32>
    %199 = vector.extract_strided_slice %69 {offsets = [0, 13], sizes = [128, 1], strides = [1, 1]} : vector<128x16xf32> to vector<128x1xf32>
    %cst_66 = arith.constant 1.000000e+00 : f32
    %200 = vector.broadcast %cst_66 : f32 to vector<128x1xf32>
    %201 = arith.subf %199, %200 : vector<128x1xf32>
    %cst_67 = arith.constant 4.000000e+00 : f32
    %202 = vector.broadcast %cst_67 : f32 to vector<128x1xf32>
    %203 = arith.mulf %201, %202 : vector<128x1xf32>
    %204 = vector.broadcast %203 : vector<128x1xf32> to vector<128x32xf32>
    %205 = arith.addf %64, %204 : vector<128x32xf32>
    %cst_68 = arith.constant dense<0xFF800000> : vector<32xf32>
    %206 = vector.multi_reduction <maximumf>, %205, %cst_68 [0] : vector<128x32xf32> to vector<32xf32>
    %207 = vector.shape_cast %206 : vector<32xf32> to vector<1x32xf32>
    %208 = vector.extract_strided_slice %69 {offsets = [0, 14], sizes = [128, 1], strides = [1, 1]} : vector<128x16xf32> to vector<128x1xf32>
    %cst_69 = arith.constant 1.000000e+00 : f32
    %209 = vector.broadcast %cst_69 : f32 to vector<128x1xf32>
    %210 = arith.subf %208, %209 : vector<128x1xf32>
    %cst_70 = arith.constant 4.000000e+00 : f32
    %211 = vector.broadcast %cst_70 : f32 to vector<128x1xf32>
    %212 = arith.mulf %210, %211 : vector<128x1xf32>
    %213 = vector.broadcast %212 : vector<128x1xf32> to vector<128x32xf32>
    %214 = arith.addf %64, %213 : vector<128x32xf32>
    %cst_71 = arith.constant dense<0xFF800000> : vector<32xf32>
    %215 = vector.multi_reduction <maximumf>, %214, %cst_71 [0] : vector<128x32xf32> to vector<32xf32>
    %216 = vector.shape_cast %215 : vector<32xf32> to vector<1x32xf32>
    %217 = vector.extract_strided_slice %69 {offsets = [0, 15], sizes = [128, 1], strides = [1, 1]} : vector<128x16xf32> to vector<128x1xf32>
    %cst_72 = arith.constant 1.000000e+00 : f32
    %218 = vector.broadcast %cst_72 : f32 to vector<128x1xf32>
    %219 = arith.subf %217, %218 : vector<128x1xf32>
    %cst_73 = arith.constant 4.000000e+00 : f32
    %220 = vector.broadcast %cst_73 : f32 to vector<128x1xf32>
    %221 = arith.mulf %219, %220 : vector<128x1xf32>
    %222 = vector.broadcast %221 : vector<128x1xf32> to vector<128x32xf32>
    %223 = arith.addf %64, %222 : vector<128x32xf32>
    %cst_74 = arith.constant dense<0xFF800000> : vector<32xf32>
    %224 = vector.multi_reduction <maximumf>, %223, %cst_74 [0] : vector<128x32xf32> to vector<32xf32>
    %225 = vector.shape_cast %224 : vector<32xf32> to vector<1x32xf32>
    %226 = tpu.concatenate %90, %99, %108, %117, %126, %135, %144, %153, %162, %171, %180, %189, %198, %207, %216, %225 in 0 : vector<1x32xf32>, vector<1x32xf32>, vector<1x32xf32>, vector<1x32xf32>, vector<1x32xf32>, vector<1x32xf32>, vector<1x32xf32>, vector<1x32xf32>, vector<1x32xf32>, vector<1x32xf32>, vector<1x32xf32>, vector<1x32xf32>, vector<1x32xf32>, vector<1x32xf32>, vector<1x32xf32>, vector<1x32xf32> -> vector<16x32xf32>
    %cst_75 = arith.constant dense<0.000000e+00> : vector<16x128xf32>
    %227 = tpu.matmul %226, %17, %cst_75 {dimension_numbers = #tpu.dot_dimension_numbers<[1], [0], [0], [1], [0, 0, 1, 1], [], []>} : vector<16x32xf32>, vector<32x128xf32>, vector<16x128xf32> -> vector<16x128xf32>
    %cst_76 = arith.constant dense<0.000000e+00> : vector<16x128xf32>
    %228 = tpu.matmul %81, %18, %cst_76 {dimension_numbers = #tpu.dot_dimension_numbers<[1], [0], [0], [1], [0, 0, 1, 1], [], []>} : vector<16x32xf32>, vector<32x128xf32>, vector<16x128xf32> -> vector<16x128xf32>
    %229 = arith.addf %227, %228 : vector<16x128xf32>
    %230 = vector.broadcast %14 : vector<1x128xf32> to vector<16x128xf32>
    %231 = arith.addf %229, %230 : vector<16x128xf32>
    %232 = math.tanh %231 : vector<16x128xf32>
    %c0_77 = arith.constant 0 : index
    %c0_78 = arith.constant 0 : index
    %233 = vector.load %arg3[%c0_77, %c0_78] : memref<16x128xf32, #tpu.memory_space<vmem>>, vector<16x128xf32>
    tpu.vector_store %arg3[%c0_77, %c0_78], %232 {strides = array<i32>} : memref<16x128xf32, #tpu.memory_space<vmem>>, vector<16x128xf32>,
    return
  }
  func.func @transform_0(%arg0: i32) -> (i32, i32, i32) {
    %c0_i32 = arith.constant 0 : i32
    %c0_i32_0 = arith.constant 0 : i32
    %c0_i32_1 = arith.constant 0 : i32
    return %arg0, %c0_i32, %c0_i32_0 : i32, i32, i32
  }
  func.func @transform_1(%arg0: i32) -> (i32, i32) {
    %c0_i32 = arith.constant 0 : i32
    %c0_i32_0 = arith.constant 0 : i32
    %c0_i32_1 = arith.constant 0 : i32
    return %c0_i32, %c0_i32_0 : i32, i32
  }
  func.func @transform_2(%arg0: i32) -> (i32, i32) {
    %c0_i32 = arith.constant 0 : i32
    %c0_i32_0 = arith.constant 0 : i32
    return %arg0, %c0_i32 : i32, i32
  }
}

</mosaic_0001>

<llo_original>
// kernel: gcn_magnet_forward_batched.1
$region0: #{gcn_magnet_forward_batched.1}
  #allocation0 [shape = 'u32[]', space=smem, size = 0x4, offset = 0x4, fixed_abs, tag = 'smem constant byte address 0x4 - core index']
  #allocation1 [shape = 'u32[144,128]{1,0:T(1,128)}', space=vmem, size = 0x12000, scoped, tag = 'internal scratch']
  %s0 = inlined_call_operand.vmem [shape: f32[2,136,256], index: 0, kind: input, shape index: {}]
  %s1 = inlined_call_operand.vmem [shape: f32[136,128], index: 1, kind: input, shape index: {}]
  %s2 = inlined_call_operand.hbm [shape: f32[32,128], index: 2, kind: output, shape index: {}]
  %s3 = sld [smem:[#allocation0]]
  $region41: #{gcn_magnet_forward_batched.1} parent=0
    _
  %s5 = ssub.s32 1, %s3
  %s6 = scalar_select 0, %s5, %s3
  $region1: #{gcn_magnet_forward_batched.1} parent=0
    #allocation2 [shape = 'u8[16384]{0}', space=vmem, size = 0x4000, scoped, tag = 'output window, operand 0']
    #allocation3 [shape = 's32[2]{0}', space=sflag, size = 0x8, scoped, tag = 'scoped memory for gcn_magnet_forward_batched.1']
    %7 = vsyncpa [#allocation3], 0
    %s8 = scalar_lea.sflag [#allocation3], 1
    %9 = vsyncpa %s8, 0
    loop: start=0, step=1, limit=4
    $region2: #{gcn_magnet_forward_batched.1} parent=1 // loop_pre_header
      _
    $region3: #{gcn_magnet_forward_batched.1} parent=1 // loop_header
      %s11 = sphi 0, %s15
      %p12 = scmp.ge.s32.totalorder %s11, 4
      %s21 = sphi 0, %s23
      %s24 = sphi 0, %s21
      %s25 = sphi 0, %s24
      %s41 = sphi 0, %s25
      %s45 = sphi 0, %s45
      %s47 = sphi 0, %s45
      %s48 = sphi 0, %s47
      %s62 = sphi 0, %s48
      %s68 = sphi 0, %s70
      %s71 = sphi 0, %s68
      %s72 = sphi 0, %s71
      %s88 = sphi 0, %s72
    $region4: #{gcn_magnet_forward_batched.1} parent=1 // loop_header_branch
      %14 = sbr.rel (%p12) target = $region8
    $region5: #{gcn_magnet_forward_batched.1} parent=1 // loop_body
      %s16 = ssub.s32 %s11, 1
      %s17 = ssub.s32 %s11, 2
      %s18 = sadd.s32 %s11, 1
      %s19 = ssub.s32 %s11, %s18
      %p20 = scmp.eq.s32.totalorder %s19, 0
      %s22 = sadd.s32 %s21, 1
      %s23 = scalar_select %p20, %s21, %s22
      %p26 = pneg %p20
      %p27 = scmp.eq.s32.totalorder %s11, 1
      %p28 = por %p26, %p27
      %p29 = scmp.ne.s32.totalorder %s21, %s24
      %p30 = scmp.eq.s32.totalorder %s11, 0
      %p31 = por %p29, %p30
      %p32 = scmp.ne.s32.totalorder %s21, %s24
      %p33 = scmp.eq.s32.totalorder %s16, 1
      %p34 = por %p32, %p33
      %p35 = scmp.ne.s32.totalorder %s24, %s25
      %p36 = scmp.eq.s32.totalorder %s16, 0
      %p37 = por %p35, %p36
      %p38 = scmp.ne.s32.totalorder %s24, %s25
      %p39 = scmp.eq.s32.totalorder %s17, 1
      %p40 = por %p38, %p39
      %p42 = scmp.ne.s32.totalorder %s25, %s41
      %p43 = scmp.eq.s32.totalorder %s17, 0
      %p44 = por %p42, %p43
      %s46 = sadd.s32 %s45, 1
      %p49 = scmp.eq.s32.totalorder %s11, 1
      %p50 = scmp.ne.s32.totalorder %s45, %s47
      %p51 = scmp.eq.s32.totalorder %s11, 0
      %p52 = por %p50, %p51
      %p53 = scmp.ne.s32.totalorder %s45, %s47
      %p54 = scmp.eq.s32.totalorder %s16, 1
      %p55 = por %p53, %p54
      %p56 = scmp.ne.s32.totalorder %s47, %s48
      %p57 = scmp.eq.s32.totalorder %s16, 0
      %p58 = por %p56, %p57
      %p59 = scmp.ne.s32.totalorder %s47, %s48
      %p60 = scmp.eq.s32.totalorder %s17, 1
      %p61 = por %p59, %p60
      %p63 = scmp.ne.s32.totalorder %s48, %s62
      %p64 = scmp.eq.s32.totalorder %s17, 0
      %p65 = por %p63, %p64
      %s66 = ssub.s32 %s11, %s18
      %p67 = scmp.eq.s32.totalorder %s66, 0
      %s69 = sadd.s32 %s68, 1
      %s70 = scalar_select %p67, %s68, %s69
      %p73 = pneg %p67
      %p74 = scmp.eq.s32.totalorder %s11, 1
      %p75 = por %p73, %p74
      %p76 = scmp.ne.s32.totalorder %s68, %s71
      %p77 = scmp.eq.s32.totalorder %s11, 0
      %p78 = por %p76, %p77
      %p79 = scmp.ne.s32.totalorder %s68, %s71
      %p80 = scmp.eq.s32.totalorder %s16, 1
      %p81 = por %p79, %p80
      %p82 = scmp.ne.s32.totalorder %s71, %s72
      %p83 = scmp.eq.s32.totalorder %s16, 0
      %p84 = por %p82, %p83
      %p85 = scmp.ne.s32.totalorder %s71, %s72
      %p86 = scmp.eq.s32.totalorder %s17, 1
      %p87 = por %p85, %p86
      %p89 = scmp.ne.s32.totalorder %s72, %s88
      %p90 = scmp.eq.s32.totalorder %s17, 0
      %p91 = por %p89, %p90
      %p92 = scmp.le.s32.totalorder 1, %s11
      %p93 = scmp.lt.s32.totalorder %s11, 3
      %p94 = pnand %p92, %p93
      %p95 = pneg %p94
      // Predicated region
      $region9: #{gcn_magnet_forward_batched.1} parent=5 // pred_check
        _
      $region10: #{gcn_magnet_forward_batched.1} parent=5 // pred_check_branch
        %97 = sbr.rel (%p94) target = $region12
      $region11: #{gcn_magnet_forward_batched.1} parent=5 // pred_region
        %s98 = ssub.s32 %s11, 1
        // Predicated region
        $region13: #{gcn_magnet_forward_batched.1} parent=11 // pred_check
          %p99 = pneg %p58
        $region14: #{gcn_magnet_forward_batched.1} parent=11 // pred_check_branch
          %101 = sbr.rel (%p99) target = $region16
        $region15: #{gcn_magnet_forward_batched.1} parent=11 // pred_region
          _
        $region16: #{gcn_magnet_forward_batched.1} parent=11 // pred_fallthru
          _
      $region12: #{gcn_magnet_forward_batched.1} parent=5 // pred_fallthru
        _
      %p102 = scmp.lt.s32.totalorder %s11, 2
      // Predicated region
      $region17: #{gcn_magnet_forward_batched.1} parent=5 // pred_check
        %p103 = pneg %p102
      $region18: #{gcn_magnet_forward_batched.1} parent=5 // pred_check_branch
        %105 = sbr.rel (%p103) target = $region20
      $region19: #{gcn_magnet_forward_batched.1} parent=5 // pred_region
        // Predicated region
        $region21: #{gcn_magnet_forward_batched.1} parent=19 // pred_check
          %p106 = pneg %p31
        $region22: #{gcn_magnet_forward_batched.1} parent=19 // pred_check_branch
          %108 = sbr.rel (%p106) target = $region24
        $region23: #{gcn_magnet_forward_batched.1} parent=19 // pred_region
          %p109 = scmp.lt.s32.totalorder %s11, 1
          %s110 = scalar_select %p109, %s11, 1
          %s111 = smul.addr %s110, 34
          %s112 = smul.addr %s111, 8
          %s113 = scalar_lea.vmem %s0, %s112
        $region24: #{gcn_magnet_forward_batched.1} parent=19 // pred_fallthru
          _
      $region20: #{gcn_magnet_forward_batched.1} parent=5 // pred_fallthru
        _
      %p114 = scmp.le.s32.totalorder 1, %s11
      %p115 = scmp.lt.s32.totalorder %s11, 3
      %p116 = pnand %p114, %p115
      %p117 = pneg %p116
      // Predicated region
      $region25: #{gcn_magnet_forward_batched.1} parent=5 // pred_check
        _
      $region26: #{gcn_magnet_forward_batched.1} parent=5 // pred_check_branch
        %119 = sbr.rel (%p116) target = $region28
      $region27: #{gcn_magnet_forward_batched.1} parent=5 // pred_region
        %s120 = ssub.s32 %s11, 1
        %p121 = scmp.lt.s32.totalorder %s16, 1
        %s122 = scalar_select %p121, %s16, 1
        %s123 = smul.addr %s122, 34
        %s124 = smul.addr %s123, 8
        %s125 = scalar_lea.vmem %s0, %s124
        %p126 = pneg %p37
        %p127 = pneg %p34
        %p128 = pneg %p58
        %p129 = pneg %p55
        %p130 = pneg %p84
        %p131 = pneg %p81
        %s132 = sand.u32 %s71, 1
        %s133 = scalar_lea.sflag [#allocation3], %s132
        %s134 = sand.u32 %s71, 1
        %s135 = smul.addr %s134, 16
        %s136 = scalar_lea.vmem [#allocation2], %s135
        %p137 = scmp.lt.s32.totalorder %s16, 1
        %s138 = scalar_select %p137, %s16, 1
        %s139 = smul.addr %s138, 34
        %s140 = smul.addr %s139, 8
        %s141 = scalar_lea.vmem %s0, %s140
        %s142 = smul.u32 2, %s16
        %v143 = vld [vmem:[%s141] sm:$0xff]
        %v144 = vld [vmem:[%s141 + $0x10] sm:$0xff]
        %v145 = vld [vmem:[%s141 + $0x20] sm:$0xff]
        %v146 = vld [vmem:[%s141 + $0x30] sm:$0xff]
        %v147 = vld [vmem:[%s141 + $0x40] sm:$0xff]
        %v148 = vld [vmem:[%s141 + $0x50] sm:$0xff]
        %v149 = vld [vmem:[%s141 + $0x60] sm:$0xff]
        %v150 = vld [vmem:[%s141 + $0x70] sm:$0xff]
        %v151 = vld [vmem:[%s141 + $0x80] sm:$0xff]
        %v152 = vld [vmem:[%s141 + $0x90] sm:$0xff]
        %v153 = vld [vmem:[%s141 + $0xa0] sm:$0xff]
        %v154 = vld [vmem:[%s141 + $0xb0] sm:$0xff]
        %v155 = vld [vmem:[%s141 + $0xc0] sm:$0xff]
        %v156 = vld [vmem:[%s141 + $0xd0] sm:$0xff]
        %v157 = vld [vmem:[%s141 + $0xe0] sm:$0xff]
        %v158 = vld [vmem:[%s141 + $0xf0] sm:$0xff]
        %v159 = vld [vmem:[%s141 + $0x8] sm:$0xff]
        %v160 = vld [vmem:[%s141 + $0x18] sm:$0xff]
        %v161 = vld [vmem:[%s141 + $0x28] sm:$0xff]
        %v162 = vld [vmem:[%s141 + $0x38] sm:$0xff]
        %v163 = vld [vmem:[%s141 + $0x48] sm:$0xff]
        %v164 = vld [vmem:[%s141 + $0x58] sm:$0xff]
        %v165 = vld [vmem:[%s141 + $0x68] sm:$0xff]
        %v166 = vld [vmem:[%s141 + $0x78] sm:$0xff]
        %v167 = vld [vmem:[%s141 + $0x88] sm:$0xff]
        %v168 = vld [vmem:[%s141 + $0x98] sm:$0xff]
        %v169 = vld [vmem:[%s141 + $0xa8] sm:$0xff]
        %v170 = vld [vmem:[%s141 + $0xb8] sm:$0xff]
        %v171 = vld [vmem:[%s141 + $0xc8] sm:$0xff]
        %v172 = vld [vmem:[%s141 + $0xd8] sm:$0xff]
        %v173 = vld [vmem:[%s141 + $0xe8] sm:$0xff]
        %v174 = vld [vmem:[%s141 + $0xf8] sm:$0xff]
        %v175 = vcvt.f32.s32.to.zero.pseudo %v159
        %v176 = vcvt.f32.s32.to.zero.pseudo %v160
        %v177 = vcvt.f32.s32.to.zero.pseudo %v161
        %v178 = vcvt.f32.s32.to.zero.pseudo %v162
        %v179 = vcvt.f32.s32.to.zero.pseudo %v163
        %v180 = vcvt.f32.s32.to.zero.pseudo %v164
        %v181 = vcvt.f32.s32.to.zero.pseudo %v165
        %v182 = vcvt.f32.s32.to.zero.pseudo %v166
        %v183 = vcvt.f32.s32.to.zero.pseudo %v167
        %v184 = vcvt.f32.s32.to.zero.pseudo %v168
        %v185 = vcvt.f32.s32.to.zero.pseudo %v169
        %v186 = vcvt.f32.s32.to.zero.pseudo %v170
        %v187 = vcvt.f32.s32.to.zero.pseudo %v171
        %v188 = vcvt.f32.s32.to.zero.pseudo %v172
        %v189 = vcvt.f32.s32.to.zero.pseudo %v173
        %v190 = vcvt.f32.s32.to.zero.pseudo %v174
        %v191 = vld [vmem:[%s141 + $0x100] ss:$0 sm:$0xff]
        %v192 = vcvt.f32.s32.to.zero.pseudo %v191
        %v193 = vld [vmem:[%s1] sm:$0x3]
        %v194 = vld [vmem:[%s1 + $0x2] sm:$0x1]
        %v195 = vld [vmem:[%s1 + $0x3] sm:$0x1]
        %v196 = vld [vmem:[%s1 + $0x4] sm:$0x1]
        %v197 = vld [vmem:[%s1 + $0x5] sm:$0x1]
        %v198 = vld [vmem:[%s1 + $0x8] sm:$0xff]
        %v199 = vld [vmem:[%s1 + $0x10] sm:$0xff]
        %v200 = vld [vmem:[%s1 + $0x18] sm:$0xff]
        %v201 = vld [vmem:[%s1 + $0x20] sm:$0xff]
        %v202 = vld [vmem:[%s1 + $0x28] sm:$0xff]
        %v203 = vld [vmem:[%s1 + $0x30] sm:$0xff]
        %v204 = vld [vmem:[%s1 + $0x38] sm:$0xff]
        %v205 = vld [vmem:[%s1 + $0x40] sm:$0xff]
        %v206 = vld [vmem:[%s1 + $0x48] sm:$0xff]
        %v207 = vld [vmem:[%s1 + $0x50] sm:$0xff]
        %v208 = vld [vmem:[%s1 + $0x58] sm:$0xff]
        %v209 = vld [vmem:[%s1 + $0x60] sm:$0xff]
        %v210 = vld [vmem:[%s1 + $0x68] sm:$0xff]
        %v211 = vld [vmem:[%s1 + $0x70] sm:$0xff]
        %v212 = vld [vmem:[%s1 + $0x78] sm:$0xff]
        %v213 = vld [vmem:[%s1 + $0x80] sm:$0xff]
        %v214 = vlaneseq
        %v215 = vshrl.u32 %v214, 7
        %v216 = vadd.s32 %v215, 8
        %v217 = vadd.s32 %v215, 16
        %v218 = vadd.s32 %v215, 24
        %v219 = vadd.s32 %v215, 32
        %v220 = vadd.s32 %v215, 40
        %v221 = vadd.s32 %v215, 48
        %v222 = vadd.s32 %v215, 56
        %v223 = vadd.s32 %v215, 64
        %v224 = vadd.s32 %v215, 72
        %v225 = vadd.s32 %v215, 80
        %v226 = vadd.s32 %v215, 88
        %v227 = vadd.s32 %v215, 96
        %v228 = vadd.s32 %v215, 104
        %v229 = vadd.s32 %v215, 112
        %v230 = vadd.s32 %v215, 120
        %v231 = vlaneseq
        %v232 = vand.u32 %v231, 127
        %vm233 = vcmp.eq.s32.totalorder %v215, %v232
        %vm234 = vcmp.eq.s32.totalorder %v216, %v232
        %vm235 = vcmp.eq.s32.totalorder %v217, %v232
        %vm236 = vcmp.eq.s32.totalorder %v218, %v232
        %vm237 = vcmp.eq.s32.totalorder %v219, %v232
        %vm238 = vcmp.eq.s32.totalorder %v220, %v232
        %vm239 = vcmp.eq.s32.totalorder %v221, %v232
        %vm240 = vcmp.eq.s32.totalorder %v222, %v232
        %vm241 = vcmp.eq.s32.totalorder %v223, %v232
        %vm242 = vcmp.eq.s32.totalorder %v224, %v232
        %vm243 = vcmp.eq.s32.totalorder %v225, %v232
        %vm244 = vcmp.eq.s32.totalorder %v226, %v232
        %vm245 = vcmp.eq.s32.totalorder %v227, %v232
        %vm246 = vcmp.eq.s32.totalorder %v228, %v232
        %vm247 = vcmp.eq.s32.totalorder %v229, %v232
        %vm248 = vcmp.eq.s32.totalorder %v230, %v232
        %v249 = vsel %vm233, 1, 0
        %v250 = vsel %vm234, 1, 0
        %v251 = vsel %vm235, 1, 0
        %v252 = vsel %vm236, 1, 0
        %v253 = vsel %vm237, 1, 0
        %v254 = vsel %vm238, 1, 0
        %v255 = vsel %vm239, 1, 0
        %v256 = vsel %vm240, 1, 0
        %v257 = vsel %vm241, 1, 0
        %v258 = vsel %vm242, 1, 0
        %v259 = vsel %vm243, 1, 0
        %v260 = vsel %vm244, 1, 0
        %v261 = vsel %vm245, 1, 0
        %v262 = vsel %vm246, 1, 0
        %v263 = vsel %vm247, 1, 0
        %v264 = vsel %vm248, 1, 0
        %v265 = vcvt.s32.f32 %v249
        %v266 = vcvt.s32.f32 %v250
        %v267 = vcvt.s32.f32 %v251
        %v268 = vcvt.s32.f32 %v252
        %v269 = vcvt.s32.f32 %v253
        %v270 = vcvt.s32.f32 %v254
        %v271 = vcvt.s32.f32 %v255
        %v272 = vcvt.s32.f32 %v256
        %v273 = vcvt.s32.f32 %v257
        %v274 = vcvt.s32.f32 %v258
        %v275 = vcvt.s32.f32 %v259
        %v276 = vcvt.s32.f32 %v260
        %v277 = vcvt.s32.f32 %v261
        %v278 = vcvt.s32.f32 %v262
        %v279 = vcvt.s32.f32 %v263
        %v280 = vcvt.s32.f32 %v264
        %v281 = vadd.f32 %v143, %v265
        %v282 = vadd.f32 %v144, %v266
        %v283 = vadd.f32 %v145, %v267
        %v284 = vadd.f32 %v146, %v268
        %v285 = vadd.f32 %v147, %v269
        %v286 = vadd.f32 %v148, %v270
        %v287 = vadd.f32 %v149, %v271
        %v288 = vadd.f32 %v150, %v272
        %v289 = vadd.f32 %v151, %v273
        %v290 = vadd.f32 %v152, %v274
        %v291 = vadd.f32 %v153, %v275
        %v292 = vadd.f32 %v154, %v276
        %v293 = vadd.f32 %v155, %v277
        %v294 = vadd.f32 %v156, %v278
        %v295 = vadd.f32 %v157, %v279
        %v296 = vadd.f32 %v158, %v280
        %297 = vadd.xlane.f32.xlu0 %v281
        %v298 = vpop.xlane.xlu0 %297
        %299 = vadd.xlane.f32.xlu0 %v282
        %v300 = vpop.xlane.xlu0 %299
        %301 = vadd.xlane.f32.xlu0 %v283
        %v302 = vpop.xlane.xlu0 %301
        %303 = vadd.xlane.f32.xlu0 %v284
        %v304 = vpop.xlane.xlu0 %303
        %305 = vadd.xlane.f32.xlu0 %v285
        %v306 = vpop.xlane.xlu0 %305
        %307 = vadd.xlane.f32.xlu0 %v286
        %v308 = vpop.xlane.xlu0 %307
        %309 = vadd.xlane.f32.xlu0 %v287
        %v310 = vpop.xlane.xlu0 %309
        %311 = vadd.xlane.f32.xlu0 %v288
        %v312 = vpop.xlane.xlu0 %311
        %313 = vadd.xlane.f32.xlu0 %v289
        %v314 = vpop.xlane.xlu0 %313
        %315 = vadd.xlane.f32.xlu0 %v290
        %v316 = vpop.xlane.xlu0 %315
        %317 = vadd.xlane.f32.xlu0 %v291
        %v318 = vpop.xlane.xlu0 %317
        %319 = vadd.xlane.f32.xlu0 %v292
        %v320 = vpop.xlane.xlu0 %319
        %321 = vadd.xlane.f32.xlu0 %v293
        %v322 = vpop.xlane.xlu0 %321
        %323 = vadd.xlane.f32.xlu0 %v294
        %v324 = vpop.xlane.xlu0 %323
        %325 = vadd.xlane.f32.xlu0 %v295
        %v326 = vpop.xlane.xlu0 %325
        %327 = vadd.xlane.f32.xlu0 %v296
        %v328 = vpop.xlane.xlu0 %327
        %v329 = vrsqrt.pop %v298
        %v330 = vrsqrt.pop %v300
        %v331 = vrsqrt.pop %v302
        %v332 = vrsqrt.pop %v304
        %v333 = vrsqrt.pop %v306
        %v334 = vrsqrt.pop %v308
        %v335 = vrsqrt.pop %v310
        %v336 = vrsqrt.pop %v312
        %v337 = vrsqrt.pop %v314
        %v338 = vrsqrt.pop %v316
        %v339 = vrsqrt.pop %v318
        %v340 = vrsqrt.pop %v320
        %v341 = vrsqrt.pop %v322
        %v342 = vrsqrt.pop %v324
        %v343 = vrsqrt.pop %v326
        %v344 = vrsqrt.pop %v328
        %346 = vset.pattern.permute.xlu0 0
        %347 = vperm.xlu0 %346, %v159
        %v348 = vpop.permute.xlu0 %347
        %351 = vset.pattern.permute.xlu0 0
        %352 = vperm.xlu0 %351, %v160
        %v353 = vpop.permute.xlu0 %352
        %356 = vset.pattern.permute.xlu0 0
        %357 = vperm.xlu0 %356, %v161
        %v358 = vpop.permute.xlu0 %357
        %361 = vset.pattern.permute.xlu0 0
        %362 = vperm.xlu0 %361, %v162
        %v363 = vpop.permute.xlu0 %362
        %366 = vset.pattern.permute.xlu0 0
        %367 = vperm.xlu0 %366, %v163
        %v368 = vpop.permute.xlu0 %367
        %371 = vset.pattern.permute.xlu0 0
        %372 = vperm.xlu0 %371, %v164
        %v373 = vpop.permute.xlu0 %372
        %376 = vset.pattern.permute.xlu0 0
        %377 = vperm.xlu0 %376, %v165
        %v378 = vpop.permute.xlu0 %377
        %381 = vset.pattern.permute.xlu0 0
        %382 = vperm.xlu0 %381, %v166
        %v383 = vpop.permute.xlu0 %382
        %386 = vset.pattern.permute.xlu0 0
        %387 = vperm.xlu0 %386, %v167
        %v388 = vpop.permute.xlu0 %387
        %391 = vset.pattern.permute.xlu0 0
        %392 = vperm.xlu0 %391, %v168
        %v393 = vpop.permute.xlu0 %392
        %396 = vset.pattern.permute.xlu0 0
        %397 = vperm.xlu0 %396, %v169
        %v398 = vpop.permute.xlu0 %397
        %401 = vset.pattern.permute.xlu0 0
        %402 = vperm.xlu0 %401, %v170
        %v403 = vpop.permute.xlu0 %402
        %406 = vset.pattern.permute.xlu0 0
        %407 = vperm.xlu0 %406, %v171
        %v408 = vpop.permute.xlu0 %407
        %411 = vset.pattern.permute.xlu0 0
        %412 = vperm.xlu0 %411, %v172
        %v413 = vpop.permute.xlu0 %412
        %416 = vset.pattern.permute.xlu0 0
        %417 = vperm.xlu0 %416, %v173
        %v418 = vpop.permute.xlu0 %417
        %421 = vset.pattern.permute.xlu0 0
        %422 = vperm.xlu0 %421, %v174
        %v423 = vpop.permute.xlu0 %422
        %v425 = vlaneseq
        %v426 = vshrl.u32 %v425, 7
        %v427 = vsub.s32 0, %v426
        %v428 = vrot.slane %v193, %v427
        %v429 = vmul.f32 %v348, %v428
        %v430 = vmul.f32 %v353, %v428
        %v431 = vmul.f32 %v358, %v428
        %v432 = vmul.f32 %v363, %v428
        %v433 = vmul.f32 %v368, %v428
        %v434 = vmul.f32 %v373, %v428
        %v435 = vmul.f32 %v378, %v428
        %v436 = vmul.f32 %v383, %v428
        %v437 = vmul.f32 %v388, %v428
        %v438 = vmul.f32 %v393, %v428
        %v439 = vmul.f32 %v398, %v428
        %v440 = vmul.f32 %v403, %v428
        %v441 = vmul.f32 %v408, %v428
        %v442 = vmul.f32 %v413, %v428
        %v443 = vmul.f32 %v418, %v428
        %v444 = vmul.f32 %v423, %v428
        %445 = vset.pattern.permute.xlu0 1
        %446 = vperm.xlu0 %445, %v159
        %v447 = vpop.permute.xlu0 %446
        %449 = vset.pattern.permute.xlu0 1
        %450 = vperm.xlu0 %449, %v160
        %v451 = vpop.permute.xlu0 %450
        %453 = vset.pattern.permute.xlu0 1
        %454 = vperm.xlu0 %453, %v161
        %v455 = vpop.permute.xlu0 %454
        %457 = vset.pattern.permute.xlu0 1
        %458 = vperm.xlu0 %457, %v162
        %v459 = vpop.permute.xlu0 %458
        %461 = vset.pattern.permute.xlu0 1
        %462 = vperm.xlu0 %461, %v163
        %v463 = vpop.permute.xlu0 %462
        %465 = vset.pattern.permute.xlu0 1
        %466 = vperm.xlu0 %465, %v164
        %v467 = vpop.permute.xlu0 %466
        %469 = vset.pattern.permute.xlu0 1
        %470 = vperm.xlu0 %469, %v165
        %v471 = vpop.permute.xlu0 %470
        %473 = vset.pattern.permute.xlu0 1
        %474 = vperm.xlu0 %473, %v166
        %v475 = vpop.permute.xlu0 %474
        %477 = vset.pattern.permute.xlu0 1
        %478 = vperm.xlu0 %477, %v167
        %v479 = vpop.permute.xlu0 %478
        %481 = vset.pattern.permute.xlu0 1
        %482 = vperm.xlu0 %481, %v168
        %v483 = vpop.permute.xlu0 %482
        %485 = vset.pattern.permute.xlu0 1
        %486 = vperm.xlu0 %485, %v169
        %v487 = vpop.permute.xlu0 %486
        %489 = vset.pattern.permute.xlu0 1
        %490 = vperm.xlu0 %489, %v170
        %v491 = vpop.permute.xlu0 %490
        %493 = vset.pattern.permute.xlu0 1
        %494 = vperm.xlu0 %493, %v171
        %v495 = vpop.permute.xlu0 %494
        %497 = vset.pattern.permute.xlu0 1
        %498 = vperm.xlu0 %497, %v172
        %v499 = vpop.permute.xlu0 %498
        %501 = vset.pattern.permute.xlu0 1
        %502 = vperm.xlu0 %501, %v173
        %v503 = vpop.permute.xlu0 %502
        %505 = vset.pattern.permute.xlu0 1
        %506 = vperm.xlu0 %505, %v174
        %v507 = vpop.permute.xlu0 %506
        %v509 = vlaneseq
        %v510 = vshrl.u32 %v509, 7
        %v511 = vsub.s32 1, %v510
        %v512 = vrot.slane %v193, %v511
        %v513 = vmul.f32 %v447, %v512
        %v514 = vmul.f32 %v451, %v512
        %v515 = vmul.f32 %v455, %v512
        %v516 = vmul.f32 %v459, %v512
        %v517 = vmul.f32 %v463, %v512
        %v518 = vmul.f32 %v467, %v512
        %v519 = vmul.f32 %v471, %v512
        %v520 = vmul.f32 %v475, %v512
        %v521 = vmul.f32 %v479, %v512
        %v522 = vmul.f32 %v483, %v512
        %v523 = vmul.f32 %v487, %v512
        %v524 = vmul.f32 %v491, %v512
        %v525 = vmul.f32 %v495, %v512
        %v526 = vmul.f32 %v499, %v512
        %v527 = vmul.f32 %v503, %v512
        %v528 = vmul.f32 %v507, %v512
        %v529 = vadd.f32 %v429, %v513
        %v530 = vadd.f32 %v430, %v514
        %v531 = vadd.f32 %v431, %v515
        %v532 = vadd.f32 %v432, %v516
        %v533 = vadd.f32 %v433, %v517
        %v534 = vadd.f32 %v434, %v518
        %v535 = vadd.f32 %v435, %v519
        %v536 = vadd.f32 %v436, %v520
        %v537 = vadd.f32 %v437, %v521
        %v538 = vadd.f32 %v438, %v522
        %v539 = vadd.f32 %v439, %v523
        %v540 = vadd.f32 %v440, %v524
        %v541 = vadd.f32 %v441, %v525
        %v542 = vadd.f32 %v442, %v526
        %v543 = vadd.f32 %v443, %v527
        %v544 = vadd.f32 %v444, %v528
        %v545 = vmul.f32 %v329, %v529
        %v546 = vmul.f32 %v330, %v530
        %v547 = vmul.f32 %v331, %v531
        %v548 = vmul.f32 %v332, %v532
        %v549 = vmul.f32 %v333, %v533
        %v550 = vmul.f32 %v334, %v534
        %v551 = vmul.f32 %v335, %v535
        %v552 = vmul.f32 %v336, %v536
        %v553 = vmul.f32 %v337, %v537
        %v554 = vmul.f32 %v338, %v538
        %v555 = vmul.f32 %v339, %v539
        %v556 = vmul.f32 %v340, %v540
        %v557 = vmul.f32 %v341, %v541
        %v558 = vmul.f32 %v342, %v542
        %v559 = vmul.f32 %v343, %v543
        %v560 = vmul.f32 %v344, %v544
        %561 = vmatprep.subr.mxu0 0.0
        %562 = vmatpush1.msra.mxu0 %v545
        %563 = vmatprep.subr.mxu0 0.0
        %564 = vmatpush1.msra.mxu0 %v546
        %565 = vmatprep.subr.mxu0 0.0
        %566 = vmatpush1.msra.mxu0 %v547
        %567 = vmatprep.subr.mxu0 0.0
        %568 = vmatpush1.msra.mxu0 %v548
        %569 = vmatprep.subr.mxu0 0.0
        %570 = vmatpush1.msra.mxu0 %v549
        %571 = vmatprep.subr.mxu0 0.0
        %572 = vmatpush1.msra.mxu0 %v550
        %573 = vmatprep.subr.mxu0 0.0
        %574 = vmatpush1.msra.mxu0 %v551
        %575 = vmatprep.subr.mxu0 0.0
        %576 = vmatpush1.msra.mxu0 %v552
        %577 = vmatprep.subr.mxu0 0.0
        %578 = vmatpush1.msra.mxu0 %v553
        %579 = vmatprep.subr.mxu0 0.0
        %580 = vmatpush1.msra.mxu0 %v554
        %581 = vmatprep.subr.mxu0 0.0
        %582 = vmatpush1.msra.mxu0 %v555
        %583 = vmatprep.subr.mxu0 0.0
        %584 = vmatpush1.msra.mxu0 %v556
        %585 = vmatprep.subr.mxu0 0.0
        %586 = vmatpush1.msra.mxu0 %v557
        %587 = vmatprep.subr.mxu0 0.0
        %588 = vmatpush1.msra.mxu0 %v558
        %589 = vmatprep.subr.mxu0 0.0
        %590 = vmatpush1.msra.mxu0 %v559
        %591 = vmatprep.subr.mxu0 0.0
        %592 = vmatpush1.msra.mxu0 %v560
        %593 = vmatprep.subr.mxu0 0.0
        %594 = vmatpush1.msra.mxu0 0.0
        %595 = vmatprep.subr.mxu0 0.0
        %596 = vmatpush1.msra.mxu0 0.0
        %597 = vmatprep.subr.mxu0 0.0
        %598 = vmatpush1.msra.mxu0 0.0
        %599 = vmatprep.subr.mxu0 0.0
        %600 = vmatpush1.msra.mxu0 0.0
        %601 = vmatprep.subr.mxu0 0.0
        %602 = vmatpush1.msra.mxu0 0.0
        %603 = vmatprep.subr.mxu0 0.0
        %604 = vmatpush1.msra.mxu0 0.0
        %605 = vmatprep.subr.mxu0 0.0
        %606 = vmatpush1.msra.mxu0 0.0
        %607 = vmatprep.subr.mxu0 0.0
        %608 = vmatpush1.msra.mxu0 0.0
        %609 = vmatprep.subr.mxu0 0.0
        %610 = vmatpush1.msra.mxu0 0.0
        %611 = vmatprep.subr.mxu0 0.0
        %612 = vmatpush1.msra.mxu0 0.0
        %613 = vmatprep.subr.mxu0 0.0
        %614 = vmatpush1.msra.mxu0 0.0
        %615 = vmatprep.subr.mxu0 0.0
        %616 = vmatpush1.msra.mxu0 0.0
        %617 = vmatprep.subr.mxu0 0.0
        %618 = vmatpush1.msra.mxu0 0.0
        %619 = vmatprep.subr.mxu0 0.0
        %620 = vmatpush1.msra.mxu0 0.0
        %621 = vmatprep.subr.mxu0 0.0
        %622 = vmatpush1.msra.mxu0 0.0
        %623 = vmatprep.subr.mxu0 0.0
        %624 = vmatpush1.msra.mxu0 0.0
        %625 = vmatprep.mubr.f32.mxu0 0.0
        %626 = vmatmul.mubr.f32.gmra.mrb[0].mxu0 %v281
        %v627 = vpop.f32.mrb[0].mxu0
        %v628 = vadd.f32 0.0, %v627
        %v629 = vpop.f32.mrb[0].mxu0
        %630 = vmatprep.mubr.f32.mxu0 0.0
        %631 = vmatmul.mubr.f32.gmra.mrb[0].mxu0 %v282
        %v632 = vpop.f32.mrb[0].mxu0
        %v633 = vadd.f32 0.0, %v632
        %v634 = vpop.f32.mrb[0].mxu0
        %635 = vmatprep.mubr.f32.mxu0 0.0
        %636 = vmatmul.mubr.f32.gmra.mrb[0].mxu0 %v283
        %v637 = vpop.f32.mrb[0].mxu0
        %v638 = vadd.f32 0.0, %v637
        %v639 = vpop.f32.mrb[0].mxu0
        %640 = vmatprep.mubr.f32.mxu0 0.0
        %641 = vmatmul.mubr.f32.gmra.mrb[0].mxu0 %v284
        %v642 = vpop.f32.mrb[0].mxu0
        %v643 = vadd.f32 0.0, %v642
        %v644 = vpop.f32.mrb[0].mxu0
        %645 = vmatprep.mubr.f32.mxu0 0.0
        %646 = vmatmul.mubr.f32.gmra.mrb[0].mxu0 %v285
        %v647 = vpop.f32.mrb[0].mxu0
        %v648 = vadd.f32 0.0, %v647
        %v649 = vpop.f32.mrb[0].mxu0
        %650 = vmatprep.mubr.f32.mxu0 0.0
        %651 = vmatmul.mubr.f32.gmra.mrb[0].mxu0 %v286
        %v652 = vpop.f32.mrb[0].mxu0
        %v653 = vadd.f32 0.0, %v652
        %v654 = vpop.f32.mrb[0].mxu0
        %655 = vmatprep.mubr.f32.mxu0 0.0
        %656 = vmatmul.mubr.f32.gmra.mrb[0].mxu0 %v287
        %v657 = vpop.f32.mrb[0].mxu0
        %v658 = vadd.f32 0.0, %v657
        %v659 = vpop.f32.mrb[0].mxu0
        %660 = vmatprep.mubr.f32.mxu0 0.0
        %661 = vmatmul.mubr.f32.gmra.mrb[0].mxu0 %v288
        %v662 = vpop.f32.mrb[0].mxu0
        %v663 = vadd.f32 0.0, %v662
        %v664 = vpop.f32.mrb[0].mxu0
        %665 = vmatprep.mubr.f32.mxu0 0.0
        %666 = vmatmul.mubr.f32.gmra.mrb[0].mxu0 %v289
        %v667 = vpop.f32.mrb[0].mxu0
        %v668 = vadd.f32 0.0, %v667
        %v669 = vpop.f32.mrb[0].mxu0
        %670 = vmatprep.mubr.f32.mxu0 0.0
        %671 = vmatmul.mubr.f32.gmra.mrb[0].mxu0 %v290
        %v672 = vpop.f32.mrb[0].mxu0
        %v673 = vadd.f32 0.0, %v672
        %v674 = vpop.f32.mrb[0].mxu0
        %675 = vmatprep.mubr.f32.mxu0 0.0
        %676 = vmatmul.mubr.f32.gmra.mrb[0].mxu0 %v291
        %v677 = vpop.f32.mrb[0].mxu0
        %v678 = vadd.f32 0.0, %v677
        %v679 = vpop.f32.mrb[0].mxu0
        %680 = vmatprep.mubr.f32.mxu0 0.0
        %681 = vmatmul.mubr.f32.gmra.mrb[0].mxu0 %v292
        %v682 = vpop.f32.mrb[0].mxu0
        %v683 = vadd.f32 0.0, %v682
        %v684 = vpop.f32.mrb[0].mxu0
        %685 = vmatprep.mubr.f32.mxu0 0.0
        %686 = vmatmul.mubr.f32.gmra.mrb[0].mxu0 %v293
        %v687 = vpop.f32.mrb[0].mxu0
        %v688 = vadd.f32 0.0, %v687
        %v689 = vpop.f32.mrb[0].mxu0
        %690 = vmatprep.mubr.f32.mxu0 0.0
        %691 = vmatmul.mubr.f32.gmra.mrb[0].mxu0 %v294
        %v692 = vpop.f32.mrb[0].mxu0
        %v693 = vadd.f32 0.0, %v692
        %v694 = vpop.f32.mrb[0].mxu0
        %695 = vmatprep.mubr.f32.mxu0 0.0
        %696 = vmatmul.mubr.f32.gmra.mrb[0].mxu0 %v295
        %v697 = vpop.f32.mrb[0].mxu0
        %v698 = vadd.f32 0.0, %v697
        %v699 = vpop.f32.mrb[0].mxu0
        %700 = vmatprep.mubr.f32.mxu0 0.0
        %701 = vmatmul.mubr.f32.gmra.mrb[0].mxu0 %v296
        %v702 = vpop.f32.mrb[0].mxu0
        %v703 = vadd.f32 0.0, %v702
        %v704 = vpop.f32.mrb[0].mxu0
        %705 = vdwg.mxu0
        %v706 = vmul.f32 %v329, %v628
        %v707 = vmul.f32 %v330, %v633
        %v708 = vmul.f32 %v331, %v638
        %v709 = vmul.f32 %v332, %v643
        %v710 = vmul.f32 %v333, %v648
        %v711 = vmul.f32 %v334, %v653
        %v712 = vmul.f32 %v335, %v658
        %v713 = vmul.f32 %v336, %v663
        %v714 = vmul.f32 %v337, %v668
        %v715 = vmul.f32 %v338, %v673
        %v716 = vmul.f32 %v339, %v678
        %v717 = vmul.f32 %v340, %v683
        %v718 = vmul.f32 %v341, %v688
        %v719 = vmul.f32 %v342, %v693
        %v720 = vmul.f32 %v343, %v698
        %v721 = vmul.f32 %v344, %v703
        %v722 = vlaneseq
        %v723 = vshrl.u32 %v722, 7
        %v724 = vsub.s32 0, %v723
        %v725 = vrot.slane %v194, %v724
        %v726 = vadd.f32 %v706, %v725
        %v727 = vadd.f32 %v707, %v725
        %v728 = vadd.f32 %v708, %v725
        %v729 = vadd.f32 %v709, %v725
        %v730 = vadd.f32 %v710, %v725
        %v731 = vadd.f32 %v711, %v725
        %v732 = vadd.f32 %v712, %v725
        %v733 = vadd.f32 %v713, %v725
        %v734 = vadd.f32 %v714, %v725
        %v735 = vadd.f32 %v715, %v725
        %v736 = vadd.f32 %v716, %v725
        %v737 = vadd.f32 %v717, %v725
        %v738 = vadd.f32 %v718, %v725
        %v739 = vadd.f32 %v719, %v725
        %v740 = vadd.f32 %v720, %v725
        %v741 = vadd.f32 %v721, %v725
        %v742 = vtanh.pop %v726
        %v743 = vtanh.pop %v727
        %v744 = vtanh.pop %v728
        %v745 = vtanh.pop %v729
        %v746 = vtanh.pop %v730
        %v747 = vtanh.pop %v731
        %v748 = vtanh.pop %v732
        %v749 = vtanh.pop %v733
        %v750 = vtanh.pop %v734
        %v751 = vtanh.pop %v735
        %v752 = vtanh.pop %v736
        %v753 = vtanh.pop %v737
        %v754 = vtanh.pop %v738
        %v755 = vtanh.pop %v739
        %v756 = vtanh.pop %v740
        %v757 = vtanh.pop %v741
        %vm758 = vcmask 261120
        %v760 = vsel %vm758, %v742, 0
        %v763 = vsel %vm758, %v743, 0
        %v766 = vsel %vm758, %v744, 0
        %v769 = vsel %vm758, %v745, 0
        %v772 = vsel %vm758, %v746, 0
        %v775 = vsel %vm758, %v747, 0
        %v778 = vsel %vm758, %v748, 0
        %v781 = vsel %vm758, %v749, 0
        %v784 = vsel %vm758, %v750, 0
        %v787 = vsel %vm758, %v751, 0
        %v790 = vsel %vm758, %v752, 0
        %v793 = vsel %vm758, %v753, 0
        %v796 = vsel %vm758, %v754, 0
        %v799 = vsel %vm758, %v755, 0
        %v802 = vsel %vm758, %v756, 0
        %v805 = vsel %vm758, %v757, 0
        %807 = vmatprep.subr.mxu0 0.0
        %808 = vmatpush1.msra.mxu0 %v198
        %809 = vmatprep.subr.mxu0 0.0
        %810 = vmatpush1.msra.mxu0 %v199
        %811 = vmatprep.subr.mxu0 0.0
        %812 = vmatpush1.msra.mxu0 %v200
        %813 = vmatprep.subr.mxu0 0.0
        %814 = vmatpush1.msra.mxu0 %v201
        %815 = vmatprep.subr.mxu0 0.0
        %816 = vmatpush1.msra.mxu0 0.0
        %817 = vmatprep.subr.mxu0 0.0
        %818 = vmatpush1.msra.mxu0 0.0
        %819 = vmatprep.subr.mxu0 0.0
        %820 = vmatpush1.msra.mxu0 0.0
        %821 = vmatprep.subr.mxu0 0.0
        %822 = vmatpush1.msra.mxu0 0.0
        %823 = vmatprep.subr.mxu0 0.0
        %824 = vmatpush1.msra.mxu0 0.0
        %825 = vmatprep.subr.mxu0 0.0
        %826 = vmatpush1.msra.mxu0 0.0
        %827 = vmatprep.subr.mxu0 0.0
        %828 = vmatpush1.msra.mxu0 0.0
        %829 = vmatprep.subr.mxu0 0.0
        %830 = vmatpush1.msra.mxu0 0.0
        %831 = vmatprep.subr.mxu0 0.0
        %832 = vmatpush1.msra.mxu0 0.0
        %833 = vmatprep.subr.mxu0 0.0
        %834 = vmatpush1.msra.mxu0 0.0
        %835 = vmatprep.subr.mxu0 0.0
        %836 = vmatpush1.msra.mxu0 0.0
        %837 = vmatprep.subr.mxu0 0.0
        %838 = vmatpush1.msra.mxu0 0.0
        %839 = vmatprep.subr.mxu0 0.0
        %840 = vmatpush1.msra.mxu0 0.0
        %841 = vmatprep.subr.mxu0 0.0
        %842 = vmatpush1.msra.mxu0 0.0
        %843 = vmatprep.subr.mxu0 0.0
        %844 = vmatpush1.msra.mxu0 0.0
        %845 = vmatprep.subr.mxu0 0.0
        %846 = vmatpush1.msra.mxu0 0.0
        %847 = vmatprep.subr.mxu0 0.0
        %848 = vmatpush1.msra.mxu0 0.0
        %849 = vmatprep.subr.mxu0 0.0
        %850 = vmatpush1.msra.mxu0 0.0
        %851 = vmatprep.subr.mxu0 0.0
        %852 = vmatpush1.msra.mxu0 0.0
        %853 = vmatprep.subr.mxu0 0.0
        %854 = vmatpush1.msra.mxu0 0.0
        %855 = vmatprep.subr.mxu0 0.0
        %856 = vmatpush1.msra.mxu0 0.0
        %857 = vmatprep.subr.mxu0 0.0
        %858 = vmatpush1.msra.mxu0 0.0
        %859 = vmatprep.subr.mxu0 0.0
        %860 = vmatpush1.msra.mxu0 0.0
        %861 = vmatprep.subr.mxu0 0.0
        %862 = vmatpush1.msra.mxu0 0.0
        %863 = vmatprep.subr.mxu0 0.0
        %864 = vmatpush1.msra.mxu0 0.0
        %865 = vmatprep.subr.mxu0 0.0
        %866 = vmatpush1.msra.mxu0 0.0
        %867 = vmatprep.subr.mxu0 0.0
        %868 = vmatpush1.msra.mxu0 0.0
        %869 = vmatprep.subr.mxu0 0.0
        %870 = vmatpush1.msra.mxu0 0.0
        %871 = vmatprep.mubr.f32.mxu0 0.0
        %872 = vmatmul.mubr.f32.gmra.mrb[0].mxu0 %v760
        %v873 = vpop.f32.mrb[0].mxu0
        %v874 = vadd.f32 0.0, %v873
        %v875 = vpop.f32.mrb[0].mxu0
        %876 = vmatprep.mubr.f32.mxu0 0.0
        %877 = vmatmul.mubr.f32.gmra.mrb[0].mxu0 %v763
        %v878 = vpop.f32.mrb[0].mxu0
        %v879 = vadd.f32 0.0, %v878
        %v880 = vpop.f32.mrb[0].mxu0
        %881 = vmatprep.mubr.f32.mxu0 0.0
        %882 = vmatmul.mubr.f32.gmra.mrb[0].mxu0 %v766
        %v883 = vpop.f32.mrb[0].mxu0
        %v884 = vadd.f32 0.0, %v883
        %v885 = vpop.f32.mrb[0].mxu0
        %886 = vmatprep.mubr.f32.mxu0 0.0
        %887 = vmatmul.mubr.f32.gmra.mrb[0].mxu0 %v769
        %v888 = vpop.f32.mrb[0].mxu0
        %v889 = vadd.f32 0.0, %v888
        %v890 = vpop.f32.mrb[0].mxu0
        %891 = vmatprep.mubr.f32.mxu0 0.0
        %892 = vmatmul.mubr.f32.gmra.mrb[0].mxu0 %v772
        %v893 = vpop.f32.mrb[0].mxu0
        %v894 = vadd.f32 0.0, %v893
        %v895 = vpop.f32.mrb[0].mxu0
        %896 = vmatprep.mubr.f32.mxu0 0.0
        %897 = vmatmul.mubr.f32.gmra.mrb[0].mxu0 %v775
        %v898 = vpop.f32.mrb[0].mxu0
        %v899 = vadd.f32 0.0, %v898
        %v900 = vpop.f32.mrb[0].mxu0
        %901 = vmatprep.mubr.f32.mxu0 0.0
        %902 = vmatmul.mubr.f32.gmra.mrb[0].mxu0 %v778
        %v903 = vpop.f32.mrb[0].mxu0
        %v904 = vadd.f32 0.0, %v903
        %v905 = vpop.f32.mrb[0].mxu0
        %906 = vmatprep.mubr.f32.mxu0 0.0
        %907 = vmatmul.mubr.f32.gmra.mrb[0].mxu0 %v781
        %v908 = vpop.f32.mrb[0].mxu0
        %v909 = vadd.f32 0.0, %v908
        %v910 = vpop.f32.mrb[0].mxu0
        %911 = vmatprep.mubr.f32.mxu0 0.0
        %912 = vmatmul.mubr.f32.gmra.mrb[0].mxu0 %v784
        %v913 = vpop.f32.mrb[0].mxu0
        %v914 = vadd.f32 0.0, %v913
        %v915 = vpop.f32.mrb[0].mxu0
        %916 = vmatprep.mubr.f32.mxu0 0.0
        %917 = vmatmul.mubr.f32.gmra.mrb[0].mxu0 %v787
        %v918 = vpop.f32.mrb[0].mxu0
        %v919 = vadd.f32 0.0, %v918
        %v920 = vpop.f32.mrb[0].mxu0
        %921 = vmatprep.mubr.f32.mxu0 0.0
        %922 = vmatmul.mubr.f32.gmra.mrb[0].mxu0 %v790
        %v923 = vpop.f32.mrb[0].mxu0
        %v924 = vadd.f32 0.0, %v923
        %v925 = vpop.f32.mrb[0].mxu0
        %926 = vmatprep.mubr.f32.mxu0 0.0
        %927 = vmatmul.mubr.f32.gmra.mrb[0].mxu0 %v793
        %v928 = vpop.f32.mrb[0].mxu0
        %v929 = vadd.f32 0.0, %v928
        %v930 = vpop.f32.mrb[0].mxu0
        %931 = vmatprep.mubr.f32.mxu0 0.0
        %932 = vmatmul.mubr.f32.gmra.mrb[0].mxu0 %v796
        %v933 = vpop.f32.mrb[0].mxu0
        %v934 = vadd.f32 0.0, %v933
        %v935 = vpop.f32.mrb[0].mxu0
        %936 = vmatprep.mubr.f32.mxu0 0.0
        %937 = vmatmul.mubr.f32.gmra.mrb[0].mxu0 %v799
        %v938 = vpop.f32.mrb[0].mxu0
        %v939 = vadd.f32 0.0, %v938
        %v940 = vpop.f32.mrb[0].mxu0
        %941 = vmatprep.mubr.f32.mxu0 0.0
        %942 = vmatmul.mubr.f32.gmra.mrb[0].mxu0 %v802
        %v943 = vpop.f32.mrb[0].mxu0
        %v944 = vadd.f32 0.0, %v943
        %v945 = vpop.f32.mrb[0].mxu0
        %946 = vmatprep.mubr.f32.mxu0 0.0
        %947 = vmatmul.mubr.f32.gmra.mrb[0].mxu0 %v805
        %v948 = vpop.f32.mrb[0].mxu0
        %v949 = vadd.f32 0.0, %v948
        %v950 = vpop.f32.mrb[0].mxu0
        %951 = vdwg.mxu0
        %v952 = vmul.f32 %v329, %v874
        %v953 = vmul.f32 %v330, %v879
        %v954 = vmul.f32 %v331, %v884
        %v955 = vmul.f32 %v332, %v889
        %v956 = vmul.f32 %v333, %v894
        %v957 = vmul.f32 %v334, %v899
        %v958 = vmul.f32 %v335, %v904
        %v959 = vmul.f32 %v336, %v909
        %v960 = vmul.f32 %v337, %v914
        %v961 = vmul.f32 %v338, %v919
        %v962 = vmul.f32 %v339, %v924
        %v963 = vmul.f32 %v340, %v929
        %v964 = vmul.f32 %v341, %v934
        %v965 = vmul.f32 %v342, %v939
        %v966 = vmul.f32 %v343, %v944
        %v967 = vmul.f32 %v344, %v949
        %968 = vmatprep.subr.mxu0 0.0
        %969 = vmatpush1.msra.mxu0 %v952
        %970 = vmatprep.subr.mxu0 0.0
        %971 = vmatpush1.msra.mxu0 %v953
        %972 = vmatprep.subr.mxu0 0.0
        %973 = vmatpush1.msra.mxu0 %v954
        %974 = vmatprep.subr.mxu0 0.0
        %975 = vmatpush1.msra.mxu0 %v955
        %976 = vmatprep.subr.mxu0 0.0
        %977 = vmatpush1.msra.mxu0 %v956
        %978 = vmatprep.subr.mxu0 0.0
        %979 = vmatpush1.msra.mxu0 %v957
        %980 = vmatprep.subr.mxu0 0.0
        %981 = vmatpush1.msra.mxu0 %v958
        %982 = vmatprep.subr.mxu0 0.0
        %983 = vmatpush1.msra.mxu0 %v959
        %984 = vmatprep.subr.mxu0 0.0
        %985 = vmatpush1.msra.mxu0 %v960
        %986 = vmatprep.subr.mxu0 0.0
        %987 = vmatpush1.msra.mxu0 %v961
        %988 = vmatprep.subr.mxu0 0.0
        %989 = vmatpush1.msra.mxu0 %v962
        %990 = vmatprep.subr.mxu0 0.0
        %991 = vmatpush1.msra.mxu0 %v963
        %992 = vmatprep.subr.mxu0 0.0
        %993 = vmatpush1.msra.mxu0 %v964
        %994 = vmatprep.subr.mxu0 0.0
        %995 = vmatpush1.msra.mxu0 %v965
        %996 = vmatprep.subr.mxu0 0.0
        %997 = vmatpush1.msra.mxu0 %v966
        %998 = vmatprep.subr.mxu0 0.0
        %999 = vmatpush1.msra.mxu0 %v967
        %1000 = vmatprep.subr.mxu0 0.0
        %1001 = vmatpush1.msra.mxu0 0.0
        %1002 = vmatprep.subr.mxu0 0.0
        %1003 = vmatpush1.msra.mxu0 0.0
        %1004 = vmatprep.subr.mxu0 0.0
        %1005 = vmatpush1.msra.mxu0 0.0
        %1006 = vmatprep.subr.mxu0 0.0
        %1007 = vmatpush1.msra.mxu0 0.0
        %1008 = vmatprep.subr.mxu0 0.0
        %1009 = vmatpush1.msra.mxu0 0.0
        %1010 = vmatprep.subr.mxu0 0.0
        %1011 = vmatpush1.msra.mxu0 0.0
        %1012 = vmatprep.subr.mxu0 0.0
        %1013 = vmatpush1.msra.mxu0 0.0
        %1014 = vmatprep.subr.mxu0 0.0
        %1015 = vmatpush1.msra.mxu0 0.0
        %1016 = vmatprep.subr.mxu0 0.0
        %1017 = vmatpush1.msra.mxu0 0.0
        %1018 = vmatprep.subr.mxu0 0.0
        %1019 = vmatpush1.msra.mxu0 0.0
        %1020 = vmatprep.subr.mxu0 0.0
        %1021 = vmatpush1.msra.mxu0 0.0
        %1022 = vmatprep.subr.mxu0 0.0
        %1023 = vmatpush1.msra.mxu0 0.0
        %1024 = vmatprep.subr.mxu0 0.0
        %1025 = vmatpush1.msra.mxu0 0.0
        %1026 = vmatprep.subr.mxu0 0.0
        %1027 = vmatpush1.msra.mxu0 0.0
        %1028 = vmatprep.subr.mxu0 0.0
        %1029 = vmatpush1.msra.mxu0 0.0
        %1030 = vmatprep.subr.mxu0 0.0
        %1031 = vmatpush1.msra.mxu0 0.0
        %1032 = vmatprep.mubr.f32.mxu0 0.0
        %1033 = vmatmul.mubr.f32.gmra.mrb[0].mxu0 %v281
        %v1034 = vpop.f32.mrb[0].mxu0
        %v1035 = vadd.f32 0.0, %v1034
        %v1036 = vpop.f32.mrb[0].mxu0
        %1037 = vmatprep.mubr.f32.mxu0 0.0
        %1038 = vmatmul.mubr.f32.gmra.mrb[0].mxu0 %v282
        %v1039 = vpop.f32.mrb[0].mxu0
        %v1040 = vadd.f32 0.0, %v1039
        %v1041 = vpop.f32.mrb[0].mxu0
        %1042 = vmatprep.mubr.f32.mxu0 0.0
        %1043 = vmatmul.mubr.f32.gmra.mrb[0].mxu0 %v283
        %v1044 = vpop.f32.mrb[0].mxu0
        %v1045 = vadd.f32 0.0, %v1044
        %v1046 = vpop.f32.mrb[0].mxu0
        %1047 = vmatprep.mubr.f32.mxu0 0.0
        %1048 = vmatmul.mubr.f32.gmra.mrb[0].mxu0 %v284
        %v1049 = vpop.f32.mrb[0].mxu0
        %v1050 = vadd.f32 0.0, %v1049
        %v1051 = vpop.f32.mrb[0].mxu0
        %1052 = vmatprep.mubr.f32.mxu0 0.0
        %1053 = vmatmul.mubr.f32.gmra.mrb[0].mxu0 %v285
        %v1054 = vpop.f32.mrb[0].mxu0
        %v1055 = vadd.f32 0.0, %v1054
        %v1056 = vpop.f32.mrb[0].mxu0
        %1057 = vmatprep.mubr.f32.mxu0 0.0
        %1058 = vmatmul.mubr.f32.gmra.mrb[0].mxu0 %v286
        %v1059 = vpop.f32.mrb[0].mxu0
        %v1060 = vadd.f32 0.0, %v1059
        %v1061 = vpop.f32.mrb[0].mxu0
        %1062 = vmatprep.mubr.f32.mxu0 0.0
        %1063 = vmatmul.mubr.f32.gmra.mrb[0].mxu0 %v287
        %v1064 = vpop.f32.mrb[0].mxu0
        %v1065 = vadd.f32 0.0, %v1064
        %v1066 = vpop.f32.mrb[0].mxu0
        %1067 = vmatprep.mubr.f32.mxu0 0.0
        %1068 = vmatmul.mubr.f32.gmra.mrb[0].mxu0 %v288
        %v1069 = vpop.f32.mrb[0].mxu0
        %v1070 = vadd.f32 0.0, %v1069
        %v1071 = vpop.f32.mrb[0].mxu0
        %1072 = vmatprep.mubr.f32.mxu0 0.0
        %1073 = vmatmul.mubr.f32.gmra.mrb[0].mxu0 %v289
        %v1074 = vpop.f32.mrb[0].mxu0
        %v1075 = vadd.f32 0.0, %v1074
        %v1076 = vpop.f32.mrb[0].mxu0
        %1077 = vmatprep.mubr.f32.mxu0 0.0
        %1078 = vmatmul.mubr.f32.gmra.mrb[0].mxu0 %v290
        %v1079 = vpop.f32.mrb[0].mxu0
        %v1080 = vadd.f32 0.0, %v1079
        %v1081 = vpop.f32.mrb[0].mxu0
        %1082 = vmatprep.mubr.f32.mxu0 0.0
        %1083 = vmatmul.mubr.f32.gmra.mrb[0].mxu0 %v291
        %v1084 = vpop.f32.mrb[0].mxu0
        %v1085 = vadd.f32 0.0, %v1084
        %v1086 = vpop.f32.mrb[0].mxu0
        %1087 = vmatprep.mubr.f32.mxu0 0.0
        %1088 = vmatmul.mubr.f32.gmra.mrb[0].mxu0 %v292
        %v1089 = vpop.f32.mrb[0].mxu0
        %v1090 = vadd.f32 0.0, %v1089
        %v1091 = vpop.f32.mrb[0].mxu0
        %1092 = vmatprep.mubr.f32.mxu0 0.0
        %1093 = vmatmul.mubr.f32.gmra.mrb[0].mxu0 %v293
        %v1094 = vpop.f32.mrb[0].mxu0
        %v1095 = vadd.f32 0.0, %v1094
        %v1096 = vpop.f32.mrb[0].mxu0
        %1097 = vmatprep.mubr.f32.mxu0 0.0
        %1098 = vmatmul.mubr.f32.gmra.mrb[0].mxu0 %v294
        %v1099 = vpop.f32.mrb[0].mxu0
        %v1100 = vadd.f32 0.0, %v1099
        %v1101 = vpop.f32.mrb[0].mxu0
        %1102 = vmatprep.mubr.f32.mxu0 0.0
        %1103 = vmatmul.mubr.f32.gmra.mrb[0].mxu0 %v295
        %v1104 = vpop.f32.mrb[0].mxu0
        %v1105 = vadd.f32 0.0, %v1104
        %v1106 = vpop.f32.mrb[0].mxu0
        %1107 = vmatprep.mubr.f32.mxu0 0.0
        %1108 = vmatmul.mubr.f32.gmra.mrb[0].mxu0 %v296
        %v1109 = vpop.f32.mrb[0].mxu0
        %v1110 = vadd.f32 0.0, %v1109
        %v1111 = vpop.f32.mrb[0].mxu0
        %1112 = vdwg.mxu0
        %v1113 = vmul.f32 %v329, %v1035
        %v1114 = vmul.f32 %v330, %v1040
        %v1115 = vmul.f32 %v331, %v1045
        %v1116 = vmul.f32 %v332, %v1050
        %v1117 = vmul.f32 %v333, %v1055
        %v1118 = vmul.f32 %v334, %v1060
        %v1119 = vmul.f32 %v335, %v1065
        %v1120 = vmul.f32 %v336, %v1070
        %v1121 = vmul.f32 %v337, %v1075
        %v1122 = vmul.f32 %v338, %v1080
        %v1123 = vmul.f32 %v339, %v1085
        %v1124 = vmul.f32 %v340, %v1090
        %v1125 = vmul.f32 %v341, %v1095
        %v1126 = vmul.f32 %v342, %v1100
        %v1127 = vmul.f32 %v343, %v1105
        %v1128 = vmul.f32 %v344, %v1110
        %v1129 = vlaneseq
        %v1130 = vshrl.u32 %v1129, 7
        %v1131 = vsub.s32 0, %v1130
        %v1132 = vrot.slane %v195, %v1131
        %v1133 = vadd.f32 %v1113, %v1132
        %v1134 = vadd.f32 %v1114, %v1132
        %v1135 = vadd.f32 %v1115, %v1132
        %v1136 = vadd.f32 %v1116, %v1132
        %v1137 = vadd.f32 %v1117, %v1132
        %v1138 = vadd.f32 %v1118, %v1132
        %v1139 = vadd.f32 %v1119, %v1132
        %v1140 = vadd.f32 %v1120, %v1132
        %v1141 = vadd.f32 %v1121, %v1132
        %v1142 = vadd.f32 %v1122, %v1132
        %v1143 = vadd.f32 %v1123, %v1132
        %v1144 = vadd.f32 %v1124, %v1132
        %v1145 = vadd.f32 %v1125, %v1132
        %v1146 = vadd.f32 %v1126, %v1132
        %v1147 = vadd.f32 %v1127, %v1132
        %v1148 = vadd.f32 %v1128, %v1132
        %v1149 = vtanh.pop %v1133
        %v1150 = vtanh.pop %v1134
        %v1151 = vtanh.pop %v1135
        %v1152 = vtanh.pop %v1136
        %v1153 = vtanh.pop %v1137
        %v1154 = vtanh.pop %v1138
        %v1155 = vtanh.pop %v1139
        %v1156 = vtanh.pop %v1140
        %v1157 = vtanh.pop %v1141
        %v1158 = vtanh.pop %v1142
        %v1159 = vtanh.pop %v1143
        %v1160 = vtanh.pop %v1144
        %v1161 = vtanh.pop %v1145
        %v1162 = vtanh.pop %v1146
        %v1163 = vtanh.pop %v1147
        %v1164 = vtanh.pop %v1148
        %v1166 = vsel %vm758, %v1149, 0
        %v1169 = vsel %vm758, %v1150, 0
        %v1172 = vsel %vm758, %v1151, 0
        %v1175 = vsel %vm758, %v1152, 0
        %v1178 = vsel %vm758, %v1153, 0
        %v1181 = vsel %vm758, %v1154, 0
        %v1184 = vsel %vm758, %v1155, 0
        %v1187 = vsel %vm758, %v1156, 0
        %v1190 = vsel %vm758, %v1157, 0
        %v1193 = vsel %vm758, %v1158, 0
        %v1196 = vsel %vm758, %v1159, 0
        %v1199 = vsel %vm758, %v1160, 0
        %v1202 = vsel %vm758, %v1161, 0
        %v1205 = vsel %vm758, %v1162, 0
        %v1208 = vsel %vm758, %v1163, 0
        %v1211 = vsel %vm758, %v1164, 0
        %1213 = vmatprep.subr.mxu0 0.0
        %1214 = vmatpush1.msra.mxu0 %v202
        %1215 = vmatprep.subr.mxu0 0.0
        %1216 = vmatpush1.msra.mxu0 %v203
        %1217 = vmatprep.subr.mxu0 0.0
        %1218 = vmatpush1.msra.mxu0 %v204
        %1219 = vmatprep.subr.mxu0 0.0
        %1220 = vmatpush1.msra.mxu0 %v205
        %1221 = vmatprep.subr.mxu0 0.0
        %1222 = vmatpush1.msra.mxu0 0.0
        %1223 = vmatprep.subr.mxu0 0.0
        %1224 = vmatpush1.msra.mxu0 0.0
        %1225 = vmatprep.subr.mxu0 0.0
        %1226 = vmatpush1.msra.mxu0 0.0
        %1227 = vmatprep.subr.mxu0 0.0
        %1228 = vmatpush1.msra.mxu0 0.0
        %1229 = vmatprep.subr.mxu0 0.0
        %1230 = vmatpush1.msra.mxu0 0.0
        %1231 = vmatprep.subr.mxu0 0.0
        %1232 = vmatpush1.msra.mxu0 0.0
        %1233 = vmatprep.subr.mxu0 0.0
        %1234 = vmatpush1.msra.mxu0 0.0
        %1235 = vmatprep.subr.mxu0 0.0
        %1236 = vmatpush1.msra.mxu0 0.0
        %1237 = vmatprep.subr.mxu0 0.0
        %1238 = vmatpush1.msra.mxu0 0.0
        %1239 = vmatprep.subr.mxu0 0.0
        %1240 = vmatpush1.msra.mxu0 0.0
        %1241 = vmatprep.subr.mxu0 0.0
        %1242 = vmatpush1.msra.mxu0 0.0
        %1243 = vmatprep.subr.mxu0 0.0
        %1244 = vmatpush1.msra.mxu0 0.0
        %1245 = vmatprep.subr.mxu0 0.0
        %1246 = vmatpush1.msra.mxu0 0.0
        %1247 = vmatprep.subr.mxu0 0.0
        %1248 = vmatpush1.msra.mxu0 0.0
        %1249 = vmatprep.subr.mxu0 0.0
        %1250 = vmatpush1.msra.mxu0 0.0
        %1251 = vmatprep.subr.mxu0 0.0
        %1252 = vmatpush1.msra.mxu0 0.0
        %1253 = vmatprep.subr.mxu0 0.0
        %1254 = vmatpush1.msra.mxu0 0.0
        %1255 = vmatprep.subr.mxu0 0.0
        %1256 = vmatpush1.msra.mxu0 0.0
        %1257 = vmatprep.subr.mxu0 0.0
        %1258 = vmatpush1.msra.mxu0 0.0
        %1259 = vmatprep.subr.mxu0 0.0
        %1260 = vmatpush1.msra.mxu0 0.0
        %1261 = vmatprep.subr.mxu0 0.0
        %1262 = vmatpush1.msra.mxu0 0.0
        %1263 = vmatprep.subr.mxu0 0.0
        %1264 = vmatpush1.msra.mxu0 0.0
        %1265 = vmatprep.subr.mxu0 0.0
        %1266 = vmatpush1.msra.mxu0 0.0
        %1267 = vmatprep.subr.mxu0 0.0
        %1268 = vmatpush1.msra.mxu0 0.0
        %1269 = vmatprep.subr.mxu0 0.0
        %1270 = vmatpush1.msra.mxu0 0.0
        %1271 = vmatprep.subr.mxu0 0.0
        %1272 = vmatpush1.msra.mxu0 0.0
        %1273 = vmatprep.subr.mxu0 0.0
        %1274 = vmatpush1.msra.mxu0 0.0
        %1275 = vmatprep.subr.mxu0 0.0
        %1276 = vmatpush1.msra.mxu0 0.0
        %1277 = vmatprep.mubr.f32.mxu0 0.0
        %1278 = vmatmul.mubr.f32.gmra.mrb[0].mxu0 %v1166
        %v1279 = vpop.f32.mrb[0].mxu0
        %v1280 = vadd.f32 0.0, %v1279
        %v1281 = vpop.f32.mrb[0].mxu0
        %1282 = vmatprep.mubr.f32.mxu0 0.0
        %1283 = vmatmul.mubr.f32.gmra.mrb[0].mxu0 %v1169
        %v1284 = vpop.f32.mrb[0].mxu0
        %v1285 = vadd.f32 0.0, %v1284
        %v1286 = vpop.f32.mrb[0].mxu0
        %1287 = vmatprep.mubr.f32.mxu0 0.0
        %1288 = vmatmul.mubr.f32.gmra.mrb[0].mxu0 %v1172
        %v1289 = vpop.f32.mrb[0].mxu0
        %v1290 = vadd.f32 0.0, %v1289
        %v1291 = vpop.f32.mrb[0].mxu0
        %1292 = vmatprep.mubr.f32.mxu0 0.0
        %1293 = vmatmul.mubr.f32.gmra.mrb[0].mxu0 %v1175
        %v1294 = vpop.f32.mrb[0].mxu0
        %v1295 = vadd.f32 0.0, %v1294
        %v1296 = vpop.f32.mrb[0].mxu0
        %1297 = vmatprep.mubr.f32.mxu0 0.0
        %1298 = vmatmul.mubr.f32.gmra.mrb[0].mxu0 %v1178
        %v1299 = vpop.f32.mrb[0].mxu0
        %v1300 = vadd.f32 0.0, %v1299
        %v1301 = vpop.f32.mrb[0].mxu0
        %1302 = vmatprep.mubr.f32.mxu0 0.0
        %1303 = vmatmul.mubr.f32.gmra.mrb[0].mxu0 %v1181
        %v1304 = vpop.f32.mrb[0].mxu0
        %v1305 = vadd.f32 0.0, %v1304
        %v1306 = vpop.f32.mrb[0].mxu0
        %1307 = vmatprep.mubr.f32.mxu0 0.0
        %1308 = vmatmul.mubr.f32.gmra.mrb[0].mxu0 %v1184
        %v1309 = vpop.f32.mrb[0].mxu0
        %v1310 = vadd.f32 0.0, %v1309
        %v1311 = vpop.f32.mrb[0].mxu0
        %1312 = vmatprep.mubr.f32.mxu0 0.0
        %1313 = vmatmul.mubr.f32.gmra.mrb[0].mxu0 %v1187
        %v1314 = vpop.f32.mrb[0].mxu0
        %v1315 = vadd.f32 0.0, %v1314
        %v1316 = vpop.f32.mrb[0].mxu0
        %1317 = vmatprep.mubr.f32.mxu0 0.0
        %1318 = vmatmul.mubr.f32.gmra.mrb[0].mxu0 %v1190
        %v1319 = vpop.f32.mrb[0].mxu0
        %v1320 = vadd.f32 0.0, %v1319
        %v1321 = vpop.f32.mrb[0].mxu0
        %1322 = vmatprep.mubr.f32.mxu0 0.0
        %1323 = vmatmul.mubr.f32.gmra.mrb[0].mxu0 %v1193
        %v1324 = vpop.f32.mrb[0].mxu0
        %v1325 = vadd.f32 0.0, %v1324
        %v1326 = vpop.f32.mrb[0].mxu0
        %1327 = vmatprep.mubr.f32.mxu0 0.0
        %1328 = vmatmul.mubr.f32.gmra.mrb[0].mxu0 %v1196
        %v1329 = vpop.f32.mrb[0].mxu0
        %v1330 = vadd.f32 0.0, %v1329
        %v1331 = vpop.f32.mrb[0].mxu0
        %1332 = vmatprep.mubr.f32.mxu0 0.0
        %1333 = vmatmul.mubr.f32.gmra.mrb[0].mxu0 %v1199
        %v1334 = vpop.f32.mrb[0].mxu0
        %v1335 = vadd.f32 0.0, %v1334
        %v1336 = vpop.f32.mrb[0].mxu0
        %1337 = vmatprep.mubr.f32.mxu0 0.0
        %1338 = vmatmul.mubr.f32.gmra.mrb[0].mxu0 %v1202
        %v1339 = vpop.f32.mrb[0].mxu0
        %v1340 = vadd.f32 0.0, %v1339
        %v1341 = vpop.f32.mrb[0].mxu0
        %1342 = vmatprep.mubr.f32.mxu0 0.0
        %1343 = vmatmul.mubr.f32.gmra.mrb[0].mxu0 %v1205
        %v1344 = vpop.f32.mrb[0].mxu0
        %v1345 = vadd.f32 0.0, %v1344
        %v1346 = vpop.f32.mrb[0].mxu0
        %1347 = vmatprep.mubr.f32.mxu0 0.0
        %1348 = vmatmul.mubr.f32.gmra.mrb[0].mxu0 %v1208
        %v1349 = vpop.f32.mrb[0].mxu0
        %v1350 = vadd.f32 0.0, %v1349
        %v1351 = vpop.f32.mrb[0].mxu0
        %1352 = vmatprep.mubr.f32.mxu0 0.0
        %1353 = vmatmul.mubr.f32.gmra.mrb[0].mxu0 %v1211
        %v1354 = vpop.f32.mrb[0].mxu0
        %v1355 = vadd.f32 0.0, %v1354
        %v1356 = vpop.f32.mrb[0].mxu0
        %1357 = vdwg.mxu0
        %v1358 = vmul.f32 %v329, %v1280
        %v1359 = vmul.f32 %v330, %v1285
        %v1360 = vmul.f32 %v331, %v1290
        %v1361 = vmul.f32 %v332, %v1295
        %v1362 = vmul.f32 %v333, %v1300
        %v1363 = vmul.f32 %v334, %v1305
        %v1364 = vmul.f32 %v335, %v1310
        %v1365 = vmul.f32 %v336, %v1315
        %v1366 = vmul.f32 %v337, %v1320
        %v1367 = vmul.f32 %v338, %v1325
        %v1368 = vmul.f32 %v339, %v1330
        %v1369 = vmul.f32 %v340, %v1335
        %v1370 = vmul.f32 %v341, %v1340
        %v1371 = vmul.f32 %v342, %v1345
        %v1372 = vmul.f32 %v343, %v1350
        %v1373 = vmul.f32 %v344, %v1355
        %1374 = vmatprep.subr.mxu0 0.0
        %1375 = vmatpush1.msra.mxu0 %v1358
        %1376 = vmatprep.subr.mxu0 0.0
        %1377 = vmatpush1.msra.mxu0 %v1359
        %1378 = vmatprep.subr.mxu0 0.0
        %1379 = vmatpush1.msra.mxu0 %v1360
        %1380 = vmatprep.subr.mxu0 0.0
        %1381 = vmatpush1.msra.mxu0 %v1361
        %1382 = vmatprep.subr.mxu0 0.0
        %1383 = vmatpush1.msra.mxu0 %v1362
        %1384 = vmatprep.subr.mxu0 0.0
        %1385 = vmatpush1.msra.mxu0 %v1363
        %1386 = vmatprep.subr.mxu0 0.0
        %1387 = vmatpush1.msra.mxu0 %v1364
        %1388 = vmatprep.subr.mxu0 0.0
        %1389 = vmatpush1.msra.mxu0 %v1365
        %1390 = vmatprep.subr.mxu0 0.0
        %1391 = vmatpush1.msra.mxu0 %v1366
        %1392 = vmatprep.subr.mxu0 0.0
        %1393 = vmatpush1.msra.mxu0 %v1367
        %1394 = vmatprep.subr.mxu0 0.0
        %1395 = vmatpush1.msra.mxu0 %v1368
        %1396 = vmatprep.subr.mxu0 0.0
        %1397 = vmatpush1.msra.mxu0 %v1369
        %1398 = vmatprep.subr.mxu0 0.0
        %1399 = vmatpush1.msra.mxu0 %v1370
        %1400 = vmatprep.subr.mxu0 0.0
        %1401 = vmatpush1.msra.mxu0 %v1371
        %1402 = vmatprep.subr.mxu0 0.0
        %1403 = vmatpush1.msra.mxu0 %v1372
        %1404 = vmatprep.subr.mxu0 0.0
        %1405 = vmatpush1.msra.mxu0 %v1373
        %1406 = vmatprep.subr.mxu0 0.0
        %1407 = vmatpush1.msra.mxu0 0.0
        %1408 = vmatprep.subr.mxu0 0.0
        %1409 = vmatpush1.msra.mxu0 0.0
        %1410 = vmatprep.subr.mxu0 0.0
        %1411 = vmatpush1.msra.mxu0 0.0
        %1412 = vmatprep.subr.mxu0 0.0
        %1413 = vmatpush1.msra.mxu0 0.0
        %1414 = vmatprep.subr.mxu0 0.0
        %1415 = vmatpush1.msra.mxu0 0.0
        %1416 = vmatprep.subr.mxu0 0.0
        %1417 = vmatpush1.msra.mxu0 0.0
        %1418 = vmatprep.subr.mxu0 0.0
        %1419 = vmatpush1.msra.mxu0 0.0
        %1420 = vmatprep.subr.mxu0 0.0
        %1421 = vmatpush1.msra.mxu0 0.0
        %1422 = vmatprep.subr.mxu0 0.0
        %1423 = vmatpush1.msra.mxu0 0.0
        %1424 = vmatprep.subr.mxu0 0.0
        %1425 = vmatpush1.msra.mxu0 0.0
        %1426 = vmatprep.subr.mxu0 0.0
        %1427 = vmatpush1.msra.mxu0 0.0
        %1428 = vmatprep.subr.mxu0 0.0
        %1429 = vmatpush1.msra.mxu0 0.0
        %1430 = vmatprep.subr.mxu0 0.0
        %1431 = vmatpush1.msra.mxu0 0.0
        %1432 = vmatprep.subr.mxu0 0.0
        %1433 = vmatpush1.msra.mxu0 0.0
        %1434 = vmatprep.subr.mxu0 0.0
        %1435 = vmatpush1.msra.mxu0 0.0
        %1436 = vmatprep.subr.mxu0 0.0
        %1437 = vmatpush1.msra.mxu0 0.0
        %1438 = vmatprep.mubr.f32.mxu0 0.0
        %1439 = vmatmul.mubr.f32.gmra.mrb[0].mxu0 %v281
        %v1440 = vpop.f32.mrb[0].mxu0
        %v1441 = vadd.f32 0.0, %v1440
        %v1442 = vpop.f32.mrb[0].mxu0
        %1443 = vmatprep.mubr.f32.mxu0 0.0
        %1444 = vmatmul.mubr.f32.gmra.mrb[0].mxu0 %v282
        %v1445 = vpop.f32.mrb[0].mxu0
        %v1446 = vadd.f32 0.0, %v1445
        %v1447 = vpop.f32.mrb[0].mxu0
        %1448 = vmatprep.mubr.f32.mxu0 0.0
        %1449 = vmatmul.mubr.f32.gmra.mrb[0].mxu0 %v283
        %v1450 = vpop.f32.mrb[0].mxu0
        %v1451 = vadd.f32 0.0, %v1450
        %v1452 = vpop.f32.mrb[0].mxu0
        %1453 = vmatprep.mubr.f32.mxu0 0.0
        %1454 = vmatmul.mubr.f32.gmra.mrb[0].mxu0 %v284
        %v1455 = vpop.f32.mrb[0].mxu0
        %v1456 = vadd.f32 0.0, %v1455
        %v1457 = vpop.f32.mrb[0].mxu0
        %1458 = vmatprep.mubr.f32.mxu0 0.0
        %1459 = vmatmul.mubr.f32.gmra.mrb[0].mxu0 %v285
        %v1460 = vpop.f32.mrb[0].mxu0
        %v1461 = vadd.f32 0.0, %v1460
        %v1462 = vpop.f32.mrb[0].mxu0
        %1463 = vmatprep.mubr.f32.mxu0 0.0
        %1464 = vmatmul.mubr.f32.gmra.mrb[0].mxu0 %v286
        %v1465 = vpop.f32.mrb[0].mxu0
        %v1466 = vadd.f32 0.0, %v1465
        %v1467 = vpop.f32.mrb[0].mxu0
        %1468 = vmatprep.mubr.f32.mxu0 0.0
        %1469 = vmatmul.mubr.f32.gmra.mrb[0].mxu0 %v287
        %v1470 = vpop.f32.mrb[0].mxu0
        %v1471 = vadd.f32 0.0, %v1470
        %v1472 = vpop.f32.mrb[0].mxu0
        %1473 = vmatprep.mubr.f32.mxu0 0.0
        %1474 = vmatmul.mubr.f32.gmra.mrb[0].mxu0 %v288
        %v1475 = vpop.f32.mrb[0].mxu0
        %v1476 = vadd.f32 0.0, %v1475
        %v1477 = vpop.f32.mrb[0].mxu0
        %1478 = vmatprep.mubr.f32.mxu0 0.0
        %1479 = vmatmul.mubr.f32.gmra.mrb[0].mxu0 %v289
        %v1480 = vpop.f32.mrb[0].mxu0
        %v1481 = vadd.f32 0.0, %v1480
        %v1482 = vpop.f32.mrb[0].mxu0
        %1483 = vmatprep.mubr.f32.mxu0 0.0
        %1484 = vmatmul.mubr.f32.gmra.mrb[0].mxu0 %v290
        %v1485 = vpop.f32.mrb[0].mxu0
        %v1486 = vadd.f32 0.0, %v1485
        %v1487 = vpop.f32.mrb[0].mxu0
        %1488 = vmatprep.mubr.f32.mxu0 0.0
        %1489 = vmatmul.mubr.f32.gmra.mrb[0].mxu0 %v291
        %v1490 = vpop.f32.mrb[0].mxu0
        %v1491 = vadd.f32 0.0, %v1490
        %v1492 = vpop.f32.mrb[0].mxu0
        %1493 = vmatprep.mubr.f32.mxu0 0.0
        %1494 = vmatmul.mubr.f32.gmra.mrb[0].mxu0 %v292
        %v1495 = vpop.f32.mrb[0].mxu0
        %v1496 = vadd.f32 0.0, %v1495
        %v1497 = vpop.f32.mrb[0].mxu0
        %1498 = vmatprep.mubr.f32.mxu0 0.0
        %1499 = vmatmul.mubr.f32.gmra.mrb[0].mxu0 %v293
        %v1500 = vpop.f32.mrb[0].mxu0
        %v1501 = vadd.f32 0.0, %v1500
        %v1502 = vpop.f32.mrb[0].mxu0
        %1503 = vmatprep.mubr.f32.mxu0 0.0
        %1504 = vmatmul.mubr.f32.gmra.mrb[0].mxu0 %v294
        %v1505 = vpop.f32.mrb[0].mxu0
        %v1506 = vadd.f32 0.0, %v1505
        %v1507 = vpop.f32.mrb[0].mxu0
        %1508 = vmatprep.mubr.f32.mxu0 0.0
        %1509 = vmatmul.mubr.f32.gmra.mrb[0].mxu0 %v295
        %v1510 = vpop.f32.mrb[0].mxu0
        %v1511 = vadd.f32 0.0, %v1510
        %v1512 = vpop.f32.mrb[0].mxu0
        %1513 = vmatprep.mubr.f32.mxu0 0.0
        %1514 = vmatmul.mubr.f32.gmra.mrb[0].mxu0 %v296
        %v1515 = vpop.f32.mrb[0].mxu0
        %v1516 = vadd.f32 0.0, %v1515
        %v1517 = vpop.f32.mrb[0].mxu0
        %1518 = vdwg.mxu0
        %v1519 = vmul.f32 %v329, %v1441
        %v1520 = vmul.f32 %v330, %v1446
        %v1521 = vmul.f32 %v331, %v1451
        %v1522 = vmul.f32 %v332, %v1456
        %v1523 = vmul.f32 %v333, %v1461
        %v1524 = vmul.f32 %v334, %v1466
        %v1525 = vmul.f32 %v335, %v1471
        %v1526 = vmul.f32 %v336, %v1476
        %v1527 = vmul.f32 %v337, %v1481
        %v1528 = vmul.f32 %v338, %v1486
        %v1529 = vmul.f32 %v339, %v1491
        %v1530 = vmul.f32 %v340, %v1496
        %v1531 = vmul.f32 %v341, %v1501
        %v1532 = vmul.f32 %v342, %v1506
        %v1533 = vmul.f32 %v343, %v1511
        %v1534 = vmul.f32 %v344, %v1516
        %v1535 = vlaneseq
        %v1536 = vshrl.u32 %v1535, 7
        %v1537 = vsub.s32 0, %v1536
        %v1538 = vrot.slane %v196, %v1537
        %v1539 = vadd.f32 %v1519, %v1538
        %v1540 = vadd.f32 %v1520, %v1538
        %v1541 = vadd.f32 %v1521, %v1538
        %v1542 = vadd.f32 %v1522, %v1538
        %v1543 = vadd.f32 %v1523, %v1538
        %v1544 = vadd.f32 %v1524, %v1538
        %v1545 = vadd.f32 %v1525, %v1538
        %v1546 = vadd.f32 %v1526, %v1538
        %v1547 = vadd.f32 %v1527, %v1538
        %v1548 = vadd.f32 %v1528, %v1538
        %v1549 = vadd.f32 %v1529, %v1538
        %v1550 = vadd.f32 %v1530, %v1538
        %v1551 = vadd.f32 %v1531, %v1538
        %v1552 = vadd.f32 %v1532, %v1538
        %v1553 = vadd.f32 %v1533, %v1538
        %v1554 = vadd.f32 %v1534, %v1538
        %v1555 = vtanh.pop %v1539
        %v1556 = vtanh.pop %v1540
        %v1557 = vtanh.pop %v1541
        %v1558 = vtanh.pop %v1542
        %v1559 = vtanh.pop %v1543
        %v1560 = vtanh.pop %v1544
        %v1561 = vtanh.pop %v1545
        %v1562 = vtanh.pop %v1546
        %v1563 = vtanh.pop %v1547
        %v1564 = vtanh.pop %v1548
        %v1565 = vtanh.pop %v1549
        %v1566 = vtanh.pop %v1550
        %v1567 = vtanh.pop %v1551
        %v1568 = vtanh.pop %v1552
        %v1569 = vtanh.pop %v1553
        %v1570 = vtanh.pop %v1554
        %1571 = vset.pattern.permute.xlu0 2
        %1572 = vperm.xlu0 %1571, %v175
        %v1573 = vpop.permute.xlu0 %1572
        %1574 = vset.pattern.permute.xlu0 2
        %1575 = vperm.xlu0 %1574, %v176
        %v1576 = vpop.permute.xlu0 %1575
        %1577 = vset.pattern.permute.xlu0 2
        %1578 = vperm.xlu0 %1577, %v177
        %v1579 = vpop.permute.xlu0 %1578
        %1580 = vset.pattern.permute.xlu0 2
        %1581 = vperm.xlu0 %1580, %v178
        %v1582 = vpop.permute.xlu0 %1581
        %1583 = vset.pattern.permute.xlu0 2
        %1584 = vperm.xlu0 %1583, %v179
        %v1585 = vpop.permute.xlu0 %1584
        %1586 = vset.pattern.permute.xlu0 2
        %1587 = vperm.xlu0 %1586, %v180
        %v1588 = vpop.permute.xlu0 %1587
        %1589 = vset.pattern.permute.xlu0 2
        %1590 = vperm.xlu0 %1589, %v181
        %v1591 = vpop.permute.xlu0 %1590
        %1592 = vset.pattern.permute.xlu0 2
        %1593 = vperm.xlu0 %1592, %v182
        %v1594 = vpop.permute.xlu0 %1593
        %1595 = vset.pattern.permute.xlu0 2
        %1596 = vperm.xlu0 %1595, %v183
        %v1597 = vpop.permute.xlu0 %1596
        %1598 = vset.pattern.permute.xlu0 2
        %1599 = vperm.xlu0 %1598, %v184
        %v1600 = vpop.permute.xlu0 %1599
        %1601 = vset.pattern.permute.xlu0 2
        %1602 = vperm.xlu0 %1601, %v185
        %v1603 = vpop.permute.xlu0 %1602
        %1604 = vset.pattern.permute.xlu0 2
        %1605 = vperm.xlu0 %1604, %v186
        %v1606 = vpop.permute.xlu0 %1605
        %1607 = vset.pattern.permute.xlu0 2
        %1608 = vperm.xlu0 %1607, %v187
        %v1609 = vpop.permute.xlu0 %1608
        %1610 = vset.pattern.permute.xlu0 2
        %1611 = vperm.xlu0 %1610, %v188
        %v1612 = vpop.permute.xlu0 %1611
        %1613 = vset.pattern.permute.xlu0 2
        %1614 = vperm.xlu0 %1613, %v189
        %v1615 = vpop.permute.xlu0 %1614
        %1616 = vset.pattern.permute.xlu0 2
        %1617 = vperm.xlu0 %1616, %v190
        %v1618 = vpop.permute.xlu0 %1617
        %vm1619 = vcmp.eq.s32.totalorder %v1573, %v232
        %vm1620 = vcmp.eq.s32.totalorder %v1576, %v232
        %vm1621 = vcmp.eq.s32.totalorder %v1579, %v232
        %vm1622 = vcmp.eq.s32.totalorder %v1582, %v232
        %vm1623 = vcmp.eq.s32.totalorder %v1585, %v232
        %vm1624 = vcmp.eq.s32.totalorder %v1588, %v232
        %vm1625 = vcmp.eq.s32.totalorder %v1591, %v232
        %vm1626 = vcmp.eq.s32.totalorder %v1594, %v232
        %vm1627 = vcmp.eq.s32.totalorder %v1597, %v232
        %vm1628 = vcmp.eq.s32.totalorder %v1600, %v232
        %vm1629 = vcmp.eq.s32.totalorder %v1603, %v232
        %vm1630 = vcmp.eq.s32.totalorder %v1606, %v232
        %vm1631 = vcmp.eq.s32.totalorder %v1609, %v232
        %vm1632 = vcmp.eq.s32.totalorder %v1612, %v232
        %vm1633 = vcmp.eq.s32.totalorder %v1615, %v232
        %vm1634 = vcmp.eq.s32.totalorder %v1618, %v232
        %v1635 = vsel %vm1619, 1, 0
        %v1636 = vsel %vm1620, 1, 0
        %v1637 = vsel %vm1621, 1, 0
        %v1638 = vsel %vm1622, 1, 0
        %v1639 = vsel %vm1623, 1, 0
        %v1640 = vsel %vm1624, 1, 0
        %v1641 = vsel %vm1625, 1, 0
        %v1642 = vsel %vm1626, 1, 0
        %v1643 = vsel %vm1627, 1, 0
        %v1644 = vsel %vm1628, 1, 0
        %v1645 = vsel %vm1629, 1, 0
        %v1646 = vsel %vm1630, 1, 0
        %v1647 = vsel %vm1631, 1, 0
        %v1648 = vsel %vm1632, 1, 0
        %v1649 = vsel %vm1633, 1, 0
        %v1650 = vsel %vm1634, 1, 0
        %v1651 = vcvt.s32.f32 %v1635
        %v1652 = vcvt.s32.f32 %v1636
        %v1653 = vcvt.s32.f32 %v1637
        %v1654 = vcvt.s32.f32 %v1638
        %v1655 = vcvt.s32.f32 %v1639
        %v1656 = vcvt.s32.f32 %v1640
        %v1657 = vcvt.s32.f32 %v1641
        %v1658 = vcvt.s32.f32 %v1642
        %v1659 = vcvt.s32.f32 %v1643
        %v1660 = vcvt.s32.f32 %v1644
        %v1661 = vcvt.s32.f32 %v1645
        %v1662 = vcvt.s32.f32 %v1646
        %v1663 = vcvt.s32.f32 %v1647
        %v1664 = vcvt.s32.f32 %v1648
        %v1665 = vcvt.s32.f32 %v1649
        %v1666 = vcvt.s32.f32 %v1650
        %vm1667 = vcmp.eq.s32.totalorder %v192, %v215
        %vm1668 = vcmp.eq.s32.totalorder %v192, %v216
        %v1669 = vsel %vm1667, 1, 0
        %v1670 = vsel %vm1668, 1, 0
        %v1671 = vcvt.s32.f32 %v1669
        %v1672 = vcvt.s32.f32 %v1670
        %1673 = vadd.xlane.f32.xlu0 %v1671
        %v1674 = vpop.xlane.xlu0 %1673
        %1675 = vadd.xlane.f32.xlu0 %v1672
        %v1676 = vpop.xlane.xlu0 %1675
        %1677 = vmatprep.subr.mxu0 0.0
        %1678 = vmatpush1.msra.mxu0 %v1555
        %1679 = vmatprep.subr.mxu0 0.0
        %1680 = vmatpush1.msra.mxu0 %v1556
        %1681 = vmatprep.subr.mxu0 0.0
        %1682 = vmatpush1.msra.mxu0 %v1557
        %1683 = vmatprep.subr.mxu0 0.0
        %1684 = vmatpush1.msra.mxu0 %v1558
        %1685 = vmatprep.subr.mxu0 0.0
        %1686 = vmatpush1.msra.mxu0 %v1559
        %1687 = vmatprep.subr.mxu0 0.0
        %1688 = vmatpush1.msra.mxu0 %v1560
        %1689 = vmatprep.subr.mxu0 0.0
        %1690 = vmatpush1.msra.mxu0 %v1561
        %1691 = vmatprep.subr.mxu0 0.0
        %1692 = vmatpush1.msra.mxu0 %v1562
        %1693 = vmatprep.subr.mxu0 0.0
        %1694 = vmatpush1.msra.mxu0 %v1563
        %1695 = vmatprep.subr.mxu0 0.0
        %1696 = vmatpush1.msra.mxu0 %v1564
        %1697 = vmatprep.subr.mxu0 0.0
        %1698 = vmatpush1.msra.mxu0 %v1565
        %1699 = vmatprep.subr.mxu0 0.0
        %1700 = vmatpush1.msra.mxu0 %v1566
        %1701 = vmatprep.subr.mxu0 0.0
        %1702 = vmatpush1.msra.mxu0 %v1567
        %1703 = vmatprep.subr.mxu0 0.0
        %1704 = vmatpush1.msra.mxu0 %v1568
        %1705 = vmatprep.subr.mxu0 0.0
        %1706 = vmatpush1.msra.mxu0 %v1569
        %1707 = vmatprep.subr.mxu0 0.0
        %1708 = vmatpush1.msra.mxu0 %v1570
        %1709 = vmatprep.subr.mxu0 0.0
        %1710 = vmatpush1.msra.mxu0 0.0
        %1711 = vmatprep.subr.mxu0 0.0
        %1712 = vmatpush1.msra.mxu0 0.0
        %1713 = vmatprep.subr.mxu0 0.0
        %1714 = vmatpush1.msra.mxu0 0.0
        %1715 = vmatprep.subr.mxu0 0.0
        %1716 = vmatpush1.msra.mxu0 0.0
        %1717 = vmatprep.subr.mxu0 0.0
        %1718 = vmatpush1.msra.mxu0 0.0
        %1719 = vmatprep.subr.mxu0 0.0
        %1720 = vmatpush1.msra.mxu0 0.0
        %1721 = vmatprep.subr.mxu0 0.0
        %1722 = vmatpush1.msra.mxu0 0.0
        %1723 = vmatprep.subr.mxu0 0.0
        %1724 = vmatpush1.msra.mxu0 0.0
        %1725 = vmatprep.subr.mxu0 0.0
        %1726 = vmatpush1.msra.mxu0 0.0
        %1727 = vmatprep.subr.mxu0 0.0
        %1728 = vmatpush1.msra.mxu0 0.0
        %1729 = vmatprep.subr.mxu0 0.0
        %1730 = vmatpush1.msra.mxu0 0.0
        %1731 = vmatprep.subr.mxu0 0.0
        %1732 = vmatpush1.msra.mxu0 0.0
        %1733 = vmatprep.subr.mxu0 0.0
        %1734 = vmatpush1.msra.mxu0 0.0
        %1735 = vmatprep.subr.mxu0 0.0
        %1736 = vmatpush1.msra.mxu0 0.0
        %1737 = vmatprep.subr.mxu0 0.0
        %1738 = vmatpush1.msra.mxu0 0.0
        %1739 = vmatprep.subr.mxu0 0.0
        %1740 = vmatpush1.msra.mxu0 0.0
        %1741 = vmatprep.mubr.f32.mxu0 0.0
        %1742 = vmatmul.mubr.f32.gmra.mrb[0].mxu0 %v1671
        %v1743 = vpop.f32.mrb[0].mxu0
        %v1744 = vadd.f32 0.0, %v1743
        %v1745 = vpop.f32.mrb[0].mxu0
        %1746 = vmatprep.mubr.f32.mxu0 0.0
        %1747 = vmatmul.mubr.f32.gmra.mrb[0].mxu0 %v1672
        %v1748 = vpop.f32.mrb[0].mxu0
        %v1749 = vadd.f32 0.0, %v1748
        %v1750 = vpop.f32.mrb[0].mxu0
        %1751 = vdwg.mxu0
        %v1752 = vmax.f32 %v1674, 1.0
        %v1753 = vmax.f32 %v1676, 1.0
        %v1754 = vrcp.pop %v1752
        %v1755 = vmul.f32 %v1744, %v1754
        %v1756 = vrcp.pop %v1753
        %v1757 = vmul.f32 %v1749, %v1756
        %v1758 = vsub.f32 %v1651, 1.0
        %v1759 = vsub.f32 %v1652, 1.0
        %v1760 = vsub.f32 %v1653, 1.0
        %v1761 = vsub.f32 %v1654, 1.0
        %v1762 = vsub.f32 %v1655, 1.0
        %v1763 = vsub.f32 %v1656, 1.0
        %v1764 = vsub.f32 %v1657, 1.0
        %v1765 = vsub.f32 %v1658, 1.0
        %v1766 = vsub.f32 %v1659, 1.0
        %v1767 = vsub.f32 %v1660, 1.0
        %v1768 = vsub.f32 %v1661, 1.0
        %v1769 = vsub.f32 %v1662, 1.0
        %v1770 = vsub.f32 %v1663, 1.0
        %v1771 = vsub.f32 %v1664, 1.0
        %v1772 = vsub.f32 %v1665, 1.0
        %v1773 = vsub.f32 %v1666, 1.0
        %v1774 = vmul.f32 %v1758, 4.0
        %v1775 = vmul.f32 %v1759, 4.0
        %v1776 = vmul.f32 %v1760, 4.0
        %v1777 = vmul.f32 %v1761, 4.0
        %v1778 = vmul.f32 %v1762, 4.0
        %v1779 = vmul.f32 %v1763, 4.0
        %v1780 = vmul.f32 %v1764, 4.0
        %v1781 = vmul.f32 %v1765, 4.0
        %v1782 = vmul.f32 %v1766, 4.0
        %v1783 = vmul.f32 %v1767, 4.0
        %v1784 = vmul.f32 %v1768, 4.0
        %v1785 = vmul.f32 %v1769, 4.0
        %v1786 = vmul.f32 %v1770, 4.0
        %v1787 = vmul.f32 %v1771, 4.0
        %v1788 = vmul.f32 %v1772, 4.0
        %v1789 = vmul.f32 %v1773, 4.0
        %1791 = vset.pattern.permute.xlu0 0
        %1792 = vperm.xlu0 %1791, %v1774
        %v1793 = vpop.permute.xlu0 %1792
        %1796 = vset.pattern.permute.xlu0 0
        %1797 = vperm.xlu0 %1796, %v1775
        %v1798 = vpop.permute.xlu0 %1797
        %1801 = vset.pattern.permute.xlu0 0
        %1802 = vperm.xlu0 %1801, %v1776
        %v1803 = vpop.permute.xlu0 %1802
        %1806 = vset.pattern.permute.xlu0 0
        %1807 = vperm.xlu0 %1806, %v1777
        %v1808 = vpop.permute.xlu0 %1807
        %1811 = vset.pattern.permute.xlu0 0
        %1812 = vperm.xlu0 %1811, %v1778
        %v1813 = vpop.permute.xlu0 %1812
        %1816 = vset.pattern.permute.xlu0 0
        %1817 = vperm.xlu0 %1816, %v1779
        %v1818 = vpop.permute.xlu0 %1817
        %1821 = vset.pattern.permute.xlu0 0
        %1822 = vperm.xlu0 %1821, %v1780
        %v1823 = vpop.permute.xlu0 %1822
        %1826 = vset.pattern.permute.xlu0 0
        %1827 = vperm.xlu0 %1826, %v1781
        %v1828 = vpop.permute.xlu0 %1827
        %1831 = vset.pattern.permute.xlu0 0
        %1832 = vperm.xlu0 %1831, %v1782
        %v1833 = vpop.permute.xlu0 %1832
        %1836 = vset.pattern.permute.xlu0 0
        %1837 = vperm.xlu0 %1836, %v1783
        %v1838 = vpop.permute.xlu0 %1837
        %1841 = vset.pattern.permute.xlu0 0
        %1842 = vperm.xlu0 %1841, %v1784
        %v1843 = vpop.permute.xlu0 %1842
        %1846 = vset.pattern.permute.xlu0 0
        %1847 = vperm.xlu0 %1846, %v1785
        %v1848 = vpop.permute.xlu0 %1847
        %1851 = vset.pattern.permute.xlu0 0
        %1852 = vperm.xlu0 %1851, %v1786
        %v1853 = vpop.permute.xlu0 %1852
        %1856 = vset.pattern.permute.xlu0 0
        %1857 = vperm.xlu0 %1856, %v1787
        %v1858 = vpop.permute.xlu0 %1857
        %1861 = vset.pattern.permute.xlu0 0
        %1862 = vperm.xlu0 %1861, %v1788
        %v1863 = vpop.permute.xlu0 %1862
        %1866 = vset.pattern.permute.xlu0 0
        %1867 = vperm.xlu0 %1866, %v1789
        %v1868 = vpop.permute.xlu0 %1867
        %v1870 = vadd.f32 %v1555, %v1793
        %v1871 = vadd.f32 %v1556, %v1798
        %v1872 = vadd.f32 %v1557, %v1803
        %v1873 = vadd.f32 %v1558, %v1808
        %v1874 = vadd.f32 %v1559, %v1813
        %v1875 = vadd.f32 %v1560, %v1818
        %v1876 = vadd.f32 %v1561, %v1823
        %v1877 = vadd.f32 %v1562, %v1828
        %v1878 = vadd.f32 %v1563, %v1833
        %v1879 = vadd.f32 %v1564, %v1838
        %v1880 = vadd.f32 %v1565, %v1843
        %v1881 = vadd.f32 %v1566, %v1848
        %v1882 = vadd.f32 %v1567, %v1853
        %v1883 = vadd.f32 %v1568, %v1858
        %v1884 = vadd.f32 %v1569, %v1863
        %v1885 = vadd.f32 %v1570, %v1868
        %v1886 = vsel %vm758, %v1870, -inf
        %v1887 = vsel %vm758, %v1871, -inf
        %v1888 = vsel %vm758, %v1872, -inf
        %v1889 = vsel %vm758, %v1873, -inf
        %v1890 = vsel %vm758, %v1874, -inf
        %v1891 = vmax.f32 %v1886, %v1890
        %v1892 = vsel %vm758, %v1875, -inf
        %v1893 = vmax.f32 %v1887, %v1892
        %v1894 = vsel %vm758, %v1876, -inf
        %v1895 = vmax.f32 %v1888, %v1894
        %v1896 = vsel %vm758, %v1877, -inf
        %v1897 = vmax.f32 %v1889, %v1896
        %v1898 = vsel %vm758, %v1878, -inf
        %v1899 = vmax.f32 %v1891, %v1898
        %v1900 = vsel %vm758, %v1879, -inf
        %v1901 = vmax.f32 %v1893, %v1900
        %v1902 = vsel %vm758, %v1880, -inf
        %v1903 = vmax.f32 %v1895, %v1902
        %v1904 = vsel %vm758, %v1881, -inf
        %v1905 = vmax.f32 %v1897, %v1904
        %v1906 = vsel %vm758, %v1882, -inf
        %v1907 = vmax.f32 %v1899, %v1906
        %v1908 = vsel %vm758, %v1883, -inf
        %v1909 = vmax.f32 %v1901, %v1908
        %v1910 = vsel %vm758, %v1884, -inf
        %v1911 = vmax.f32 %v1903, %v1910
        %v1912 = vsel %vm758, %v1885, -inf
        %v1913 = vmax.f32 %v1905, %v1912
        %v1914 = vmax.f32 %v1907, %v1909
        %v1915 = vmax.f32 %v1911, %v1913
        %v1916 = vmax.f32 %v1914, %v1915
        %v1917 = vrot.slane %v1916, 4
        %v1918 = vmax.f32 %v1916, %v1917
        %v1919 = vrot.slane %v1918, 2
        %v1920 = vmax.f32 %v1918, %v1919
        %v1921 = vrot.slane %v1920, 1
        %v1922 = vmax.f32 %v1920, %v1921
        %1923 = vset.pattern.permute.xlu0 1
        %1924 = vperm.xlu0 %1923, %v1774
        %v1925 = vpop.permute.xlu0 %1924
        %1927 = vset.pattern.permute.xlu0 1
        %1928 = vperm.xlu0 %1927, %v1775
        %v1929 = vpop.permute.xlu0 %1928
        %1931 = vset.pattern.permute.xlu0 1
        %1932 = vperm.xlu0 %1931, %v1776
        %v1933 = vpop.permute.xlu0 %1932
        %1935 = vset.pattern.permute.xlu0 1
        %1936 = vperm.xlu0 %1935, %v1777
        %v1937 = vpop.permute.xlu0 %1936
        %1939 = vset.pattern.permute.xlu0 1
        %1940 = vperm.xlu0 %1939, %v1778
        %v1941 = vpop.permute.xlu0 %1940
        %1943 = vset.pattern.permute.xlu0 1
        %1944 = vperm.xlu0 %1943, %v1779
        %v1945 = vpop.permute.xlu0 %1944
        %1947 = vset.pattern.permute.xlu0 1
        %1948 = vperm.xlu0 %1947, %v1780
        %v1949 = vpop.permute.xlu0 %1948
        %1951 = vset.pattern.permute.xlu0 1
        %1952 = vperm.xlu0 %1951, %v1781
        %v1953 = vpop.permute.xlu0 %1952
        %1955 = vset.pattern.permute.xlu0 1
        %1956 = vperm.xlu0 %1955, %v1782
        %v1957 = vpop.permute.xlu0 %1956
        %1959 = vset.pattern.permute.xlu0 1
        %1960 = vperm.xlu0 %1959, %v1783
        %v1961 = vpop.permute.xlu0 %1960
        %1963 = vset.pattern.permute.xlu0 1
        %1964 = vperm.xlu0 %1963, %v1784
        %v1965 = vpop.permute.xlu0 %1964
        %1967 = vset.pattern.permute.xlu0 1
        %1968 = vperm.xlu0 %1967, %v1785
        %v1969 = vpop.permute.xlu0 %1968
        %1971 = vset.pattern.permute.xlu0 1
        %1972 = vperm.xlu0 %1971, %v1786
        %v1973 = vpop.permute.xlu0 %1972
        %1975 = vset.pattern.permute.xlu0 1
        %1976 = vperm.xlu0 %1975, %v1787
        %v1977 = vpop.permute.xlu0 %1976
        %1979 = vset.pattern.permute.xlu0 1
        %1980 = vperm.xlu0 %1979, %v1788
        %v1981 = vpop.permute.xlu0 %1980
        %1983 = vset.pattern.permute.xlu0 1
        %1984 = vperm.xlu0 %1983, %v1789
        %v1985 = vpop.permute.xlu0 %1984
        %v1987 = vadd.f32 %v1555, %v1925
        %v1988 = vadd.f32 %v1556, %v1929
        %v1989 = vadd.f32 %v1557, %v1933
        %v1990 = vadd.f32 %v1558, %v1937
        %v1991 = vadd.f32 %v1559, %v1941
        %v1992 = vadd.f32 %v1560, %v1945
        %v1993 = vadd.f32 %v1561, %v1949
        %v1994 = vadd.f32 %v1562, %v1953
        %v1995 = vadd.f32 %v1563, %v1957
        %v1996 = vadd.f32 %v1564, %v1961
        %v1997 = vadd.f32 %v1565, %v1965
        %v1998 = vadd.f32 %v1566, %v1969
        %v1999 = vadd.f32 %v1567, %v1973
        %v2000 = vadd.f32 %v1568, %v1977
        %v2001 = vadd.f32 %v1569, %v1981
        %v2002 = vadd.f32 %v1570, %v1985
        %v2003 = vsel %vm758, %v1987, -inf
        %v2004 = vsel %vm758, %v1988, -inf
        %v2005 = vsel %vm758, %v1989, -inf
        %v2006 = vsel %vm758, %v1990, -inf
        %v2007 = vsel %vm758, %v1991, -inf
        %v2008 = vmax.f32 %v2003, %v2007
        %v2009 = vsel %vm758, %v1992, -inf
        %v2010 = vmax.f32 %v2004, %v2009
        %v2011 = vsel %vm758, %v1993, -inf
        %v2012 = vmax.f32 %v2005, %v2011
        %v2013 = vsel %vm758, %v1994, -inf
        %v2014 = vmax.f32 %v2006, %v2013
        %v2015 = vsel %vm758, %v1995, -inf
        %v2016 = vmax.f32 %v2008, %v2015
        %v2017 = vsel %vm758, %v1996, -inf
        %v2018 = vmax.f32 %v2010, %v2017
        %v2019 = vsel %vm758, %v1997, -inf
        %v2020 = vmax.f32 %v2012, %v2019
        %v2021 = vsel %vm758, %v1998, -inf
        %v2022 = vmax.f32 %v2014, %v2021
        %v2023 = vsel %vm758, %v1999, -inf
        %v2024 = vmax.f32 %v2016, %v2023
        %v2025 = vsel %vm758, %v2000, -inf
        %v2026 = vmax.f32 %v2018, %v2025
        %v2027 = vsel %vm758, %v2001, -inf
        %v2028 = vmax.f32 %v2020, %v2027
        %v2029 = vsel %vm758, %v2002, -inf
        %v2030 = vmax.f32 %v2022, %v2029
        %v2031 = vmax.f32 %v2024, %v2026
        %v2032 = vmax.f32 %v2028, %v2030
        %v2033 = vmax.f32 %v2031, %v2032
        %v2034 = vrot.slane %v2033, 4
        %v2035 = vmax.f32 %v2033, %v2034
        %v2036 = vrot.slane %v2035, 2
        %v2037 = vmax.f32 %v2035, %v2036
        %v2038 = vrot.slane %v2037, 1
        %v2039 = vmax.f32 %v2037, %v2038
        %2040 = vset.pattern.permute.xlu0 2
        %2041 = vperm.xlu0 %2040, %v1774
        %v2042 = vpop.permute.xlu0 %2041
        %2044 = vset.pattern.permute.xlu0 2
        %2045 = vperm.xlu0 %2044, %v1775
        %v2046 = vpop.permute.xlu0 %2045
        %2048 = vset.pattern.permute.xlu0 2
        %2049 = vperm.xlu0 %2048, %v1776
        %v2050 = vpop.permute.xlu0 %2049
        %2052 = vset.pattern.permute.xlu0 2
        %2053 = vperm.xlu0 %2052, %v1777
        %v2054 = vpop.permute.xlu0 %2053
        %2056 = vset.pattern.permute.xlu0 2
        %2057 = vperm.xlu0 %2056, %v1778
        %v2058 = vpop.permute.xlu0 %2057
        %2060 = vset.pattern.permute.xlu0 2
        %2061 = vperm.xlu0 %2060, %v1779
        %v2062 = vpop.permute.xlu0 %2061
        %2064 = vset.pattern.permute.xlu0 2
        %2065 = vperm.xlu0 %2064, %v1780
        %v2066 = vpop.permute.xlu0 %2065
        %2068 = vset.pattern.permute.xlu0 2
        %2069 = vperm.xlu0 %2068, %v1781
        %v2070 = vpop.permute.xlu0 %2069
        %2072 = vset.pattern.permute.xlu0 2
        %2073 = vperm.xlu0 %2072, %v1782
        %v2074 = vpop.permute.xlu0 %2073
        %2076 = vset.pattern.permute.xlu0 2
        %2077 = vperm.xlu0 %2076, %v1783
        %v2078 = vpop.permute.xlu0 %2077
        %2080 = vset.pattern.permute.xlu0 2
        %2081 = vperm.xlu0 %2080, %v1784
        %v2082 = vpop.permute.xlu0 %2081
        %2084 = vset.pattern.permute.xlu0 2
        %2085 = vperm.xlu0 %2084, %v1785
        %v2086 = vpop.permute.xlu0 %2085
        %2088 = vset.pattern.permute.xlu0 2
        %2089 = vperm.xlu0 %2088, %v1786
        %v2090 = vpop.permute.xlu0 %2089
        %2092 = vset.pattern.permute.xlu0 2
        %2093 = vperm.xlu0 %2092, %v1787
        %v2094 = vpop.permute.xlu0 %2093
        %2096 = vset.pattern.permute.xlu0 2
        %2097 = vperm.xlu0 %2096, %v1788
        %v2098 = vpop.permute.xlu0 %2097
        %2100 = vset.pattern.permute.xlu0 2
        %2101 = vperm.xlu0 %2100, %v1789
        %v2102 = vpop.permute.xlu0 %2101
        %v2104 = vadd.f32 %v1555, %v2042
        %v2105 = vadd.f32 %v1556, %v2046
        %v2106 = vadd.f32 %v1557, %v2050
        %v2107 = vadd.f32 %v1558, %v2054
        %v2108 = vadd.f32 %v1559, %v2058
        %v2109 = vadd.f32 %v1560, %v2062
        %v2110 = vadd.f32 %v1561, %v2066
        %v2111 = vadd.f32 %v1562, %v2070
        %v2112 = vadd.f32 %v1563, %v2074
        %v2113 = vadd.f32 %v1564, %v2078
        %v2114 = vadd.f32 %v1565, %v2082
        %v2115 = vadd.f32 %v1566, %v2086
        %v2116 = vadd.f32 %v1567, %v2090
        %v2117 = vadd.f32 %v1568, %v2094
        %v2118 = vadd.f32 %v1569, %v2098
        %v2119 = vadd.f32 %v1570, %v2102
        %v2120 = vsel %vm758, %v2104, -inf
        %v2121 = vsel %vm758, %v2105, -inf
        %v2122 = vsel %vm758, %v2106, -inf
        %v2123 = vsel %vm758, %v2107, -inf
        %v2124 = vsel %vm758, %v2108, -inf
        %v2125 = vmax.f32 %v2120, %v2124
        %v2126 = vsel %vm758, %v2109, -inf
        %v2127 = vmax.f32 %v2121, %v2126
        %v2128 = vsel %vm758, %v2110, -inf
        %v2129 = vmax.f32 %v2122, %v2128
        %v2130 = vsel %vm758, %v2111, -inf
        %v2131 = vmax.f32 %v2123, %v2130
        %v2132 = vsel %vm758, %v2112, -inf
        %v2133 = vmax.f32 %v2125, %v2132
        %v2134 = vsel %vm758, %v2113, -inf
        %v2135 = vmax.f32 %v2127, %v2134
        %v2136 = vsel %vm758, %v2114, -inf
        %v2137 = vmax.f32 %v2129, %v2136
        %v2138 = vsel %vm758, %v2115, -inf
        %v2139 = vmax.f32 %v2131, %v2138
        %v2140 = vsel %vm758, %v2116, -inf
        %v2141 = vmax.f32 %v2133, %v2140
        %v2142 = vsel %vm758, %v2117, -inf
        %v2143 = vmax.f32 %v2135, %v2142
        %v2144 = vsel %vm758, %v2118, -inf
        %v2145 = vmax.f32 %v2137, %v2144
        %v2146 = vsel %vm758, %v2119, -inf
        %v2147 = vmax.f32 %v2139, %v2146
        %v2148 = vmax.f32 %v2141, %v2143
        %v2149 = vmax.f32 %v2145, %v2147
        %v2150 = vmax.f32 %v2148, %v2149
        %v2151 = vrot.slane %v2150, 4
        %v2152 = vmax.f32 %v2150, %v2151
        %v2153 = vrot.slane %v2152, 2
        %v2154 = vmax.f32 %v2152, %v2153
        %v2155 = vrot.slane %v2154, 1
        %v2156 = vmax.f32 %v2154, %v2155
        %2157 = vset.pattern.permute.xlu0 3
        %2158 = vperm.xlu0 %2157, %v1774
        %v2159 = vpop.permute.xlu0 %2158
        %2161 = vset.pattern.permute.xlu0 3
        %2162 = vperm.xlu0 %2161, %v1775
        %v2163 = vpop.permute.xlu0 %2162
        %2165 = vset.pattern.permute.xlu0 3
        %2166 = vperm.xlu0 %2165, %v1776
        %v2167 = vpop.permute.xlu0 %2166
        %2169 = vset.pattern.permute.xlu0 3
        %2170 = vperm.xlu0 %2169, %v1777
        %v2171 = vpop.permute.xlu0 %2170
        %2173 = vset.pattern.permute.xlu0 3
        %2174 = vperm.xlu0 %2173, %v1778
        %v2175 = vpop.permute.xlu0 %2174
        %2177 = vset.pattern.permute.xlu0 3
        %2178 = vperm.xlu0 %2177, %v1779
        %v2179 = vpop.permute.xlu0 %2178
        %2181 = vset.pattern.permute.xlu0 3
        %2182 = vperm.xlu0 %2181, %v1780
        %v2183 = vpop.permute.xlu0 %2182
        %2185 = vset.pattern.permute.xlu0 3
        %2186 = vperm.xlu0 %2185, %v1781
        %v2187 = vpop.permute.xlu0 %2186
        %2189 = vset.pattern.permute.xlu0 3
        %2190 = vperm.xlu0 %2189, %v1782
        %v2191 = vpop.permute.xlu0 %2190
        %2193 = vset.pattern.permute.xlu0 3
        %2194 = vperm.xlu0 %2193, %v1783
        %v2195 = vpop.permute.xlu0 %2194
        %2197 = vset.pattern.permute.xlu0 3
        %2198 = vperm.xlu0 %2197, %v1784
        %v2199 = vpop.permute.xlu0 %2198
        %2201 = vset.pattern.permute.xlu0 3
        %2202 = vperm.xlu0 %2201, %v1785
        %v2203 = vpop.permute.xlu0 %2202
        %2205 = vset.pattern.permute.xlu0 3
        %2206 = vperm.xlu0 %2205, %v1786
        %v2207 = vpop.permute.xlu0 %2206
        %2209 = vset.pattern.permute.xlu0 3
        %2210 = vperm.xlu0 %2209, %v1787
        %v2211 = vpop.permute.xlu0 %2210
        %2213 = vset.pattern.permute.xlu0 3
        %2214 = vperm.xlu0 %2213, %v1788
        %v2215 = vpop.permute.xlu0 %2214
        %2217 = vset.pattern.permute.xlu0 3
        %2218 = vperm.xlu0 %2217, %v1789
        %v2219 = vpop.permute.xlu0 %2218
        %v2221 = vadd.f32 %v1555, %v2159
        %v2222 = vadd.f32 %v1556, %v2163
        %v2223 = vadd.f32 %v1557, %v2167
        %v2224 = vadd.f32 %v1558, %v2171
        %v2225 = vadd.f32 %v1559, %v2175
        %v2226 = vadd.f32 %v1560, %v2179
        %v2227 = vadd.f32 %v1561, %v2183
        %v2228 = vadd.f32 %v1562, %v2187
        %v2229 = vadd.f32 %v1563, %v2191
        %v2230 = vadd.f32 %v1564, %v2195
        %v2231 = vadd.f32 %v1565, %v2199
        %v2232 = vadd.f32 %v1566, %v2203
        %v2233 = vadd.f32 %v1567, %v2207
        %v2234 = vadd.f32 %v1568, %v2211
        %v2235 = vadd.f32 %v1569, %v2215
        %v2236 = vadd.f32 %v1570, %v2219
        %v2237 = vsel %vm758, %v2221, -inf
        %v2238 = vsel %vm758, %v2222, -inf
        %v2239 = vsel %vm758, %v2223, -inf
        %v2240 = vsel %vm758, %v2224, -inf
        %v2241 = vsel %vm758, %v2225, -inf
        %v2242 = vmax.f32 %v2237, %v2241
        %v2243 = vsel %vm758, %v2226, -inf
        %v2244 = vmax.f32 %v2238, %v2243
        %v2245 = vsel %vm758, %v2227, -inf
        %v2246 = vmax.f32 %v2239, %v2245
        %v2247 = vsel %vm758, %v2228, -inf
        %v2248 = vmax.f32 %v2240, %v2247
        %v2249 = vsel %vm758, %v2229, -inf
        %v2250 = vmax.f32 %v2242, %v2249
        %v2251 = vsel %vm758, %v2230, -inf
        %v2252 = vmax.f32 %v2244, %v2251
        %v2253 = vsel %vm758, %v2231, -inf
        %v2254 = vmax.f32 %v2246, %v2253
        %v2255 = vsel %vm758, %v2232, -inf
        %v2256 = vmax.f32 %v2248, %v2255
        %v2257 = vsel %vm758, %v2233, -inf
        %v2258 = vmax.f32 %v2250, %v2257
        %v2259 = vsel %vm758, %v2234, -inf
        %v2260 = vmax.f32 %v2252, %v2259
        %v2261 = vsel %vm758, %v2235, -inf
        %v2262 = vmax.f32 %v2254, %v2261
        %v2263 = vsel %vm758, %v2236, -inf
        %v2264 = vmax.f32 %v2256, %v2263
        %v2265 = vmax.f32 %v2258, %v2260
        %v2266 = vmax.f32 %v2262, %v2264
        %v2267 = vmax.f32 %v2265, %v2266
        %v2268 = vrot.slane %v2267, 4
        %v2269 = vmax.f32 %v2267, %v2268
        %v2270 = vrot.slane %v2269, 2
        %v2271 = vmax.f32 %v2269, %v2270
        %v2272 = vrot.slane %v2271, 1
        %v2273 = vmax.f32 %v2271, %v2272
        %2274 = vset.pattern.permute.xlu0 4
        %2275 = vperm.xlu0 %2274, %v1774
        %v2276 = vpop.permute.xlu0 %2275
        %2278 = vset.pattern.permute.xlu0 4
        %2279 = vperm.xlu0 %2278, %v1775
        %v2280 = vpop.permute.xlu0 %2279
        %2282 = vset.pattern.permute.xlu0 4
        %2283 = vperm.xlu0 %2282, %v1776
        %v2284 = vpop.permute.xlu0 %2283
        %2286 = vset.pattern.permute.xlu0 4
        %2287 = vperm.xlu0 %2286, %v1777
        %v2288 = vpop.permute.xlu0 %2287
        %2290 = vset.pattern.permute.xlu0 4
        %2291 = vperm.xlu0 %2290, %v1778
        %v2292 = vpop.permute.xlu0 %2291
        %2294 = vset.pattern.permute.xlu0 4
        %2295 = vperm.xlu0 %2294, %v1779
        %v2296 = vpop.permute.xlu0 %2295
        %2298 = vset.pattern.permute.xlu0 4
        %2299 = vperm.xlu0 %2298, %v1780
        %v2300 = vpop.permute.xlu0 %2299
        %2302 = vset.pattern.permute.xlu0 4
        %2303 = vperm.xlu0 %2302, %v1781
        %v2304 = vpop.permute.xlu0 %2303
        %2306 = vset.pattern.permute.xlu0 4
        %2307 = vperm.xlu0 %2306, %v1782
        %v2308 = vpop.permute.xlu0 %2307
        %2310 = vset.pattern.permute.xlu0 4
        %2311 = vperm.xlu0 %2310, %v1783
        %v2312 = vpop.permute.xlu0 %2311
        %2314 = vset.pattern.permute.xlu0 4
        %2315 = vperm.xlu0 %2314, %v1784
        %v2316 = vpop.permute.xlu0 %2315
        %2318 = vset.pattern.permute.xlu0 4
        %2319 = vperm.xlu0 %2318, %v1785
        %v2320 = vpop.permute.xlu0 %2319
        %2322 = vset.pattern.permute.xlu0 4
        %2323 = vperm.xlu0 %2322, %v1786
        %v2324 = vpop.permute.xlu0 %2323
        %2326 = vset.pattern.permute.xlu0 4
        %2327 = vperm.xlu0 %2326, %v1787
        %v2328 = vpop.permute.xlu0 %2327
        %2330 = vset.pattern.permute.xlu0 4
        %2331 = vperm.xlu0 %2330, %v1788
        %v2332 = vpop.permute.xlu0 %2331
        %2334 = vset.pattern.permute.xlu0 4
        %2335 = vperm.xlu0 %2334, %v1789
        %v2336 = vpop.permute.xlu0 %2335
        %v2338 = vadd.f32 %v1555, %v2276
        %v2339 = vadd.f32 %v1556, %v2280
        %v2340 = vadd.f32 %v1557, %v2284
        %v2341 = vadd.f32 %v1558, %v2288
        %v2342 = vadd.f32 %v1559, %v2292
        %v2343 = vadd.f32 %v1560, %v2296
        %v2344 = vadd.f32 %v1561, %v2300
        %v2345 = vadd.f32 %v1562, %v2304
        %v2346 = vadd.f32 %v1563, %v2308
        %v2347 = vadd.f32 %v1564, %v2312
        %v2348 = vadd.f32 %v1565, %v2316
        %v2349 = vadd.f32 %v1566, %v2320
        %v2350 = vadd.f32 %v1567, %v2324
        %v2351 = vadd.f32 %v1568, %v2328
        %v2352 = vadd.f32 %v1569, %v2332
        %v2353 = vadd.f32 %v1570, %v2336
        %v2354 = vsel %vm758, %v2338, -inf
        %v2355 = vsel %vm758, %v2339, -inf
        %v2356 = vsel %vm758, %v2340, -inf
        %v2357 = vsel %vm758, %v2341, -inf
        %v2358 = vsel %vm758, %v2342, -inf
        %v2359 = vmax.f32 %v2354, %v2358
        %v2360 = vsel %vm758, %v2343, -inf
        %v2361 = vmax.f32 %v2355, %v2360
        %v2362 = vsel %vm758, %v2344, -inf
        %v2363 = vmax.f32 %v2356, %v2362
        %v2364 = vsel %vm758, %v2345, -inf
        %v2365 = vmax.f32 %v2357, %v2364
        %v2366 = vsel %vm758, %v2346, -inf
        %v2367 = vmax.f32 %v2359, %v2366
        %v2368 = vsel %vm758, %v2347, -inf
        %v2369 = vmax.f32 %v2361, %v2368
        %v2370 = vsel %vm758, %v2348, -inf
        %v2371 = vmax.f32 %v2363, %v2370
        %v2372 = vsel %vm758, %v2349, -inf
        %v2373 = vmax.f32 %v2365, %v2372
        %v2374 = vsel %vm758, %v2350, -inf
        %v2375 = vmax.f32 %v2367, %v2374
        %v2376 = vsel %vm758, %v2351, -inf
        %v2377 = vmax.f32 %v2369, %v2376
        %v2378 = vsel %vm758, %v2352, -inf
        %v2379 = vmax.f32 %v2371, %v2378
        %v2380 = vsel %vm758, %v2353, -inf
        %v2381 = vmax.f32 %v2373, %v2380
        %v2382 = vmax.f32 %v2375, %v2377
        %v2383 = vmax.f32 %v2379, %v2381
        %v2384 = vmax.f32 %v2382, %v2383
        %v2385 = vrot.slane %v2384, 4
        %v2386 = vmax.f32 %v2384, %v2385
        %v2387 = vrot.slane %v2386, 2
        %v2388 = vmax.f32 %v2386, %v2387
        %v2389 = vrot.slane %v2388, 1
        %v2390 = vmax.f32 %v2388, %v2389
        %2391 = vset.pattern.permute.xlu0 5
        %2392 = vperm.xlu0 %2391, %v1774
        %v2393 = vpop.permute.xlu0 %2392
        %2395 = vset.pattern.permute.xlu0 5
        %2396 = vperm.xlu0 %2395, %v1775
        %v2397 = vpop.permute.xlu0 %2396
        %2399 = vset.pattern.permute.xlu0 5
        %2400 = vperm.xlu0 %2399, %v1776
        %v2401 = vpop.permute.xlu0 %2400
        %2403 = vset.pattern.permute.xlu0 5
        %2404 = vperm.xlu0 %2403, %v1777
        %v2405 = vpop.permute.xlu0 %2404
        %2407 = vset.pattern.permute.xlu0 5
        %2408 = vperm.xlu0 %2407, %v1778
        %v2409 = vpop.permute.xlu0 %2408
        %2411 = vset.pattern.permute.xlu0 5
        %2412 = vperm.xlu0 %2411, %v1779
        %v2413 = vpop.permute.xlu0 %2412
        %2415 = vset.pattern.permute.xlu0 5
        %2416 = vperm.xlu0 %2415, %v1780
        %v2417 = vpop.permute.xlu0 %2416
        %2419 = vset.pattern.permute.xlu0 5
        %2420 = vperm.xlu0 %2419, %v1781
        %v2421 = vpop.permute.xlu0 %2420
        %2423 = vset.pattern.permute.xlu0 5
        %2424 = vperm.xlu0 %2423, %v1782
        %v2425 = vpop.permute.xlu0 %2424
        %2427 = vset.pattern.permute.xlu0 5
        %2428 = vperm.xlu0 %2427, %v1783
        %v2429 = vpop.permute.xlu0 %2428
        %2431 = vset.pattern.permute.xlu0 5
        %2432 = vperm.xlu0 %2431, %v1784
        %v2433 = vpop.permute.xlu0 %2432
        %2435 = vset.pattern.permute.xlu0 5
        %2436 = vperm.xlu0 %2435, %v1785
        %v2437 = vpop.permute.xlu0 %2436
        %2439 = vset.pattern.permute.xlu0 5
        %2440 = vperm.xlu0 %2439, %v1786
        %v2441 = vpop.permute.xlu0 %2440
        %2443 = vset.pattern.permute.xlu0 5
        %2444 = vperm.xlu0 %2443, %v1787
        %v2445 = vpop.permute.xlu0 %2444
        %2447 = vset.pattern.permute.xlu0 5
        %2448 = vperm.xlu0 %2447, %v1788
        %v2449 = vpop.permute.xlu0 %2448
        %2451 = vset.pattern.permute.xlu0 5
        %2452 = vperm.xlu0 %2451, %v1789
        %v2453 = vpop.permute.xlu0 %2452
        %v2455 = vadd.f32 %v1555, %v2393
        %v2456 = vadd.f32 %v1556, %v2397
        %v2457 = vadd.f32 %v1557, %v2401
        %v2458 = vadd.f32 %v1558, %v2405
        %v2459 = vadd.f32 %v1559, %v2409
        %v2460 = vadd.f32 %v1560, %v2413
        %v2461 = vadd.f32 %v1561, %v2417
        %v2462 = vadd.f32 %v1562, %v2421
        %v2463 = vadd.f32 %v1563, %v2425
        %v2464 = vadd.f32 %v1564, %v2429
        %v2465 = vadd.f32 %v1565, %v2433
        %v2466 = vadd.f32 %v1566, %v2437
        %v2467 = vadd.f32 %v1567, %v2441
        %v2468 = vadd.f32 %v1568, %v2445
        %v2469 = vadd.f32 %v1569, %v2449
        %v2470 = vadd.f32 %v1570, %v2453
        %v2471 = vsel %vm758, %v2455, -inf
        %v2472 = vsel %vm758, %v2456, -inf
        %v2473 = vsel %vm758, %v2457, -inf
        %v2474 = vsel %vm758, %v2458, -inf
        %v2475 = vsel %vm758, %v2459, -inf
        %v2476 = vmax.f32 %v2471, %v2475
        %v2477 = vsel %vm758, %v2460, -inf
        %v2478 = vmax.f32 %v2472, %v2477
        %v2479 = vsel %vm758, %v2461, -inf
        %v2480 = vmax.f32 %v2473, %v2479
        %v2481 = vsel %vm758, %v2462, -inf
        %v2482 = vmax.f32 %v2474, %v2481
        %v2483 = vsel %vm758, %v2463, -inf
        %v2484 = vmax.f32 %v2476, %v2483
        %v2485 = vsel %vm758, %v2464, -inf
        %v2486 = vmax.f32 %v2478, %v2485
        %v2487 = vsel %vm758, %v2465, -inf
        %v2488 = vmax.f32 %v2480, %v2487
        %v2489 = vsel %vm758, %v2466, -inf
        %v2490 = vmax.f32 %v2482, %v2489
        %v2491 = vsel %vm758, %v2467, -inf
        %v2492 = vmax.f32 %v2484, %v2491
        %v2493 = vsel %vm758, %v2468, -inf
        %v2494 = vmax.f32 %v2486, %v2493
        %v2495 = vsel %vm758, %v2469, -inf
        %v2496 = vmax.f32 %v2488, %v2495
        %v2497 = vsel %vm758, %v2470, -inf
        %v2498 = vmax.f32 %v2490, %v2497
        %v2499 = vmax.f32 %v2492, %v2494
        %v2500 = vmax.f32 %v2496, %v2498
        %v2501 = vmax.f32 %v2499, %v2500
        %v2502 = vrot.slane %v2501, 4
        %v2503 = vmax.f32 %v2501, %v2502
        %v2504 = vrot.slane %v2503, 2
        %v2505 = vmax.f32 %v2503, %v2504
        %v2506 = vrot.slane %v2505, 1
        %v2507 = vmax.f32 %v2505, %v2506
        %2508 = vset.pattern.permute.xlu0 6
        %2509 = vperm.xlu0 %2508, %v1774
        %v2510 = vpop.permute.xlu0 %2509
        %2512 = vset.pattern.permute.xlu0 6
        %2513 = vperm.xlu0 %2512, %v1775
        %v2514 = vpop.permute.xlu0 %2513
        %2516 = vset.pattern.permute.xlu0 6
        %2517 = vperm.xlu0 %2516, %v1776
        %v2518 = vpop.permute.xlu0 %2517
        %2520 = vset.pattern.permute.xlu0 6
        %2521 = vperm.xlu0 %2520, %v1777
        %v2522 = vpop.permute.xlu0 %2521
        %2524 = vset.pattern.permute.xlu0 6
        %2525 = vperm.xlu0 %2524, %v1778
        %v2526 = vpop.permute.xlu0 %2525
        %2528 = vset.pattern.permute.xlu0 6
        %2529 = vperm.xlu0 %2528, %v1779
        %v2530 = vpop.permute.xlu0 %2529
        %2532 = vset.pattern.permute.xlu0 6
        %2533 = vperm.xlu0 %2532, %v1780
        %v2534 = vpop.permute.xlu0 %2533
        %2536 = vset.pattern.permute.xlu0 6
        %2537 = vperm.xlu0 %2536, %v1781
        %v2538 = vpop.permute.xlu0 %2537
        %2540 = vset.pattern.permute.xlu0 6
        %2541 = vperm.xlu0 %2540, %v1782
        %v2542 = vpop.permute.xlu0 %2541
        %2544 = vset.pattern.permute.xlu0 6
        %2545 = vperm.xlu0 %2544, %v1783
        %v2546 = vpop.permute.xlu0 %2545
        %2548 = vset.pattern.permute.xlu0 6
        %2549 = vperm.xlu0 %2548, %v1784
        %v2550 = vpop.permute.xlu0 %2549
        %2552 = vset.pattern.permute.xlu0 6
        %2553 = vperm.xlu0 %2552, %v1785
        %v2554 = vpop.permute.xlu0 %2553
        %2556 = vset.pattern.permute.xlu0 6
        %2557 = vperm.xlu0 %2556, %v1786
        %v2558 = vpop.permute.xlu0 %2557
        %2560 = vset.pattern.permute.xlu0 6
        %2561 = vperm.xlu0 %2560, %v1787
        %v2562 = vpop.permute.xlu0 %2561
        %2564 = vset.pattern.permute.xlu0 6
        %2565 = vperm.xlu0 %2564, %v1788
        %v2566 = vpop.permute.xlu0 %2565
        %2568 = vset.pattern.permute.xlu0 6
        %2569 = vperm.xlu0 %2568, %v1789
        %v2570 = vpop.permute.xlu0 %2569
        %v2572 = vadd.f32 %v1555, %v2510
        %v2573 = vadd.f32 %v1556, %v2514
        %v2574 = vadd.f32 %v1557, %v2518
        %v2575 = vadd.f32 %v1558, %v2522
        %v2576 = vadd.f32 %v1559, %v2526
        %v2577 = vadd.f32 %v1560, %v2530
        %v2578 = vadd.f32 %v1561, %v2534
        %v2579 = vadd.f32 %v1562, %v2538
        %v2580 = vadd.f32 %v1563, %v2542
        %v2581 = vadd.f32 %v1564, %v2546
        %v2582 = vadd.f32 %v1565, %v2550
        %v2583 = vadd.f32 %v1566, %v2554
        %v2584 = vadd.f32 %v1567, %v2558
        %v2585 = vadd.f32 %v1568, %v2562
        %v2586 = vadd.f32 %v1569, %v2566
        %v2587 = vadd.f32 %v1570, %v2570
        %v2588 = vsel %vm758, %v2572, -inf
        %v2589 = vsel %vm758, %v2573, -inf
        %v2590 = vsel %vm758, %v2574, -inf
        %v2591 = vsel %vm758, %v2575, -inf
        %v2592 = vsel %vm758, %v2576, -inf
        %v2593 = vmax.f32 %v2588, %v2592
        %v2594 = vsel %vm758, %v2577, -inf
        %v2595 = vmax.f32 %v2589, %v2594
        %v2596 = vsel %vm758, %v2578, -inf
        %v2597 = vmax.f32 %v2590, %v2596
        %v2598 = vsel %vm758, %v2579, -inf
        %v2599 = vmax.f32 %v2591, %v2598
        %v2600 = vsel %vm758, %v2580, -inf
        %v2601 = vmax.f32 %v2593, %v2600
        %v2602 = vsel %vm758, %v2581, -inf
        %v2603 = vmax.f32 %v2595, %v2602
        %v2604 = vsel %vm758, %v2582, -inf
        %v2605 = vmax.f32 %v2597, %v2604
        %v2606 = vsel %vm758, %v2583, -inf
        %v2607 = vmax.f32 %v2599, %v2606
        %v2608 = vsel %vm758, %v2584, -inf
        %v2609 = vmax.f32 %v2601, %v2608
        %v2610 = vsel %vm758, %v2585, -inf
        %v2611 = vmax.f32 %v2603, %v2610
        %v2612 = vsel %vm758, %v2586, -inf
        %v2613 = vmax.f32 %v2605, %v2612
        %v2614 = vsel %vm758, %v2587, -inf
        %v2615 = vmax.f32 %v2607, %v2614
        %v2616 = vmax.f32 %v2609, %v2611
        %v2617 = vmax.f32 %v2613, %v2615
        %v2618 = vmax.f32 %v2616, %v2617
        %v2619 = vrot.slane %v2618, 4
        %v2620 = vmax.f32 %v2618, %v2619
        %v2621 = vrot.slane %v2620, 2
        %v2622 = vmax.f32 %v2620, %v2621
        %v2623 = vrot.slane %v2622, 1
        %v2624 = vmax.f32 %v2622, %v2623
        %2625 = vset.pattern.permute.xlu0 7
        %2626 = vperm.xlu0 %2625, %v1774
        %v2627 = vpop.permute.xlu0 %2626
        %2629 = vset.pattern.permute.xlu0 7
        %2630 = vperm.xlu0 %2629, %v1775
        %v2631 = vpop.permute.xlu0 %2630
        %2633 = vset.pattern.permute.xlu0 7
        %2634 = vperm.xlu0 %2633, %v1776
        %v2635 = vpop.permute.xlu0 %2634
        %2637 = vset.pattern.permute.xlu0 7
        %2638 = vperm.xlu0 %2637, %v1777
        %v2639 = vpop.permute.xlu0 %2638
        %2641 = vset.pattern.permute.xlu0 7
        %2642 = vperm.xlu0 %2641, %v1778
        %v2643 = vpop.permute.xlu0 %2642
        %2645 = vset.pattern.permute.xlu0 7
        %2646 = vperm.xlu0 %2645, %v1779
        %v2647 = vpop.permute.xlu0 %2646
        %2649 = vset.pattern.permute.xlu0 7
        %2650 = vperm.xlu0 %2649, %v1780
        %v2651 = vpop.permute.xlu0 %2650
        %2653 = vset.pattern.permute.xlu0 7
        %2654 = vperm.xlu0 %2653, %v1781
        %v2655 = vpop.permute.xlu0 %2654
        %2657 = vset.pattern.permute.xlu0 7
        %2658 = vperm.xlu0 %2657, %v1782
        %v2659 = vpop.permute.xlu0 %2658
        %2661 = vset.pattern.permute.xlu0 7
        %2662 = vperm.xlu0 %2661, %v1783
        %v2663 = vpop.permute.xlu0 %2662
        %2665 = vset.pattern.permute.xlu0 7
        %2666 = vperm.xlu0 %2665, %v1784
        %v2667 = vpop.permute.xlu0 %2666
        %2669 = vset.pattern.permute.xlu0 7
        %2670 = vperm.xlu0 %2669, %v1785
        %v2671 = vpop.permute.xlu0 %2670
        %2673 = vset.pattern.permute.xlu0 7
        %2674 = vperm.xlu0 %2673, %v1786
        %v2675 = vpop.permute.xlu0 %2674
        %2677 = vset.pattern.permute.xlu0 7
        %2678 = vperm.xlu0 %2677, %v1787
        %v2679 = vpop.permute.xlu0 %2678
        %2681 = vset.pattern.permute.xlu0 7
        %2682 = vperm.xlu0 %2681, %v1788
        %v2683 = vpop.permute.xlu0 %2682
        %2685 = vset.pattern.permute.xlu0 7
        %2686 = vperm.xlu0 %2685, %v1789
        %v2687 = vpop.permute.xlu0 %2686
        %v2689 = vadd.f32 %v1555, %v2627
        %v2690 = vadd.f32 %v1556, %v2631
        %v2691 = vadd.f32 %v1557, %v2635
        %v2692 = vadd.f32 %v1558, %v2639
        %v2693 = vadd.f32 %v1559, %v2643
        %v2694 = vadd.f32 %v1560, %v2647
        %v2695 = vadd.f32 %v1561, %v2651
        %v2696 = vadd.f32 %v1562, %v2655
        %v2697 = vadd.f32 %v1563, %v2659
        %v2698 = vadd.f32 %v1564, %v2663
        %v2699 = vadd.f32 %v1565, %v2667
        %v2700 = vadd.f32 %v1566, %v2671
        %v2701 = vadd.f32 %v1567, %v2675
        %v2702 = vadd.f32 %v1568, %v2679
        %v2703 = vadd.f32 %v1569, %v2683
        %v2704 = vadd.f32 %v1570, %v2687
        %v2705 = vsel %vm758, %v2689, -inf
        %v2706 = vsel %vm758, %v2690, -inf
        %v2707 = vsel %vm758, %v2691, -inf
        %v2708 = vsel %vm758, %v2692, -inf
        %v2709 = vsel %vm758, %v2693, -inf
        %v2710 = vmax.f32 %v2705, %v2709
        %v2711 = vsel %vm758, %v2694, -inf
        %v2712 = vmax.f32 %v2706, %v2711
        %v2713 = vsel %vm758, %v2695, -inf
        %v2714 = vmax.f32 %v2707, %v2713
        %v2715 = vsel %vm758, %v2696, -inf
        %v2716 = vmax.f32 %v2708, %v2715
        %v2717 = vsel %vm758, %v2697, -inf
        %v2718 = vmax.f32 %v2710, %v2717
        %v2719 = vsel %vm758, %v2698, -inf
        %v2720 = vmax.f32 %v2712, %v2719
        %v2721 = vsel %vm758, %v2699, -inf
        %v2722 = vmax.f32 %v2714, %v2721
        %v2723 = vsel %vm758, %v2700, -inf
        %v2724 = vmax.f32 %v2716, %v2723
        %v2725 = vsel %vm758, %v2701, -inf
        %v2726 = vmax.f32 %v2718, %v2725
        %v2727 = vsel %vm758, %v2702, -inf
        %v2728 = vmax.f32 %v2720, %v2727
        %v2729 = vsel %vm758, %v2703, -inf
        %v2730 = vmax.f32 %v2722, %v2729
        %v2731 = vsel %vm758, %v2704, -inf
        %v2732 = vmax.f32 %v2724, %v2731
        %v2733 = vmax.f32 %v2726, %v2728
        %v2734 = vmax.f32 %v2730, %v2732
        %v2735 = vmax.f32 %v2733, %v2734
        %v2736 = vrot.slane %v2735, 4
        %v2737 = vmax.f32 %v2735, %v2736
        %v2738 = vrot.slane %v2737, 2
        %v2739 = vmax.f32 %v2737, %v2738
        %v2740 = vrot.slane %v2739, 1
        %v2741 = vmax.f32 %v2739, %v2740
        %2742 = vset.pattern.permute.xlu0 8
        %2743 = vperm.xlu0 %2742, %v1774
        %v2744 = vpop.permute.xlu0 %2743
        %2746 = vset.pattern.permute.xlu0 8
        %2747 = vperm.xlu0 %2746, %v1775
        %v2748 = vpop.permute.xlu0 %2747
        %2750 = vset.pattern.permute.xlu0 8
        %2751 = vperm.xlu0 %2750, %v1776
        %v2752 = vpop.permute.xlu0 %2751
        %2754 = vset.pattern.permute.xlu0 8
        %2755 = vperm.xlu0 %2754, %v1777
        %v2756 = vpop.permute.xlu0 %2755
        %2758 = vset.pattern.permute.xlu0 8
        %2759 = vperm.xlu0 %2758, %v1778
        %v2760 = vpop.permute.xlu0 %2759
        %2762 = vset.pattern.permute.xlu0 8
        %2763 = vperm.xlu0 %2762, %v1779
        %v2764 = vpop.permute.xlu0 %2763
        %2766 = vset.pattern.permute.xlu0 8
        %2767 = vperm.xlu0 %2766, %v1780
        %v2768 = vpop.permute.xlu0 %2767
        %2770 = vset.pattern.permute.xlu0 8
        %2771 = vperm.xlu0 %2770, %v1781
        %v2772 = vpop.permute.xlu0 %2771
        %2774 = vset.pattern.permute.xlu0 8
        %2775 = vperm.xlu0 %2774, %v1782
        %v2776 = vpop.permute.xlu0 %2775
        %2778 = vset.pattern.permute.xlu0 8
        %2779 = vperm.xlu0 %2778, %v1783
        %v2780 = vpop.permute.xlu0 %2779
        %2782 = vset.pattern.permute.xlu0 8
        %2783 = vperm.xlu0 %2782, %v1784
        %v2784 = vpop.permute.xlu0 %2783
        %2786 = vset.pattern.permute.xlu0 8
        %2787 = vperm.xlu0 %2786, %v1785
        %v2788 = vpop.permute.xlu0 %2787
        %2790 = vset.pattern.permute.xlu0 8
        %2791 = vperm.xlu0 %2790, %v1786
        %v2792 = vpop.permute.xlu0 %2791
        %2794 = vset.pattern.permute.xlu0 8
        %2795 = vperm.xlu0 %2794, %v1787
        %v2796 = vpop.permute.xlu0 %2795
        %2798 = vset.pattern.permute.xlu0 8
        %2799 = vperm.xlu0 %2798, %v1788
        %v2800 = vpop.permute.xlu0 %2799
        %2802 = vset.pattern.permute.xlu0 8
        %2803 = vperm.xlu0 %2802, %v1789
        %v2804 = vpop.permute.xlu0 %2803
        %v2806 = vadd.f32 %v1555, %v2744
        %v2807 = vadd.f32 %v1556, %v2748
        %v2808 = vadd.f32 %v1557, %v2752
        %v2809 = vadd.f32 %v1558, %v2756
        %v2810 = vadd.f32 %v1559, %v2760
        %v2811 = vadd.f32 %v1560, %v2764
        %v2812 = vadd.f32 %v1561, %v2768
        %v2813 = vadd.f32 %v1562, %v2772
        %v2814 = vadd.f32 %v1563, %v2776
        %v2815 = vadd.f32 %v1564, %v2780
        %v2816 = vadd.f32 %v1565, %v2784
        %v2817 = vadd.f32 %v1566, %v2788
        %v2818 = vadd.f32 %v1567, %v2792
        %v2819 = vadd.f32 %v1568, %v2796
        %v2820 = vadd.f32 %v1569, %v2800
        %v2821 = vadd.f32 %v1570, %v2804
        %v2822 = vsel %vm758, %v2806, -inf
        %v2823 = vsel %vm758, %v2807, -inf
        %v2824 = vsel %vm758, %v2808, -inf
        %v2825 = vsel %vm758, %v2809, -inf
        %v2826 = vsel %vm758, %v2810, -inf
        %v2827 = vmax.f32 %v2822, %v2826
        %v2828 = vsel %vm758, %v2811, -inf
        %v2829 = vmax.f32 %v2823, %v2828
        %v2830 = vsel %vm758, %v2812, -inf
        %v2831 = vmax.f32 %v2824, %v2830
        %v2832 = vsel %vm758, %v2813, -inf
        %v2833 = vmax.f32 %v2825, %v2832
        %v2834 = vsel %vm758, %v2814, -inf
        %v2835 = vmax.f32 %v2827, %v2834
        %v2836 = vsel %vm758, %v2815, -inf
        %v2837 = vmax.f32 %v2829, %v2836
        %v2838 = vsel %vm758, %v2816, -inf
        %v2839 = vmax.f32 %v2831, %v2838
        %v2840 = vsel %vm758, %v2817, -inf
        %v2841 = vmax.f32 %v2833, %v2840
        %v2842 = vsel %vm758, %v2818, -inf
        %v2843 = vmax.f32 %v2835, %v2842
        %v2844 = vsel %vm758, %v2819, -inf
        %v2845 = vmax.f32 %v2837, %v2844
        %v2846 = vsel %vm758, %v2820, -inf
        %v2847 = vmax.f32 %v2839, %v2846
        %v2848 = vsel %vm758, %v2821, -inf
        %v2849 = vmax.f32 %v2841, %v2848
        %v2850 = vmax.f32 %v2843, %v2845
        %v2851 = vmax.f32 %v2847, %v2849
        %v2852 = vmax.f32 %v2850, %v2851
        %v2853 = vrot.slane %v2852, 4
        %v2854 = vmax.f32 %v2852, %v2853
        %v2855 = vrot.slane %v2854, 2
        %v2856 = vmax.f32 %v2854, %v2855
        %v2857 = vrot.slane %v2856, 1
        %v2858 = vmax.f32 %v2856, %v2857
        %2859 = vset.pattern.permute.xlu0 9
        %2860 = vperm.xlu0 %2859, %v1774
        %v2861 = vpop.permute.xlu0 %2860
        %2863 = vset.pattern.permute.xlu0 9
        %2864 = vperm.xlu0 %2863, %v1775
        %v2865 = vpop.permute.xlu0 %2864
        %2867 = vset.pattern.permute.xlu0 9
        %2868 = vperm.xlu0 %2867, %v1776
        %v2869 = vpop.permute.xlu0 %2868
        %2871 = vset.pattern.permute.xlu0 9
        %2872 = vperm.xlu0 %2871, %v1777
        %v2873 = vpop.permute.xlu0 %2872
        %2875 = vset.pattern.permute.xlu0 9
        %2876 = vperm.xlu0 %2875, %v1778
        %v2877 = vpop.permute.xlu0 %2876
        %2879 = vset.pattern.permute.xlu0 9
        %2880 = vperm.xlu0 %2879, %v1779
        %v2881 = vpop.permute.xlu0 %2880
        %2883 = vset.pattern.permute.xlu0 9
        %2884 = vperm.xlu0 %2883, %v1780
        %v2885 = vpop.permute.xlu0 %2884
        %2887 = vset.pattern.permute.xlu0 9
        %2888 = vperm.xlu0 %2887, %v1781
        %v2889 = vpop.permute.xlu0 %2888
        %2891 = vset.pattern.permute.xlu0 9
        %2892 = vperm.xlu0 %2891, %v1782
        %v2893 = vpop.permute.xlu0 %2892
        %2895 = vset.pattern.permute.xlu0 9
        %2896 = vperm.xlu0 %2895, %v1783
        %v2897 = vpop.permute.xlu0 %2896
        %2899 = vset.pattern.permute.xlu0 9
        %2900 = vperm.xlu0 %2899, %v1784
        %v2901 = vpop.permute.xlu0 %2900
        %2903 = vset.pattern.permute.xlu0 9
        %2904 = vperm.xlu0 %2903, %v1785
        %v2905 = vpop.permute.xlu0 %2904
        %2907 = vset.pattern.permute.xlu0 9
        %2908 = vperm.xlu0 %2907, %v1786
        %v2909 = vpop.permute.xlu0 %2908
        %2911 = vset.pattern.permute.xlu0 9
        %2912 = vperm.xlu0 %2911, %v1787
        %v2913 = vpop.permute.xlu0 %2912
        %2915 = vset.pattern.permute.xlu0 9
        %2916 = vperm.xlu0 %2915, %v1788
        %v2917 = vpop.permute.xlu0 %2916
        %2919 = vset.pattern.permute.xlu0 9
        %2920 = vperm.xlu0 %2919, %v1789
        %v2921 = vpop.permute.xlu0 %2920
        %v2923 = vadd.f32 %v1555, %v2861
        %v2924 = vadd.f32 %v1556, %v2865
        %v2925 = vadd.f32 %v1557, %v2869
        %v2926 = vadd.f32 %v1558, %v2873
        %v2927 = vadd.f32 %v1559, %v2877
        %v2928 = vadd.f32 %v1560, %v2881
        %v2929 = vadd.f32 %v1561, %v2885
        %v2930 = vadd.f32 %v1562, %v2889
        %v2931 = vadd.f32 %v1563, %v2893
        %v2932 = vadd.f32 %v1564, %v2897
        %v2933 = vadd.f32 %v1565, %v2901
        %v2934 = vadd.f32 %v1566, %v2905
        %v2935 = vadd.f32 %v1567, %v2909
        %v2936 = vadd.f32 %v1568, %v2913
        %v2937 = vadd.f32 %v1569, %v2917
        %v2938 = vadd.f32 %v1570, %v2921
        %v2939 = vsel %vm758, %v2923, -inf
        %v2940 = vsel %vm758, %v2924, -inf
        %v2941 = vsel %vm758, %v2925, -inf
        %v2942 = vsel %vm758, %v2926, -inf
        %v2943 = vsel %vm758, %v2927, -inf
        %v2944 = vmax.f32 %v2939, %v2943
        %v2945 = vsel %vm758, %v2928, -inf
        %v2946 = vmax.f32 %v2940, %v2945
        %v2947 = vsel %vm758, %v2929, -inf
        %v2948 = vmax.f32 %v2941, %v2947
        %v2949 = vsel %vm758, %v2930, -inf
        %v2950 = vmax.f32 %v2942, %v2949
        %v2951 = vsel %vm758, %v2931, -inf
        %v2952 = vmax.f32 %v2944, %v2951
        %v2953 = vsel %vm758, %v2932, -inf
        %v2954 = vmax.f32 %v2946, %v2953
        %v2955 = vsel %vm758, %v2933, -inf
        %v2956 = vmax.f32 %v2948, %v2955
        %v2957 = vsel %vm758, %v2934, -inf
        %v2958 = vmax.f32 %v2950, %v2957
        %v2959 = vsel %vm758, %v2935, -inf
        %v2960 = vmax.f32 %v2952, %v2959
        %v2961 = vsel %vm758, %v2936, -inf
        %v2962 = vmax.f32 %v2954, %v2961
        %v2963 = vsel %vm758, %v2937, -inf
        %v2964 = vmax.f32 %v2956, %v2963
        %v2965 = vsel %vm758, %v2938, -inf
        %v2966 = vmax.f32 %v2958, %v2965
        %v2967 = vmax.f32 %v2960, %v2962
        %v2968 = vmax.f32 %v2964, %v2966
        %v2969 = vmax.f32 %v2967, %v2968
        %v2970 = vrot.slane %v2969, 4
        %v2971 = vmax.f32 %v2969, %v2970
        %v2972 = vrot.slane %v2971, 2
        %v2973 = vmax.f32 %v2971, %v2972
        %v2974 = vrot.slane %v2973, 1
        %v2975 = vmax.f32 %v2973, %v2974
        %2976 = vset.pattern.permute.xlu0 10
        %2977 = vperm.xlu0 %2976, %v1774
        %v2978 = vpop.permute.xlu0 %2977
        %2980 = vset.pattern.permute.xlu0 10
        %2981 = vperm.xlu0 %2980, %v1775
        %v2982 = vpop.permute.xlu0 %2981
        %2984 = vset.pattern.permute.xlu0 10
        %2985 = vperm.xlu0 %2984, %v1776
        %v2986 = vpop.permute.xlu0 %2985
        %2988 = vset.pattern.permute.xlu0 10
        %2989 = vperm.xlu0 %2988, %v1777
        %v2990 = vpop.permute.xlu0 %2989
        %2992 = vset.pattern.permute.xlu0 10
        %2993 = vperm.xlu0 %2992, %v1778
        %v2994 = vpop.permute.xlu0 %2993
        %2996 = vset.pattern.permute.xlu0 10
        %2997 = vperm.xlu0 %2996, %v1779
        %v2998 = vpop.permute.xlu0 %2997
        %3000 = vset.pattern.permute.xlu0 10
        %3001 = vperm.xlu0 %3000, %v1780
        %v3002 = vpop.permute.xlu0 %3001
        %3004 = vset.pattern.permute.xlu0 10
        %3005 = vperm.xlu0 %3004, %v1781
        %v3006 = vpop.permute.xlu0 %3005
        %3008 = vset.pattern.permute.xlu0 10
        %3009 = vperm.xlu0 %3008, %v1782
        %v3010 = vpop.permute.xlu0 %3009
        %3012 = vset.pattern.permute.xlu0 10
        %3013 = vperm.xlu0 %3012, %v1783
        %v3014 = vpop.permute.xlu0 %3013
        %3016 = vset.pattern.permute.xlu0 10
        %3017 = vperm.xlu0 %3016, %v1784
        %v3018 = vpop.permute.xlu0 %3017
        %3020 = vset.pattern.permute.xlu0 10
        %3021 = vperm.xlu0 %3020, %v1785
        %v3022 = vpop.permute.xlu0 %3021
        %3024 = vset.pattern.permute.xlu0 10
        %3025 = vperm.xlu0 %3024, %v1786
        %v3026 = vpop.permute.xlu0 %3025
        %3028 = vset.pattern.permute.xlu0 10
        %3029 = vperm.xlu0 %3028, %v1787
        %v3030 = vpop.permute.xlu0 %3029
        %3032 = vset.pattern.permute.xlu0 10
        %3033 = vperm.xlu0 %3032, %v1788
        %v3034 = vpop.permute.xlu0 %3033
        %3036 = vset.pattern.permute.xlu0 10
        %3037 = vperm.xlu0 %3036, %v1789
        %v3038 = vpop.permute.xlu0 %3037
        %v3040 = vadd.f32 %v1555, %v2978
        %v3041 = vadd.f32 %v1556, %v2982
        %v3042 = vadd.f32 %v1557, %v2986
        %v3043 = vadd.f32 %v1558, %v2990
        %v3044 = vadd.f32 %v1559, %v2994
        %v3045 = vadd.f32 %v1560, %v2998
        %v3046 = vadd.f32 %v1561, %v3002
        %v3047 = vadd.f32 %v1562, %v3006
        %v3048 = vadd.f32 %v1563, %v3010
        %v3049 = vadd.f32 %v1564, %v3014
        %v3050 = vadd.f32 %v1565, %v3018
        %v3051 = vadd.f32 %v1566, %v3022
        %v3052 = vadd.f32 %v1567, %v3026
        %v3053 = vadd.f32 %v1568, %v3030
        %v3054 = vadd.f32 %v1569, %v3034
        %v3055 = vadd.f32 %v1570, %v3038
        %v3056 = vsel %vm758, %v3040, -inf
        %v3057 = vsel %vm758, %v3041, -inf
        %v3058 = vsel %vm758, %v3042, -inf
        %v3059 = vsel %vm758, %v3043, -inf
        %v3060 = vsel %vm758, %v3044, -inf
        %v3061 = vmax.f32 %v3056, %v3060
        %v3062 = vsel %vm758, %v3045, -inf
        %v3063 = vmax.f32 %v3057, %v3062
        %v3064 = vsel %vm758, %v3046, -inf
        %v3065 = vmax.f32 %v3058, %v3064
        %v3066 = vsel %vm758, %v3047, -inf
        %v3067 = vmax.f32 %v3059, %v3066
        %v3068 = vsel %vm758, %v3048, -inf
        %v3069 = vmax.f32 %v3061, %v3068
        %v3070 = vsel %vm758, %v3049, -inf
        %v3071 = vmax.f32 %v3063, %v3070
        %v3072 = vsel %vm758, %v3050, -inf
        %v3073 = vmax.f32 %v3065, %v3072
        %v3074 = vsel %vm758, %v3051, -inf
        %v3075 = vmax.f32 %v3067, %v3074
        %v3076 = vsel %vm758, %v3052, -inf
        %v3077 = vmax.f32 %v3069, %v3076
        %v3078 = vsel %vm758, %v3053, -inf
        %v3079 = vmax.f32 %v3071, %v3078
        %v3080 = vsel %vm758, %v3054, -inf
        %v3081 = vmax.f32 %v3073, %v3080
        %v3082 = vsel %vm758, %v3055, -inf
        %v3083 = vmax.f32 %v3075, %v3082
        %v3084 = vmax.f32 %v3077, %v3079
        %v3085 = vmax.f32 %v3081, %v3083
        %v3086 = vmax.f32 %v3084, %v3085
        %v3087 = vrot.slane %v3086, 4
        %v3088 = vmax.f32 %v3086, %v3087
        %v3089 = vrot.slane %v3088, 2
        %v3090 = vmax.f32 %v3088, %v3089
        %v3091 = vrot.slane %v3090, 1
        %v3092 = vmax.f32 %v3090, %v3091
        %3093 = vset.pattern.permute.xlu0 11
        %3094 = vperm.xlu0 %3093, %v1774
        %v3095 = vpop.permute.xlu0 %3094
        %3097 = vset.pattern.permute.xlu0 11
        %3098 = vperm.xlu0 %3097, %v1775
        %v3099 = vpop.permute.xlu0 %3098
        %3101 = vset.pattern.permute.xlu0 11
        %3102 = vperm.xlu0 %3101, %v1776
        %v3103 = vpop.permute.xlu0 %3102
        %3105 = vset.pattern.permute.xlu0 11
        %3106 = vperm.xlu0 %3105, %v1777
        %v3107 = vpop.permute.xlu0 %3106
        %3109 = vset.pattern.permute.xlu0 11
        %3110 = vperm.xlu0 %3109, %v1778
        %v3111 = vpop.permute.xlu0 %3110
        %3113 = vset.pattern.permute.xlu0 11
        %3114 = vperm.xlu0 %3113, %v1779
        %v3115 = vpop.permute.xlu0 %3114
        %3117 = vset.pattern.permute.xlu0 11
        %3118 = vperm.xlu0 %3117, %v1780
        %v3119 = vpop.permute.xlu0 %3118
        %3121 = vset.pattern.permute.xlu0 11
        %3122 = vperm.xlu0 %3121, %v1781
        %v3123 = vpop.permute.xlu0 %3122
        %3125 = vset.pattern.permute.xlu0 11
        %3126 = vperm.xlu0 %3125, %v1782
        %v3127 = vpop.permute.xlu0 %3126
        %3129 = vset.pattern.permute.xlu0 11
        %3130 = vperm.xlu0 %3129, %v1783
        %v3131 = vpop.permute.xlu0 %3130
        %3133 = vset.pattern.permute.xlu0 11
        %3134 = vperm.xlu0 %3133, %v1784
        %v3135 = vpop.permute.xlu0 %3134
        %3137 = vset.pattern.permute.xlu0 11
        %3138 = vperm.xlu0 %3137, %v1785
        %v3139 = vpop.permute.xlu0 %3138
        %3141 = vset.pattern.permute.xlu0 11
        %3142 = vperm.xlu0 %3141, %v1786
        %v3143 = vpop.permute.xlu0 %3142
        %3145 = vset.pattern.permute.xlu0 11
        %3146 = vperm.xlu0 %3145, %v1787
        %v3147 = vpop.permute.xlu0 %3146
        %3149 = vset.pattern.permute.xlu0 11
        %3150 = vperm.xlu0 %3149, %v1788
        %v3151 = vpop.permute.xlu0 %3150
        %3153 = vset.pattern.permute.xlu0 11
        %3154 = vperm.xlu0 %3153, %v1789
        %v3155 = vpop.permute.xlu0 %3154
        %v3157 = vadd.f32 %v1555, %v3095
        %v3158 = vadd.f32 %v1556, %v3099
        %v3159 = vadd.f32 %v1557, %v3103
        %v3160 = vadd.f32 %v1558, %v3107
        %v3161 = vadd.f32 %v1559, %v3111
        %v3162 = vadd.f32 %v1560, %v3115
        %v3163 = vadd.f32 %v1561, %v3119
        %v3164 = vadd.f32 %v1562, %v3123
        %v3165 = vadd.f32 %v1563, %v3127
        %v3166 = vadd.f32 %v1564, %v3131
        %v3167 = vadd.f32 %v1565, %v3135
        %v3168 = vadd.f32 %v1566, %v3139
        %v3169 = vadd.f32 %v1567, %v3143
        %v3170 = vadd.f32 %v1568, %v3147
        %v3171 = vadd.f32 %v1569, %v3151
        %v3172 = vadd.f32 %v1570, %v3155
        %v3173 = vsel %vm758, %v3157, -inf
        %v3174 = vsel %vm758, %v3158, -inf
        %v3175 = vsel %vm758, %v3159, -inf
        %v3176 = vsel %vm758, %v3160, -inf
        %v3177 = vsel %vm758, %v3161, -inf
        %v3178 = vmax.f32 %v3173, %v3177
        %v3179 = vsel %vm758, %v3162, -inf
        %v3180 = vmax.f32 %v3174, %v3179
        %v3181 = vsel %vm758, %v3163, -inf
        %v3182 = vmax.f32 %v3175, %v3181
        %v3183 = vsel %vm758, %v3164, -inf
        %v3184 = vmax.f32 %v3176, %v3183
        %v3185 = vsel %vm758, %v3165, -inf
        %v3186 = vmax.f32 %v3178, %v3185
        %v3187 = vsel %vm758, %v3166, -inf
        %v3188 = vmax.f32 %v3180, %v3187
        %v3189 = vsel %vm758, %v3167, -inf
        %v3190 = vmax.f32 %v3182, %v3189
        %v3191 = vsel %vm758, %v3168, -inf
        %v3192 = vmax.f32 %v3184, %v3191
        %v3193 = vsel %vm758, %v3169, -inf
        %v3194 = vmax.f32 %v3186, %v3193
        %v3195 = vsel %vm758, %v3170, -inf
        %v3196 = vmax.f32 %v3188, %v3195
        %v3197 = vsel %vm758, %v3171, -inf
        %v3198 = vmax.f32 %v3190, %v3197
        %v3199 = vsel %vm758, %v3172, -inf
        %v3200 = vmax.f32 %v3192, %v3199
        %v3201 = vmax.f32 %v3194, %v3196
        %v3202 = vmax.f32 %v3198, %v3200
        %v3203 = vmax.f32 %v3201, %v3202
        %v3204 = vrot.slane %v3203, 4
        %v3205 = vmax.f32 %v3203, %v3204
        %v3206 = vrot.slane %v3205, 2
        %v3207 = vmax.f32 %v3205, %v3206
        %v3208 = vrot.slane %v3207, 1
        %v3209 = vmax.f32 %v3207, %v3208
        %3210 = vset.pattern.permute.xlu0 12
        %3211 = vperm.xlu0 %3210, %v1774
        %v3212 = vpop.permute.xlu0 %3211
        %3214 = vset.pattern.permute.xlu0 12
        %3215 = vperm.xlu0 %3214, %v1775
        %v3216 = vpop.permute.xlu0 %3215
        %3218 = vset.pattern.permute.xlu0 12
        %3219 = vperm.xlu0 %3218, %v1776
        %v3220 = vpop.permute.xlu0 %3219
        %3222 = vset.pattern.permute.xlu0 12
        %3223 = vperm.xlu0 %3222, %v1777
        %v3224 = vpop.permute.xlu0 %3223
        %3226 = vset.pattern.permute.xlu0 12
        %3227 = vperm.xlu0 %3226, %v1778
        %v3228 = vpop.permute.xlu0 %3227
        %3230 = vset.pattern.permute.xlu0 12
        %3231 = vperm.xlu0 %3230, %v1779
        %v3232 = vpop.permute.xlu0 %3231
        %3234 = vset.pattern.permute.xlu0 12
        %3235 = vperm.xlu0 %3234, %v1780
        %v3236 = vpop.permute.xlu0 %3235
        %3238 = vset.pattern.permute.xlu0 12
        %3239 = vperm.xlu0 %3238, %v1781
        %v3240 = vpop.permute.xlu0 %3239
        %3242 = vset.pattern.permute.xlu0 12
        %3243 = vperm.xlu0 %3242, %v1782
        %v3244 = vpop.permute.xlu0 %3243
        %3246 = vset.pattern.permute.xlu0 12
        %3247 = vperm.xlu0 %3246, %v1783
        %v3248 = vpop.permute.xlu0 %3247
        %3250 = vset.pattern.permute.xlu0 12
        %3251 = vperm.xlu0 %3250, %v1784
        %v3252 = vpop.permute.xlu0 %3251
        %3254 = vset.pattern.permute.xlu0 12
        %3255 = vperm.xlu0 %3254, %v1785
        %v3256 = vpop.permute.xlu0 %3255
        %3258 = vset.pattern.permute.xlu0 12
        %3259 = vperm.xlu0 %3258, %v1786
        %v3260 = vpop.permute.xlu0 %3259
        %3262 = vset.pattern.permute.xlu0 12
        %3263 = vperm.xlu0 %3262, %v1787
        %v3264 = vpop.permute.xlu0 %3263
        %3266 = vset.pattern.permute.xlu0 12
        %3267 = vperm.xlu0 %3266, %v1788
        %v3268 = vpop.permute.xlu0 %3267
        %3270 = vset.pattern.permute.xlu0 12
        %3271 = vperm.xlu0 %3270, %v1789
        %v3272 = vpop.permute.xlu0 %3271
        %v3274 = vadd.f32 %v1555, %v3212
        %v3275 = vadd.f32 %v1556, %v3216
        %v3276 = vadd.f32 %v1557, %v3220
        %v3277 = vadd.f32 %v1558, %v3224
        %v3278 = vadd.f32 %v1559, %v3228
        %v3279 = vadd.f32 %v1560, %v3232
        %v3280 = vadd.f32 %v1561, %v3236
        %v3281 = vadd.f32 %v1562, %v3240
        %v3282 = vadd.f32 %v1563, %v3244
        %v3283 = vadd.f32 %v1564, %v3248
        %v3284 = vadd.f32 %v1565, %v3252
        %v3285 = vadd.f32 %v1566, %v3256
        %v3286 = vadd.f32 %v1567, %v3260
        %v3287 = vadd.f32 %v1568, %v3264
        %v3288 = vadd.f32 %v1569, %v3268
        %v3289 = vadd.f32 %v1570, %v3272
        %v3290 = vsel %vm758, %v3274, -inf
        %v3291 = vsel %vm758, %v3275, -inf
        %v3292 = vsel %vm758, %v3276, -inf
        %v3293 = vsel %vm758, %v3277, -inf
        %v3294 = vsel %vm758, %v3278, -inf
        %v3295 = vmax.f32 %v3290, %v3294
        %v3296 = vsel %vm758, %v3279, -inf
        %v3297 = vmax.f32 %v3291, %v3296
        %v3298 = vsel %vm758, %v3280, -inf
        %v3299 = vmax.f32 %v3292, %v3298
        %v3300 = vsel %vm758, %v3281, -inf
        %v3301 = vmax.f32 %v3293, %v3300
        %v3302 = vsel %vm758, %v3282, -inf
        %v3303 = vmax.f32 %v3295, %v3302
        %v3304 = vsel %vm758, %v3283, -inf
        %v3305 = vmax.f32 %v3297, %v3304
        %v3306 = vsel %vm758, %v3284, -inf
        %v3307 = vmax.f32 %v3299, %v3306
        %v3308 = vsel %vm758, %v3285, -inf
        %v3309 = vmax.f32 %v3301, %v3308
        %v3310 = vsel %vm758, %v3286, -inf
        %v3311 = vmax.f32 %v3303, %v3310
        %v3312 = vsel %vm758, %v3287, -inf
        %v3313 = vmax.f32 %v3305, %v3312
        %v3314 = vsel %vm758, %v3288, -inf
        %v3315 = vmax.f32 %v3307, %v3314
        %v3316 = vsel %vm758, %v3289, -inf
        %v3317 = vmax.f32 %v3309, %v3316
        %v3318 = vmax.f32 %v3311, %v3313
        %v3319 = vmax.f32 %v3315, %v3317
        %v3320 = vmax.f32 %v3318, %v3319
        %v3321 = vrot.slane %v3320, 4
        %v3322 = vmax.f32 %v3320, %v3321
        %v3323 = vrot.slane %v3322, 2
        %v3324 = vmax.f32 %v3322, %v3323
        %v3325 = vrot.slane %v3324, 1
        %v3326 = vmax.f32 %v3324, %v3325
        %3327 = vset.pattern.permute.xlu0 13
        %3328 = vperm.xlu0 %3327, %v1774
        %v3329 = vpop.permute.xlu0 %3328
        %3331 = vset.pattern.permute.xlu0 13
        %3332 = vperm.xlu0 %3331, %v1775
        %v3333 = vpop.permute.xlu0 %3332
        %3335 = vset.pattern.permute.xlu0 13
        %3336 = vperm.xlu0 %3335, %v1776
        %v3337 = vpop.permute.xlu0 %3336
        %3339 = vset.pattern.permute.xlu0 13
        %3340 = vperm.xlu0 %3339, %v1777
        %v3341 = vpop.permute.xlu0 %3340
        %3343 = vset.pattern.permute.xlu0 13
        %3344 = vperm.xlu0 %3343, %v1778
        %v3345 = vpop.permute.xlu0 %3344
        %3347 = vset.pattern.permute.xlu0 13
        %3348 = vperm.xlu0 %3347, %v1779
        %v3349 = vpop.permute.xlu0 %3348
        %3351 = vset.pattern.permute.xlu0 13
        %3352 = vperm.xlu0 %3351, %v1780
        %v3353 = vpop.permute.xlu0 %3352
        %3355 = vset.pattern.permute.xlu0 13
        %3356 = vperm.xlu0 %3355, %v1781
        %v3357 = vpop.permute.xlu0 %3356
        %3359 = vset.pattern.permute.xlu0 13
        %3360 = vperm.xlu0 %3359, %v1782
        %v3361 = vpop.permute.xlu0 %3360
        %3363 = vset.pattern.permute.xlu0 13
        %3364 = vperm.xlu0 %3363, %v1783
        %v3365 = vpop.permute.xlu0 %3364
        %3367 = vset.pattern.permute.xlu0 13
        %3368 = vperm.xlu0 %3367, %v1784
        %v3369 = vpop.permute.xlu0 %3368
        %3371 = vset.pattern.permute.xlu0 13
        %3372 = vperm.xlu0 %3371, %v1785
        %v3373 = vpop.permute.xlu0 %3372
        %3375 = vset.pattern.permute.xlu0 13
        %3376 = vperm.xlu0 %3375, %v1786
        %v3377 = vpop.permute.xlu0 %3376
        %3379 = vset.pattern.permute.xlu0 13
        %3380 = vperm.xlu0 %3379, %v1787
        %v3381 = vpop.permute.xlu0 %3380
        %3383 = vset.pattern.permute.xlu0 13
        %3384 = vperm.xlu0 %3383, %v1788
        %v3385 = vpop.permute.xlu0 %3384
        %3387 = vset.pattern.permute.xlu0 13
        %3388 = vperm.xlu0 %3387, %v1789
        %v3389 = vpop.permute.xlu0 %3388
        %v3391 = vadd.f32 %v1555, %v3329
        %v3392 = vadd.f32 %v1556, %v3333
        %v3393 = vadd.f32 %v1557, %v3337
        %v3394 = vadd.f32 %v1558, %v3341
        %v3395 = vadd.f32 %v1559, %v3345
        %v3396 = vadd.f32 %v1560, %v3349
        %v3397 = vadd.f32 %v1561, %v3353
        %v3398 = vadd.f32 %v1562, %v3357
        %v3399 = vadd.f32 %v1563, %v3361
        %v3400 = vadd.f32 %v1564, %v3365
        %v3401 = vadd.f32 %v1565, %v3369
        %v3402 = vadd.f32 %v1566, %v3373
        %v3403 = vadd.f32 %v1567, %v3377
        %v3404 = vadd.f32 %v1568, %v3381
        %v3405 = vadd.f32 %v1569, %v3385
        %v3406 = vadd.f32 %v1570, %v3389
        %v3407 = vsel %vm758, %v3391, -inf
        %v3408 = vsel %vm758, %v3392, -inf
        %v3409 = vsel %vm758, %v3393, -inf
        %v3410 = vsel %vm758, %v3394, -inf
        %v3411 = vsel %vm758, %v3395, -inf
        %v3412 = vmax.f32 %v3407, %v3411
        %v3413 = vsel %vm758, %v3396, -inf
        %v3414 = vmax.f32 %v3408, %v3413
        %v3415 = vsel %vm758, %v3397, -inf
        %v3416 = vmax.f32 %v3409, %v3415
        %v3417 = vsel %vm758, %v3398, -inf
        %v3418 = vmax.f32 %v3410, %v3417
        %v3419 = vsel %vm758, %v3399, -inf
        %v3420 = vmax.f32 %v3412, %v3419
        %v3421 = vsel %vm758, %v3400, -inf
        %v3422 = vmax.f32 %v3414, %v3421
        %v3423 = vsel %vm758, %v3401, -inf
        %v3424 = vmax.f32 %v3416, %v3423
        %v3425 = vsel %vm758, %v3402, -inf
        %v3426 = vmax.f32 %v3418, %v3425
        %v3427 = vsel %vm758, %v3403, -inf
        %v3428 = vmax.f32 %v3420, %v3427
        %v3429 = vsel %vm758, %v3404, -inf
        %v3430 = vmax.f32 %v3422, %v3429
        %v3431 = vsel %vm758, %v3405, -inf
        %v3432 = vmax.f32 %v3424, %v3431
        %v3433 = vsel %vm758, %v3406, -inf
        %v3434 = vmax.f32 %v3426, %v3433
        %v3435 = vmax.f32 %v3428, %v3430
        %v3436 = vmax.f32 %v3432, %v3434
        %v3437 = vmax.f32 %v3435, %v3436
        %v3438 = vrot.slane %v3437, 4
        %v3439 = vmax.f32 %v3437, %v3438
        %v3440 = vrot.slane %v3439, 2
        %v3441 = vmax.f32 %v3439, %v3440
        %v3442 = vrot.slane %v3441, 1
        %v3443 = vmax.f32 %v3441, %v3442
        %3444 = vset.pattern.permute.xlu0 14
        %3445 = vperm.xlu0 %3444, %v1774
        %v3446 = vpop.permute.xlu0 %3445
        %3448 = vset.pattern.permute.xlu0 14
        %3449 = vperm.xlu0 %3448, %v1775
        %v3450 = vpop.permute.xlu0 %3449
        %3452 = vset.pattern.permute.xlu0 14
        %3453 = vperm.xlu0 %3452, %v1776
        %v3454 = vpop.permute.xlu0 %3453
        %3456 = vset.pattern.permute.xlu0 14
        %3457 = vperm.xlu0 %3456, %v1777
        %v3458 = vpop.permute.xlu0 %3457
        %3460 = vset.pattern.permute.xlu0 14
        %3461 = vperm.xlu0 %3460, %v1778
        %v3462 = vpop.permute.xlu0 %3461
        %3464 = vset.pattern.permute.xlu0 14
        %3465 = vperm.xlu0 %3464, %v1779
        %v3466 = vpop.permute.xlu0 %3465
        %3468 = vset.pattern.permute.xlu0 14
        %3469 = vperm.xlu0 %3468, %v1780
        %v3470 = vpop.permute.xlu0 %3469
        %3472 = vset.pattern.permute.xlu0 14
        %3473 = vperm.xlu0 %3472, %v1781
        %v3474 = vpop.permute.xlu0 %3473
        %3476 = vset.pattern.permute.xlu0 14
        %3477 = vperm.xlu0 %3476, %v1782
        %v3478 = vpop.permute.xlu0 %3477
        %3480 = vset.pattern.permute.xlu0 14
        %3481 = vperm.xlu0 %3480, %v1783
        %v3482 = vpop.permute.xlu0 %3481
        %3484 = vset.pattern.permute.xlu0 14
        %3485 = vperm.xlu0 %3484, %v1784
        %v3486 = vpop.permute.xlu0 %3485
        %3488 = vset.pattern.permute.xlu0 14
        %3489 = vperm.xlu0 %3488, %v1785
        %v3490 = vpop.permute.xlu0 %3489
        %3492 = vset.pattern.permute.xlu0 14
        %3493 = vperm.xlu0 %3492, %v1786
        %v3494 = vpop.permute.xlu0 %3493
        %3496 = vset.pattern.permute.xlu0 14
        %3497 = vperm.xlu0 %3496, %v1787
        %v3498 = vpop.permute.xlu0 %3497
        %3500 = vset.pattern.permute.xlu0 14
        %3501 = vperm.xlu0 %3500, %v1788
        %v3502 = vpop.permute.xlu0 %3501
        %3504 = vset.pattern.permute.xlu0 14
        %3505 = vperm.xlu0 %3504, %v1789
        %v3506 = vpop.permute.xlu0 %3505
        %v3508 = vadd.f32 %v1555, %v3446
        %v3509 = vadd.f32 %v1556, %v3450
        %v3510 = vadd.f32 %v1557, %v3454
        %v3511 = vadd.f32 %v1558, %v3458
        %v3512 = vadd.f32 %v1559, %v3462
        %v3513 = vadd.f32 %v1560, %v3466
        %v3514 = vadd.f32 %v1561, %v3470
        %v3515 = vadd.f32 %v1562, %v3474
        %v3516 = vadd.f32 %v1563, %v3478
        %v3517 = vadd.f32 %v1564, %v3482
        %v3518 = vadd.f32 %v1565, %v3486
        %v3519 = vadd.f32 %v1566, %v3490
        %v3520 = vadd.f32 %v1567, %v3494
        %v3521 = vadd.f32 %v1568, %v3498
        %v3522 = vadd.f32 %v1569, %v3502
        %v3523 = vadd.f32 %v1570, %v3506
        %v3524 = vsel %vm758, %v3508, -inf
        %v3525 = vsel %vm758, %v3509, -inf
        %v3526 = vsel %vm758, %v3510, -inf
        %v3527 = vsel %vm758, %v3511, -inf
        %v3528 = vsel %vm758, %v3512, -inf
        %v3529 = vmax.f32 %v3524, %v3528
        %v3530 = vsel %vm758, %v3513, -inf
        %v3531 = vmax.f32 %v3525, %v3530
        %v3532 = vsel %vm758, %v3514, -inf
        %v3533 = vmax.f32 %v3526, %v3532
        %v3534 = vsel %vm758, %v3515, -inf
        %v3535 = vmax.f32 %v3527, %v3534
        %v3536 = vsel %vm758, %v3516, -inf
        %v3537 = vmax.f32 %v3529, %v3536
        %v3538 = vsel %vm758, %v3517, -inf
        %v3539 = vmax.f32 %v3531, %v3538
        %v3540 = vsel %vm758, %v3518, -inf
        %v3541 = vmax.f32 %v3533, %v3540
        %v3542 = vsel %vm758, %v3519, -inf
        %v3543 = vmax.f32 %v3535, %v3542
        %v3544 = vsel %vm758, %v3520, -inf
        %v3545 = vmax.f32 %v3537, %v3544
        %v3546 = vsel %vm758, %v3521, -inf
        %v3547 = vmax.f32 %v3539, %v3546
        %v3548 = vsel %vm758, %v3522, -inf
        %v3549 = vmax.f32 %v3541, %v3548
        %v3550 = vsel %vm758, %v3523, -inf
        %v3551 = vmax.f32 %v3543, %v3550
        %v3552 = vmax.f32 %v3545, %v3547
        %v3553 = vmax.f32 %v3549, %v3551
        %v3554 = vmax.f32 %v3552, %v3553
        %v3555 = vrot.slane %v3554, 4
        %v3556 = vmax.f32 %v3554, %v3555
        %v3557 = vrot.slane %v3556, 2
        %v3558 = vmax.f32 %v3556, %v3557
        %v3559 = vrot.slane %v3558, 1
        %v3560 = vmax.f32 %v3558, %v3559
        %3561 = vset.pattern.permute.xlu0 15
        %3562 = vperm.xlu0 %3561, %v1774
        %v3563 = vpop.permute.xlu0 %3562
        %3565 = vset.pattern.permute.xlu0 15
        %3566 = vperm.xlu0 %3565, %v1775
        %v3567 = vpop.permute.xlu0 %3566
        %3569 = vset.pattern.permute.xlu0 15
        %3570 = vperm.xlu0 %3569, %v1776
        %v3571 = vpop.permute.xlu0 %3570
        %3573 = vset.pattern.permute.xlu0 15
        %3574 = vperm.xlu0 %3573, %v1777
        %v3575 = vpop.permute.xlu0 %3574
        %3577 = vset.pattern.permute.xlu0 15
        %3578 = vperm.xlu0 %3577, %v1778
        %v3579 = vpop.permute.xlu0 %3578
        %3581 = vset.pattern.permute.xlu0 15
        %3582 = vperm.xlu0 %3581, %v1779
        %v3583 = vpop.permute.xlu0 %3582
        %3585 = vset.pattern.permute.xlu0 15
        %3586 = vperm.xlu0 %3585, %v1780
        %v3587 = vpop.permute.xlu0 %3586
        %3589 = vset.pattern.permute.xlu0 15
        %3590 = vperm.xlu0 %3589, %v1781
        %v3591 = vpop.permute.xlu0 %3590
        %3593 = vset.pattern.permute.xlu0 15
        %3594 = vperm.xlu0 %3593, %v1782
        %v3595 = vpop.permute.xlu0 %3594
        %3597 = vset.pattern.permute.xlu0 15
        %3598 = vperm.xlu0 %3597, %v1783
        %v3599 = vpop.permute.xlu0 %3598
        %3601 = vset.pattern.permute.xlu0 15
        %3602 = vperm.xlu0 %3601, %v1784
        %v3603 = vpop.permute.xlu0 %3602
        %3605 = vset.pattern.permute.xlu0 15
        %3606 = vperm.xlu0 %3605, %v1785
        %v3607 = vpop.permute.xlu0 %3606
        %3609 = vset.pattern.permute.xlu0 15
        %3610 = vperm.xlu0 %3609, %v1786
        %v3611 = vpop.permute.xlu0 %3610
        %3613 = vset.pattern.permute.xlu0 15
        %3614 = vperm.xlu0 %3613, %v1787
        %v3615 = vpop.permute.xlu0 %3614
        %3617 = vset.pattern.permute.xlu0 15
        %3618 = vperm.xlu0 %3617, %v1788
        %v3619 = vpop.permute.xlu0 %3618
        %3621 = vset.pattern.permute.xlu0 15
        %3622 = vperm.xlu0 %3621, %v1789
        %v3623 = vpop.permute.xlu0 %3622
        %v3625 = vadd.f32 %v1555, %v3563
        %v3626 = vadd.f32 %v1556, %v3567
        %v3627 = vadd.f32 %v1557, %v3571
        %v3628 = vadd.f32 %v1558, %v3575
        %v3629 = vadd.f32 %v1559, %v3579
        %v3630 = vadd.f32 %v1560, %v3583
        %v3631 = vadd.f32 %v1561, %v3587
        %v3632 = vadd.f32 %v1562, %v3591
        %v3633 = vadd.f32 %v1563, %v3595
        %v3634 = vadd.f32 %v1564, %v3599
        %v3635 = vadd.f32 %v1565, %v3603
        %v3636 = vadd.f32 %v1566, %v3607
        %v3637 = vadd.f32 %v1567, %v3611
        %v3638 = vadd.f32 %v1568, %v3615
        %v3639 = vadd.f32 %v1569, %v3619
        %v3640 = vadd.f32 %v1570, %v3623
        %v3641 = vsel %vm758, %v3625, -inf
        %v3642 = vsel %vm758, %v3626, -inf
        %v3643 = vsel %vm758, %v3627, -inf
        %v3644 = vsel %vm758, %v3628, -inf
        %v3645 = vsel %vm758, %v3629, -inf
        %v3646 = vmax.f32 %v3641, %v3645
        %v3647 = vsel %vm758, %v3630, -inf
        %v3648 = vmax.f32 %v3642, %v3647
        %v3649 = vsel %vm758, %v3631, -inf
        %v3650 = vmax.f32 %v3643, %v3649
        %v3651 = vsel %vm758, %v3632, -inf
        %v3652 = vmax.f32 %v3644, %v3651
        %v3653 = vsel %vm758, %v3633, -inf
        %v3654 = vmax.f32 %v3646, %v3653
        %v3655 = vsel %vm758, %v3634, -inf
        %v3656 = vmax.f32 %v3648, %v3655
        %v3657 = vsel %vm758, %v3635, -inf
        %v3658 = vmax.f32 %v3650, %v3657
        %v3659 = vsel %vm758, %v3636, -inf
        %v3660 = vmax.f32 %v3652, %v3659
        %v3661 = vsel %vm758, %v3637, -inf
        %v3662 = vmax.f32 %v3654, %v3661
        %v3663 = vsel %vm758, %v3638, -inf
        %v3664 = vmax.f32 %v3656, %v3663
        %v3665 = vsel %vm758, %v3639, -inf
        %v3666 = vmax.f32 %v3658, %v3665
        %v3667 = vsel %vm758, %v3640, -inf
        %v3668 = vmax.f32 %v3660, %v3667
        %v3669 = vmax.f32 %v3662, %v3664
        %v3670 = vmax.f32 %v3666, %v3668
        %v3671 = vmax.f32 %v3669, %v3670
        %v3672 = vrot.slane %v3671, 4
        %v3673 = vmax.f32 %v3671, %v3672
        %v3674 = vrot.slane %v3673, 2
        %v3675 = vmax.f32 %v3673, %v3674
        %v3676 = vrot.slane %v3675, 1
        %v3677 = vmax.f32 %v3675, %v3676
        %vm3678 = vcmask 1040384
        %v3679 = vsel %vm3678, %v1922, %v2039
        %vm3680 = vcmask 1041408
        %v3681 = vsel %vm3680, %v3679, %v2156
        %vm3682 = vcmask 1042432
        %v3683 = vsel %vm3682, %v3681, %v2273
        %vm3684 = vcmask 1043456
        %v3685 = vsel %vm3684, %v3683, %v2390
        %vm3686 = vcmask 1044480
        %v3687 = vsel %vm3686, %v3685, %v2507
        %vm3688 = vcmask 1045504
        %v3689 = vsel %vm3688, %v3687, %v2624
        %vm3690 = vcmask 1046528
        %v3691 = vsel %vm3690, %v3689, %v2741
        %v3692 = vsel %vm3678, %v2858, %v2975
        %v3693 = vsel %vm3680, %v3692, %v3092
        %v3694 = vsel %vm3682, %v3693, %v3209
        %v3695 = vsel %vm3684, %v3694, %v3326
        %v3696 = vsel %vm3686, %v3695, %v3443
        %v3697 = vsel %vm3688, %v3696, %v3560
        %v3698 = vsel %vm3690, %v3697, %v3677
        %v3700 = vsel %vm758, %v1755, 0
        %v3703 = vsel %vm758, %v1757, 0
        %3705 = vmatprep.subr.mxu0 0.0
        %3706 = vmatpush1.msra.mxu0 %v210
        %3707 = vmatprep.subr.mxu0 0.0
        %3708 = vmatpush1.msra.mxu0 %v211
        %3709 = vmatprep.subr.mxu0 0.0
        %3710 = vmatpush1.msra.mxu0 %v212
        %3711 = vmatprep.subr.mxu0 0.0
        %3712 = vmatpush1.msra.mxu0 %v213
        %3713 = vmatprep.subr.mxu0 0.0
        %3714 = vmatpush1.msra.mxu0 0.0
        %3715 = vmatprep.subr.mxu0 0.0
        %3716 = vmatpush1.msra.mxu0 0.0
        %3717 = vmatprep.subr.mxu0 0.0
        %3718 = vmatpush1.msra.mxu0 0.0
        %3719 = vmatprep.subr.mxu0 0.0
        %3720 = vmatpush1.msra.mxu0 0.0
        %3721 = vmatprep.subr.mxu0 0.0
        %3722 = vmatpush1.msra.mxu0 0.0
        %3723 = vmatprep.subr.mxu0 0.0
        %3724 = vmatpush1.msra.mxu0 0.0
        %3725 = vmatprep.subr.mxu0 0.0
        %3726 = vmatpush1.msra.mxu0 0.0
        %3727 = vmatprep.subr.mxu0 0.0
        %3728 = vmatpush1.msra.mxu0 0.0
        %3729 = vmatprep.subr.mxu0 0.0
        %3730 = vmatpush1.msra.mxu0 0.0
        %3731 = vmatprep.subr.mxu0 0.0
        %3732 = vmatpush1.msra.mxu0 0.0
        %3733 = vmatprep.subr.mxu0 0.0
        %3734 = vmatpush1.msra.mxu0 0.0
        %3735 = vmatprep.subr.mxu0 0.0
        %3736 = vmatpush1.msra.mxu0 0.0
        %3737 = vmatprep.subr.mxu0 0.0
        %3738 = vmatpush1.msra.mxu0 0.0
        %3739 = vmatprep.subr.mxu0 0.0
        %3740 = vmatpush1.msra.mxu0 0.0
        %3741 = vmatprep.subr.mxu0 0.0
        %3742 = vmatpush1.msra.mxu0 0.0
        %3743 = vmatprep.subr.mxu0 0.0
        %3744 = vmatpush1.msra.mxu0 0.0
        %3745 = vmatprep.subr.mxu0 0.0
        %3746 = vmatpush1.msra.mxu0 0.0
        %3747 = vmatprep.subr.mxu0 0.0
        %3748 = vmatpush1.msra.mxu0 0.0
        %3749 = vmatprep.subr.mxu0 0.0
        %3750 = vmatpush1.msra.mxu0 0.0
        %3751 = vmatprep.subr.mxu0 0.0
        %3752 = vmatpush1.msra.mxu0 0.0
        %3753 = vmatprep.subr.mxu0 0.0
        %3754 = vmatpush1.msra.mxu0 0.0
        %3755 = vmatprep.subr.mxu0 0.0
        %3756 = vmatpush1.msra.mxu0 0.0
        %3757 = vmatprep.subr.mxu0 0.0
        %3758 = vmatpush1.msra.mxu0 0.0
        %3759 = vmatprep.subr.mxu0 0.0
        %3760 = vmatpush1.msra.mxu0 0.0
        %3761 = vmatprep.subr.mxu0 0.0
        %3762 = vmatpush1.msra.mxu0 0.0
        %3763 = vmatprep.subr.mxu0 0.0
        %3764 = vmatpush1.msra.mxu0 0.0
        %3765 = vmatprep.subr.mxu0 0.0
        %3766 = vmatpush1.msra.mxu0 0.0
        %3767 = vmatprep.subr.mxu0 0.0
        %3768 = vmatpush1.msra.mxu0 0.0
        %3769 = vmatprep.mubr.f32.mxu0 0.0
        %3770 = vmatmul.mubr.f32.gmra.mrb[0].mxu0 %v3700
        %v3771 = vpop.f32.mrb[0].mxu0
        %v3772 = vadd.f32 0.0, %v3771
        %v3773 = vpop.f32.mrb[0].mxu0
        %3774 = vmatprep.mubr.f32.mxu0 0.0
        %3775 = vmatmul.mubr.f32.gmra.mrb[0].mxu0 %v3703
        %v3776 = vpop.f32.mrb[0].mxu0
        %v3777 = vadd.f32 0.0, %v3776
        %v3778 = vpop.f32.mrb[0].mxu0
        %3779 = vdwg.mxu0
        %v3781 = vsel %vm758, %v3691, 0
        %v3784 = vsel %vm758, %v3698, 0
        %3786 = vmatprep.subr.mxu0 0.0
        %3787 = vmatpush1.msra.mxu0 %v206
        %3788 = vmatprep.subr.mxu0 0.0
        %3789 = vmatpush1.msra.mxu0 %v207
        %3790 = vmatprep.subr.mxu0 0.0
        %3791 = vmatpush1.msra.mxu0 %v208
        %3792 = vmatprep.subr.mxu0 0.0
        %3793 = vmatpush1.msra.mxu0 %v209
        %3794 = vmatprep.subr.mxu0 0.0
        %3795 = vmatpush1.msra.mxu0 0.0
        %3796 = vmatprep.subr.mxu0 0.0
        %3797 = vmatpush1.msra.mxu0 0.0
        %3798 = vmatprep.subr.mxu0 0.0
        %3799 = vmatpush1.msra.mxu0 0.0
        %3800 = vmatprep.subr.mxu0 0.0
        %3801 = vmatpush1.msra.mxu0 0.0
        %3802 = vmatprep.subr.mxu0 0.0
        %3803 = vmatpush1.msra.mxu0 0.0
        %3804 = vmatprep.subr.mxu0 0.0
        %3805 = vmatpush1.msra.mxu0 0.0
        %3806 = vmatprep.subr.mxu0 0.0
        %3807 = vmatpush1.msra.mxu0 0.0
        %3808 = vmatprep.subr.mxu0 0.0
        %3809 = vmatpush1.msra.mxu0 0.0
        %3810 = vmatprep.subr.mxu0 0.0
        %3811 = vmatpush1.msra.mxu0 0.0
        %3812 = vmatprep.subr.mxu0 0.0
        %3813 = vmatpush1.msra.mxu0 0.0
        %3814 = vmatprep.subr.mxu0 0.0
        %3815 = vmatpush1.msra.mxu0 0.0
        %3816 = vmatprep.subr.mxu0 0.0
        %3817 = vmatpush1.msra.mxu0 0.0
        %3818 = vmatprep.subr.mxu0 0.0
        %3819 = vmatpush1.msra.mxu0 0.0
        %3820 = vmatprep.subr.mxu0 0.0
        %3821 = vmatpush1.msra.mxu0 0.0
        %3822 = vmatprep.subr.mxu0 0.0
        %3823 = vmatpush1.msra.mxu0 0.0
        %3824 = vmatprep.subr.mxu0 0.0
        %3825 = vmatpush1.msra.mxu0 0.0
        %3826 = vmatprep.subr.mxu0 0.0
        %3827 = vmatpush1.msra.mxu0 0.0
        %3828 = vmatprep.subr.mxu0 0.0
        %3829 = vmatpush1.msra.mxu0 0.0
        %3830 = vmatprep.subr.mxu0 0.0
        %3831 = vmatpush1.msra.mxu0 0.0
        %3832 = vmatprep.subr.mxu0 0.0
        %3833 = vmatpush1.msra.mxu0 0.0
        %3834 = vmatprep.subr.mxu0 0.0
        %3835 = vmatpush1.msra.mxu0 0.0
        %3836 = vmatprep.subr.mxu0 0.0
        %3837 = vmatpush1.msra.mxu0 0.0
        %3838 = vmatprep.subr.mxu0 0.0
        %3839 = vmatpush1.msra.mxu0 0.0
        %3840 = vmatprep.subr.mxu0 0.0
        %3841 = vmatpush1.msra.mxu0 0.0
        %3842 = vmatprep.subr.mxu0 0.0
        %3843 = vmatpush1.msra.mxu0 0.0
        %3844 = vmatprep.subr.mxu0 0.0
        %3845 = vmatpush1.msra.mxu0 0.0
        %3846 = vmatprep.subr.mxu0 0.0
        %3847 = vmatpush1.msra.mxu0 0.0
        %3848 = vmatprep.subr.mxu0 0.0
        %3849 = vmatpush1.msra.mxu0 0.0
        %3850 = vmatprep.mubr.f32.mxu0 0.0
        %3851 = vmatmul.mubr.f32.gmra.mrb[0].mxu0 %v3781
        %v3852 = vpop.f32.mrb[0].mxu0
        %v3853 = vadd.f32 %v3772, %v3852
        %v3854 = vpop.f32.mrb[0].mxu0
        %3855 = vmatprep.mubr.f32.mxu0 0.0
        %3856 = vmatmul.mubr.f32.gmra.mrb[0].mxu0 %v3784
        %v3857 = vpop.f32.mrb[0].mxu0
        %v3858 = vadd.f32 %v3777, %v3857
        %v3859 = vpop.f32.mrb[0].mxu0
        %3860 = vdwg.mxu0
        %v3861 = vlaneseq
        %v3862 = vshrl.u32 %v3861, 7
        %v3863 = vsub.s32 0, %v3862
        %v3864 = vrot.slane %v197, %v3863
        %v3865 = vadd.f32 %v3853, %v3864
        %v3866 = vadd.f32 %v3858, %v3864
        %v3867 = vtanh.pop %v3865
        %v3868 = vtanh.pop %v3866
        %3869 = vst [vmem:[%s136] sm:$0xff] %v3867
        %3870 = vst [vmem:[%s136 + $0x8] sm:$0xff] %v3868
        %s3871 = sand.u32 %s71, 1
        %s3872 = scalar_lea.sflag [#allocation3], %s3871
        %s3873 = sand.u32 %s71, 1
        %s3874 = smul.addr %s3873, 16
        %s3875 = scalar_lea.vmem [#allocation2], %s3874
        // Predicated region
        $region29: #{gcn_magnet_forward_batched.1} parent=27 // pred_check
          %p3876 = pneg %p81
        $region30: #{gcn_magnet_forward_batched.1} parent=27 // pred_check_branch
          %3878 = sbr.rel (%p3876) target = $region32
        $region31: #{gcn_magnet_forward_batched.1} parent=27 // pred_region
          %s3879 = smul.u32 2, %s16
          %s3881 = ssub.s32 256, 256
          %3882 = vsyncadd %s3872, %s3881
          %s3883 = smul.addr %s3879, 128
          %s3884 = scalar_lea.hbm %s2, %s3883
          %s3885 = sshll.u32 %s3875, 4
          %s3886 = int_to_ptr.vmem [resolvable:$true] %s3885
          %3891 = dma.vmem_to_hbm [thread:$0]  %s3886, 256, %s3884, %s3872, 128, 128, 8
        $region32: #{gcn_magnet_forward_batched.1} parent=27 // pred_fallthru
          _
      $region28: #{gcn_magnet_forward_batched.1} parent=5 // pred_fallthru
        _
      %p3892 = scmp.le.s32.totalorder 2, %s11
      // Predicated region
      $region33: #{gcn_magnet_forward_batched.1} parent=5 // pred_check
        %p3893 = pneg %p3892
      $region34: #{gcn_magnet_forward_batched.1} parent=5 // pred_check_branch
        %3895 = sbr.rel (%p3893) target = $region36
      $region35: #{gcn_magnet_forward_batched.1} parent=5 // pred_region
        %s3896 = ssub.s32 %s11, 2
        // Predicated region
        $region37: #{gcn_magnet_forward_batched.1} parent=35 // pred_check
          %p3897 = pneg %p87
        $region38: #{gcn_magnet_forward_batched.1} parent=35 // pred_check_branch
          %3899 = sbr.rel (%p3897) target = $region40
        $region39: #{gcn_magnet_forward_batched.1} parent=35 // pred_region
          %s3900 = sand.u32 %s72, 1
          %s3901 = scalar_lea.sflag [#allocation3], %s3900
          %s3902 = sand.u32 %s72, 1
          %s3903 = smul.addr %s3902, 16
          %s3904 = scalar_lea.vmem [#allocation2], %s3903
          %3905 = dma.done %s3901, 256
        $region40: #{gcn_magnet_forward_batched.1} parent=35 // pred_fallthru
          _
      $region36: #{gcn_magnet_forward_batched.1} parent=5 // pred_fallthru
        _
    $region6: #{gcn_magnet_forward_batched.1} parent=1 // loop_footer
      %s15 = sadd.s32 1, %s11
    $region7: #{gcn_magnet_forward_batched.1} parent=1 // loop_footer_branch
      %10 = sbr.rel target = $region3
    $region8: #{gcn_magnet_forward_batched.1} parent=1 // loop_exit
      _
    %3906 = vsyncpa [#allocation3], 1
    %s3907 = scalar_lea.sflag [#allocation3], 1
    %3908 = vsyncpa %s3907, 1

</llo_original>
